<compile_context>
chip_gen: v7x
topology: tpu7x:2x2x1
jax: 0.10.0
libtpu: 0.0.40
codegen_flags: <defaults>
</compile_context>

<pallas_src>
import functools

import jax
import jax.numpy as jnp
from jax import lax
from jax.experimental import pallas as pl
from jax.experimental.pallas import tpu as pltpu


def output_kernel(bits_ref, xl_ref, xc_ref, xr_ref, w_ref, b_ref, o_ref,
                  win_ref, patch_ref, mx_ref, *, C, CK, K, H, W, S_BLK, HB, eps):
    j = pl.program_id(1)
    nj = pl.num_programs(1)
    CK_pad = patch_ref.shape[0]
    HW = H * W

    # ---- once per batch element: reset running max, zero the padded contraction rows ----
    @pl.when(j == 0)
    def _init():
        mx_ref[...] = jnp.zeros_like(mx_ref)          # post-ReLU values are >= 0
        if CK_pad > CK:
            patch_ref[CK:, :] = jnp.zeros((CK_pad - CK, S_BLK), dtype=patch_ref.dtype)

    # ---- halo'd input window: flat lanes [j*S_BLK - HB, (j+1)*S_BLK + HB) ----
    win_ref[:, 0:HB] = xl_ref[...]
    win_ref[:, HB:HB + S_BLK] = xc_ref[...]
    win_ref[:, HB + S_BLK:HB + S_BLK + HB] = xr_ref[...]

    bits = bits_ref[...]                              # (1, S_BLK) int32 tap-validity bits

    # ---- in-VMEM im2col: 27 shifted + masked copies of the flat input block ----
    # Mask math stays at 1 row; jnp.where broadcasts the predicate across the C channels.
    t = 0
    for dd in (-1, 0, 1):
        for dh in (-1, 0, 1):
            for dw in (-1, 0, 1):
                off = dd * HW + dh * W + dw           # static flat shift of this tap
                shifted = win_ref[:, HB + off:HB + off + S_BLK]          # (C, S_BLK)
                keep = (bits & (1 << t)) != 0                            # (1, S_BLK)
                patch_ref[t * C:(t + 1) * C, :] = jnp.where(
                    keep, shifted, jnp.zeros_like(shifted))
                t += 1

    # ---- Conv3d as one MXU matmul (bf16 in, f32 accumulate) + bias + ReLU ----
    acc = jnp.dot(w_ref[...], patch_ref[...], preferred_element_type=jnp.float32)
    acc = jnp.maximum(acc + b_ref[...], 0.0)
    acc = acc[:K, :]                                  # drop padded output channels
    # zero lanes beyond the true volume (post-ReLU >= 0, keeps the amax clean)
    live = (bits & (1 << 27)) != 0                    # (1, S_BLK)
    acc = jnp.where(live, acc, 0.0)

    start = pl.multiple_of(j * S_BLK, S_BLK)
    o_ref[:, pl.ds(start, S_BLK)] = acc
    mx_ref[...] = jnp.maximum(mx_ref[...], jnp.max(acc, axis=-1, keepdims=True))

    # ---- last spatial step: normalize the resident output by the per-(n, k) amax ----
    @pl.when(j == nj - 1)
    def _finalize():
        inv = pl.reciprocal(mx_ref[...] + eps, approx=False)
        o_ref[...] = o_ref[...] * inv


def output_forward(x, weight, bias, eps=1e-9):
    """x: (N, 16, D, H, W) f32; weight: (K, 16, 3, 3, 3); bias: (K,) -> (N, K, D, H, W) f32."""
    N, C, D, H, W = x.shape
    K = weight.shape[0]
    HW = H * W
    S = D * HW

    P = HW + W + 1                                   # largest |flat shift| of a 3x3x3 tap
    HB = 128 * ((P + 127) // 128)                    # halo block: lane-aligned, >= P

    CK = 27 * C
    CK_pad = 256 * ((CK + 255) // 256)               # padded contraction -> unmasked matmul
    K_pad = 8 * ((K + 7) // 8)                       # minimal sublane padding (MXU not the bottleneck)

    # ---- size the spatial tile from a per-generation VMEM budget ----
    try:
        vmem_cap = int(pltpu.get_tpu_info().vmem_capacity_bytes)
    except Exception:
        vmem_cap = 64 * 1024 * 1024                  # v7x-sized conservative fallback
    budget = min(int(vmem_cap * 0.6), 96 * 1024 * 1024)

    def vmem_estimate(n_hb):
        s_blk = n_hb * HB
        s_pad = s_blk * (-(-S // s_blk))
        per_step = (CK_pad * s_blk * 2               # patch matrix (bf16)
                    + C * (s_blk + 2 * HB) * 2       # halo'd window (bf16)
                    + 2 * C * s_blk * 2              # center input block, double-buffered
                    + 2 * 2 * C * HB * 2             # two halo blocks, double-buffered
                    + 2 * s_blk * 4)                 # tap bits, double-buffered
        resident = 2 * K * s_pad * 4                 # resident f32 output, revolved over n
        return per_step + resident

    n_max = -(-S // HB)
    n_hb = 1
    for n in range(1, n_max + 1):
        if vmem_estimate(n) > budget or CK_pad * n * HB * 2 > 8 * 1024 * 1024:
            break
        n_hb = n
    S_BLK = n_hb * HB                                # spatial tile (multiple of HB and 128)
    S_pad = S_BLK * (-(-S // S_BLK))                 # padded flat spatial length
    NJ = S_pad // S_BLK
    NHB = S_pad // HB
    R = S_BLK // HB

    vmem_limit = int(min(max(vmem_estimate(n_hb) + (6 << 20), 32 << 20),
                         int(vmem_cap * 0.8)))

    # ---- glue (cheap, O(input)): flatten + bf16 cast; reorder/pad weights; tap bitmask ----
    x_flat = x.reshape(N, C, S).astype(jnp.bfloat16)
    if S_pad != S:
        x_flat = jnp.pad(x_flat, ((0, 0), (0, 0), (0, S_pad - S)))

    # weight row ordering = tap*C + c, tap = (kd*3 + kh)*3 + kw (matches the kernel loop)
    w2 = jnp.transpose(weight, (0, 2, 3, 4, 1)).reshape(K, CK)
    w2 = jnp.pad(w2, ((0, K_pad - K), (0, CK_pad - CK))).astype(jnp.bfloat16)
    b2 = jnp.pad(bias.astype(jnp.float32), (0, K_pad - K)).reshape(K_pad, 1)

    # per-lane validity bits: bit t (t in [0,27)) = tap t reads an in-bounds voxel,
    # bit 27 = lane is inside the true (unpadded) volume.
    s_idx = jnp.arange(S_pad, dtype=jnp.int32)
    d_i = s_idx // HW
    h_i = (s_idx // W) % H
    w_i = s_idx % W
    live = s_idx < S
    bits = jnp.zeros((S_pad,), dtype=jnp.int32)
    t = 0
    for dd in (-1, 0, 1):
        for dh in (-1, 0, 1):
            for dw in (-1, 0, 1):
                ok = (live
                      & (d_i + dd >= 0) & (d_i + dd < D)
                      & (h_i + dh >= 0) & (h_i + dh < H)
                      & (w_i + dw >= 0) & (w_i + dw < W))
                bits = bits | (ok.astype(jnp.int32) << t)
                t += 1
    bits = (bits | (live.astype(jnp.int32) << 27)).reshape(1, S_pad)

    kernel = functools.partial(output_kernel, C=C, CK=CK, K=K, H=H, W=W,
                               S_BLK=S_BLK, HB=HB, eps=eps)

    out = pl.pallas_call(
        kernel,
        out_shape=jax.ShapeDtypeStruct((N, K, S_pad), jnp.float32),
        grid=(N, NJ),
        in_specs=[
            pl.BlockSpec((1, S_BLK), lambda n, j: (0, j)),                   # tap bits
            pl.BlockSpec((None, C, HB),                                      # left halo
                         lambda n, j: (n, 0, jnp.maximum(j * R - 1, 0))),
            pl.BlockSpec((None, C, S_BLK), lambda n, j: (n, 0, j)),          # current block
            pl.BlockSpec((None, C, HB),                                      # right halo
                         lambda n, j: (n, 0, jnp.minimum((j + 1) * R, NHB - 1))),
            pl.BlockSpec((K_pad, CK_pad), lambda n, j: (0, 0)),              # weights (resident)
            pl.BlockSpec((K_pad, 1), lambda n, j: (0, 0)),                   # bias
        ],
        out_specs=pl.BlockSpec((None, K, S_pad), lambda n, j: (n, 0, 0)),    # only K real channels
        scratch_shapes=[
            pltpu.VMEM((C, S_BLK + 2 * HB), jnp.bfloat16),   # halo'd input window
            pltpu.VMEM((CK_pad, S_BLK), jnp.bfloat16),       # in-VMEM im2col patch matrix
            pltpu.VMEM((K, 1), jnp.float32),                 # running spatial max
        ],
        compiler_params=pltpu.CompilerParams(
            dimension_semantics=("parallel", "arbitrary"),
            vmem_limit_bytes=vmem_limit),
    )(bits, x_flat, x_flat, x_flat, w2, b2)

    out = out if S_pad == S else out[:, :, :S]       # free when S_pad == S
    return out.reshape(N, K, D, H, W)


def reference(x, weight, bias, eps=1e-9):
    # Plain-JAX f32 reference mirroring the PyTorch forward.
    out = lax.conv_general_dilated(
        x, weight, window_strides=(1, 1, 1),
        padding=((1, 1), (1, 1), (1, 1)),
        dimension_numbers=('NCDHW', 'OIDHW', 'NCDHW'))
    out = out + bias.reshape(1, -1, 1, 1, 1)
    out = jnp.maximum(out, 0.0)
    m = jnp.max(out, axis=(2, 3, 4), keepdims=True)
    return out * (1.0 / (m + eps))


if __name__ == "__main__":
    key = jax.random.PRNGKey(0)
    kx, kw, kb = jax.random.split(key, 3)

    N, C, D, H, W = 2, 16, 8, 8, 8   # Conv3d in_channels is fixed at 16 by the module
    K = 4                            # k_networks

    x = jax.random.normal(kx, (N, C, D, H, W), dtype=jnp.float32)
    # trunc_normal_(std=0.01, a=-0.02, b=0.02) == truncated N(0,1) on [-2, 2] scaled by 0.01
    weight = jax.random.truncated_normal(
        kw, -2.0, 2.0, (K, C, 3, 3, 3), dtype=jnp.float32) * 0.01
    # Conv3d default bias init: U(-1/sqrt(fan_in), 1/sqrt(fan_in)), fan_in = 16*27 = 432
    bound = 1.0 / jnp.sqrt(432.0)
    bias = jax.random.uniform(kb, (K,), dtype=jnp.float32, minval=-bound, maxval=bound)

    out = jax.block_until_ready(output_forward(x, weight, bias))
    ref = reference(x, weight, bias)

    assert out.shape == (N, K, D, H, W)
    # bf16 inputs/weights (f32 accumulate) -> loosened tolerance vs the f32 reference
    max_err = float(jnp.max(jnp.abs(out - ref)))
    assert jnp.allclose(out, ref, rtol=5e-2, atol=2e-2), max_err

    print("KERNEL_OK")
</pallas_src>

<mosaic_0001>
module attributes {stable_mosaic.version = 11 : i64} {
  func.func @output_kernel(%arg0: i32, %arg1: i32, %arg2: memref<1x512xi32, #tpu.memory_space<vmem>>, %arg3: memref<1x16x128xbf16, #tpu.memory_space<vmem>>, %arg4: memref<1x16x512xbf16, #tpu.memory_space<vmem>>, %arg5: memref<1x16x128xbf16, #tpu.memory_space<vmem>>, %arg6: memref<8x512xbf16, #tpu.memory_space<vmem>>, %arg7: memref<8x1xf32, #tpu.memory_space<vmem>>, %arg8: memref<1x4x512xf32, #tpu.memory_space<vmem>>, %arg9: memref<16x768xbf16, #tpu.memory_space<vmem>>, %arg10: memref<512x512xbf16, #tpu.memory_space<vmem>>, %arg11: memref<4x1xf32, #tpu.memory_space<vmem>>) attributes {dimension_semantics = [#tpu.dimension_semantics<parallel>, #tpu.dimension_semantics<arbitrary>], iteration_bounds = array<i64: 2, 1>, scalar_prefetch = 0 : i64, scratch_operands = 3 : i64, tpu.core_type = #tpu.core_type<tc>, window_params = [{transform_indices = @transform_0, window_bounds = array<i64: 1, 512>}, {transform_indices = @transform_1, window_bounds = array<i64: 1, 16, 128>}, {transform_indices = @transform_2, window_bounds = array<i64: 1, 16, 512>}, {transform_indices = @transform_3, window_bounds = array<i64: 1, 16, 128>}, {pipeline_mode = #tpu.pipeline_mode<synchronous>, transform_indices = @transform_4, window_bounds = array<i64: 8, 512>}, {pipeline_mode = #tpu.pipeline_mode<synchronous>, transform_indices = @transform_5, window_bounds = array<i64: 8, 1>}, {transform_indices = @transform_6, window_bounds = array<i64: 1, 4, 512>}]} {
    %c0_i32 = arith.constant 0 : i32
    %0 = arith.cmpi eq, %arg1, %c0_i32 : i32
    %1 = arith.extui %0 : i1 to i32
    %c0_i32_0 = arith.constant 0 : i32
    %2 = arith.cmpi ne, %1, %c0_i32_0 : i32
    scf.if %2 {
      %cst_147 = arith.constant 0.000000e+00 : f32
      %314 = vector.broadcast %cst_147 : f32 to vector<4x1xf32>
      %c0_148 = arith.constant 0 : index
      %c0_149 = arith.constant 0 : index
      %315 = vector.load %arg11[%c0_148, %c0_149] : memref<4x1xf32, #tpu.memory_space<vmem>>, vector<4x1xf32>
      tpu.vector_store %arg11[%c0_148, %c0_149], %314 {strides = array<i32>} : memref<4x1xf32, #tpu.memory_space<vmem>>, vector<4x1xf32>,
      %cst_150 = arith.constant 0.000000e+00 : bf16
      %316 = vector.broadcast %cst_150 : bf16 to vector<80x512xbf16>
      %c432 = arith.constant 432 : index
      %c0_151 = arith.constant 0 : index
      %317 = vector.load %arg10[%c432, %c0_151] : memref<512x512xbf16, #tpu.memory_space<vmem>>, vector<80x512xbf16>
      tpu.vector_store %arg10[%c432, %c0_151], %316 {strides = array<i32>} : memref<512x512xbf16, #tpu.memory_space<vmem>>, vector<80x512xbf16>,
    } else {
    }
    %c0 = arith.constant 0 : index
    %c0_1 = arith.constant 0 : index
    %c0_2 = arith.constant 0 : index
    %3 = vector.load %arg3[%c0, %c0_1, %c0_2] : memref<1x16x128xbf16, #tpu.memory_space<vmem>>, vector<1x16x128xbf16>
    %4 = vector.shape_cast %3 : vector<1x16x128xbf16> to vector<16x128xbf16>
    %c0_3 = arith.constant 0 : index
    %c0_4 = arith.constant 0 : index
    %5 = vector.load %arg9[%c0_3, %c0_4] : memref<16x768xbf16, #tpu.memory_space<vmem>>, vector<16x128xbf16>
    tpu.vector_store %arg9[%c0_3, %c0_4], %4 {strides = array<i32>} : memref<16x768xbf16, #tpu.memory_space<vmem>>, vector<16x128xbf16>,
    %c0_5 = arith.constant 0 : index
    %c0_6 = arith.constant 0 : index
    %c0_7 = arith.constant 0 : index
    %6 = vector.load %arg4[%c0_5, %c0_6, %c0_7] : memref<1x16x512xbf16, #tpu.memory_space<vmem>>, vector<1x16x512xbf16>
    %7 = vector.shape_cast %6 : vector<1x16x512xbf16> to vector<16x512xbf16>
    %c0_8 = arith.constant 0 : index
    %c128 = arith.constant 128 : index
    %8 = vector.load %arg9[%c0_8, %c128] : memref<16x768xbf16, #tpu.memory_space<vmem>>, vector<16x512xbf16>
    tpu.vector_store %arg9[%c0_8, %c128], %7 {strides = array<i32>} : memref<16x768xbf16, #tpu.memory_space<vmem>>, vector<16x512xbf16>,
    %c0_9 = arith.constant 0 : index
    %c0_10 = arith.constant 0 : index
    %c0_11 = arith.constant 0 : index
    %9 = vector.load %arg5[%c0_9, %c0_10, %c0_11] : memref<1x16x128xbf16, #tpu.memory_space<vmem>>, vector<1x16x128xbf16>
    %10 = vector.shape_cast %9 : vector<1x16x128xbf16> to vector<16x128xbf16>
    %c0_12 = arith.constant 0 : index
    %c640 = arith.constant 640 : index
    %11 = vector.load %arg9[%c0_12, %c640] : memref<16x768xbf16, #tpu.memory_space<vmem>>, vector<16x128xbf16>
    tpu.vector_store %arg9[%c0_12, %c640], %10 {strides = array<i32>} : memref<16x768xbf16, #tpu.memory_space<vmem>>, vector<16x128xbf16>,
    %c0_13 = arith.constant 0 : index
    %c0_14 = arith.constant 0 : index
    %12 = vector.load %arg2[%c0_13, %c0_14] : memref<1x512xi32, #tpu.memory_space<vmem>>, vector<1x512xi32>
    %c0_15 = arith.constant 0 : index
    %c55 = arith.constant 55 : index
    %13 = vector.load %arg9[%c0_15, %c55] : memref<16x768xbf16, #tpu.memory_space<vmem>>, vector<16x512xbf16>
    %c1_i32 = arith.constant 1 : i32
    %14 = vector.broadcast %c1_i32 : i32 to vector<1x512xi32>
    %15 = arith.andi %12, %14 : vector<1x512xi32>
    %c0_i32_16 = arith.constant 0 : i32
    %16 = vector.broadcast %c0_i32_16 : i32 to vector<1x512xi32>
    %17 = arith.cmpi ne, %15, %16 : vector<1x512xi32>
    %cst = arith.constant 0.000000e+00 : bf16
    %18 = vector.broadcast %cst : bf16 to vector<16x512xbf16>
    %19 = vector.shape_cast %17 : vector<1x512xi1> to vector<1x512xi1>
    %20 = vector.broadcast %19 : vector<1x512xi1> to vector<16x512xi1>
    %21 = arith.select %20, %13, %18 : vector<16x512xi1>, vector<16x512xbf16>
    %c0_17 = arith.constant 0 : index
    %c0_18 = arith.constant 0 : index
    %22 = vector.load %arg10[%c0_17, %c0_18] : memref<512x512xbf16, #tpu.memory_space<vmem>>, vector<16x512xbf16>
    tpu.vector_store %arg10[%c0_17, %c0_18], %21 {strides = array<i32>} : memref<512x512xbf16, #tpu.memory_space<vmem>>, vector<16x512xbf16>,
    %c0_19 = arith.constant 0 : index
    %c56 = arith.constant 56 : index
    %23 = vector.load %arg9[%c0_19, %c56] : memref<16x768xbf16, #tpu.memory_space<vmem>>, vector<16x512xbf16>
    %c2_i32 = arith.constant 2 : i32
    %24 = vector.broadcast %c2_i32 : i32 to vector<1x512xi32>
    %25 = arith.andi %12, %24 : vector<1x512xi32>
    %c0_i32_20 = arith.constant 0 : i32
    %26 = vector.broadcast %c0_i32_20 : i32 to vector<1x512xi32>
    %27 = arith.cmpi ne, %25, %26 : vector<1x512xi32>
    %cst_21 = arith.constant 0.000000e+00 : bf16
    %28 = vector.broadcast %cst_21 : bf16 to vector<16x512xbf16>
    %29 = vector.shape_cast %27 : vector<1x512xi1> to vector<1x512xi1>
    %30 = vector.broadcast %29 : vector<1x512xi1> to vector<16x512xi1>
    %31 = arith.select %30, %23, %28 : vector<16x512xi1>, vector<16x512xbf16>
    %c16 = arith.constant 16 : index
    %c0_22 = arith.constant 0 : index
    %32 = vector.load %arg10[%c16, %c0_22] : memref<512x512xbf16, #tpu.memory_space<vmem>>, vector<16x512xbf16>
    tpu.vector_store %arg10[%c16, %c0_22], %31 {strides = array<i32>} : memref<512x512xbf16, #tpu.memory_space<vmem>>, vector<16x512xbf16>,
    %c0_23 = arith.constant 0 : index
    %c57 = arith.constant 57 : index
    %33 = vector.load %arg9[%c0_23, %c57] : memref<16x768xbf16, #tpu.memory_space<vmem>>, vector<16x512xbf16>
    %c4_i32 = arith.constant 4 : i32
    %34 = vector.broadcast %c4_i32 : i32 to vector<1x512xi32>
    %35 = arith.andi %12, %34 : vector<1x512xi32>
    %c0_i32_24 = arith.constant 0 : i32
    %36 = vector.broadcast %c0_i32_24 : i32 to vector<1x512xi32>
    %37 = arith.cmpi ne, %35, %36 : vector<1x512xi32>
    %cst_25 = arith.constant 0.000000e+00 : bf16
    %38 = vector.broadcast %cst_25 : bf16 to vector<16x512xbf16>
    %39 = vector.shape_cast %37 : vector<1x512xi1> to vector<1x512xi1>
    %40 = vector.broadcast %39 : vector<1x512xi1> to vector<16x512xi1>
    %41 = arith.select %40, %33, %38 : vector<16x512xi1>, vector<16x512xbf16>
    %c32 = arith.constant 32 : index
    %c0_26 = arith.constant 0 : index
    %42 = vector.load %arg10[%c32, %c0_26] : memref<512x512xbf16, #tpu.memory_space<vmem>>, vector<16x512xbf16>
    tpu.vector_store %arg10[%c32, %c0_26], %41 {strides = array<i32>} : memref<512x512xbf16, #tpu.memory_space<vmem>>, vector<16x512xbf16>,
    %c0_27 = arith.constant 0 : index
    %c63 = arith.constant 63 : index
    %43 = vector.load %arg9[%c0_27, %c63] : memref<16x768xbf16, #tpu.memory_space<vmem>>, vector<16x512xbf16>
    %c8_i32 = arith.constant 8 : i32
    %44 = vector.broadcast %c8_i32 : i32 to vector<1x512xi32>
    %45 = arith.andi %12, %44 : vector<1x512xi32>
    %c0_i32_28 = arith.constant 0 : i32
    %46 = vector.broadcast %c0_i32_28 : i32 to vector<1x512xi32>
    %47 = arith.cmpi ne, %45, %46 : vector<1x512xi32>
    %cst_29 = arith.constant 0.000000e+00 : bf16
    %48 = vector.broadcast %cst_29 : bf16 to vector<16x512xbf16>
    %49 = vector.shape_cast %47 : vector<1x512xi1> to vector<1x512xi1>
    %50 = vector.broadcast %49 : vector<1x512xi1> to vector<16x512xi1>
    %51 = arith.select %50, %43, %48 : vector<16x512xi1>, vector<16x512xbf16>
    %c48 = arith.constant 48 : index
    %c0_30 = arith.constant 0 : index
    %52 = vector.load %arg10[%c48, %c0_30] : memref<512x512xbf16, #tpu.memory_space<vmem>>, vector<16x512xbf16>
    tpu.vector_store %arg10[%c48, %c0_30], %51 {strides = array<i32>} : memref<512x512xbf16, #tpu.memory_space<vmem>>, vector<16x512xbf16>,
    %c0_31 = arith.constant 0 : index
    %c64 = arith.constant 64 : index
    %53 = vector.load %arg9[%c0_31, %c64] : memref<16x768xbf16, #tpu.memory_space<vmem>>, vector<16x512xbf16>
    %c16_i32 = arith.constant 16 : i32
    %54 = vector.broadcast %c16_i32 : i32 to vector<1x512xi32>
    %55 = arith.andi %12, %54 : vector<1x512xi32>
    %c0_i32_32 = arith.constant 0 : i32
    %56 = vector.broadcast %c0_i32_32 : i32 to vector<1x512xi32>
    %57 = arith.cmpi ne, %55, %56 : vector<1x512xi32>
    %cst_33 = arith.constant 0.000000e+00 : bf16
    %58 = vector.broadcast %cst_33 : bf16 to vector<16x512xbf16>
    %59 = vector.shape_cast %57 : vector<1x512xi1> to vector<1x512xi1>
    %60 = vector.broadcast %59 : vector<1x512xi1> to vector<16x512xi1>
    %61 = arith.select %60, %53, %58 : vector<16x512xi1>, vector<16x512xbf16>
    %c64_34 = arith.constant 64 : index
    %c0_35 = arith.constant 0 : index
    %62 = vector.load %arg10[%c64_34, %c0_35] : memref<512x512xbf16, #tpu.memory_space<vmem>>, vector<16x512xbf16>
    tpu.vector_store %arg10[%c64_34, %c0_35], %61 {strides = array<i32>} : memref<512x512xbf16, #tpu.memory_space<vmem>>, vector<16x512xbf16>,
    %c0_36 = arith.constant 0 : index
    %c65 = arith.constant 65 : index
    %63 = vector.load %arg9[%c0_36, %c65] : memref<16x768xbf16, #tpu.memory_space<vmem>>, vector<16x512xbf16>
    %c32_i32 = arith.constant 32 : i32
    %64 = vector.broadcast %c32_i32 : i32 to vector<1x512xi32>
    %65 = arith.andi %12, %64 : vector<1x512xi32>
    %c0_i32_37 = arith.constant 0 : i32
    %66 = vector.broadcast %c0_i32_37 : i32 to vector<1x512xi32>
    %67 = arith.cmpi ne, %65, %66 : vector<1x512xi32>
    %cst_38 = arith.constant 0.000000e+00 : bf16
    %68 = vector.broadcast %cst_38 : bf16 to vector<16x512xbf16>
    %69 = vector.shape_cast %67 : vector<1x512xi1> to vector<1x512xi1>
    %70 = vector.broadcast %69 : vector<1x512xi1> to vector<16x512xi1>
    %71 = arith.select %70, %63, %68 : vector<16x512xi1>, vector<16x512xbf16>
    %c80 = arith.constant 80 : index
    %c0_39 = arith.constant 0 : index
    %72 = vector.load %arg10[%c80, %c0_39] : memref<512x512xbf16, #tpu.memory_space<vmem>>, vector<16x512xbf16>
    tpu.vector_store %arg10[%c80, %c0_39], %71 {strides = array<i32>} : memref<512x512xbf16, #tpu.memory_space<vmem>>, vector<16x512xbf16>,
    %c0_40 = arith.constant 0 : index
    %c71 = arith.constant 71 : index
    %73 = vector.load %arg9[%c0_40, %c71] : memref<16x768xbf16, #tpu.memory_space<vmem>>, vector<16x512xbf16>
    %c64_i32 = arith.constant 64 : i32
    %74 = vector.broadcast %c64_i32 : i32 to vector<1x512xi32>
    %75 = arith.andi %12, %74 : vector<1x512xi32>
    %c0_i32_41 = arith.constant 0 : i32
    %76 = vector.broadcast %c0_i32_41 : i32 to vector<1x512xi32>
    %77 = arith.cmpi ne, %75, %76 : vector<1x512xi32>
    %cst_42 = arith.constant 0.000000e+00 : bf16
    %78 = vector.broadcast %cst_42 : bf16 to vector<16x512xbf16>
    %79 = vector.shape_cast %77 : vector<1x512xi1> to vector<1x512xi1>
    %80 = vector.broadcast %79 : vector<1x512xi1> to vector<16x512xi1>
    %81 = arith.select %80, %73, %78 : vector<16x512xi1>, vector<16x512xbf16>
    %c96 = arith.constant 96 : index
    %c0_43 = arith.constant 0 : index
    %82 = vector.load %arg10[%c96, %c0_43] : memref<512x512xbf16, #tpu.memory_space<vmem>>, vector<16x512xbf16>
    tpu.vector_store %arg10[%c96, %c0_43], %81 {strides = array<i32>} : memref<512x512xbf16, #tpu.memory_space<vmem>>, vector<16x512xbf16>,
    %c0_44 = arith.constant 0 : index
    %c72 = arith.constant 72 : index
    %83 = vector.load %arg9[%c0_44, %c72] : memref<16x768xbf16, #tpu.memory_space<vmem>>, vector<16x512xbf16>
    %c128_i32 = arith.constant 128 : i32
    %84 = vector.broadcast %c128_i32 : i32 to vector<1x512xi32>
    %85 = arith.andi %12, %84 : vector<1x512xi32>
    %c0_i32_45 = arith.constant 0 : i32
    %86 = vector.broadcast %c0_i32_45 : i32 to vector<1x512xi32>
    %87 = arith.cmpi ne, %85, %86 : vector<1x512xi32>
    %cst_46 = arith.constant 0.000000e+00 : bf16
    %88 = vector.broadcast %cst_46 : bf16 to vector<16x512xbf16>
    %89 = vector.shape_cast %87 : vector<1x512xi1> to vector<1x512xi1>
    %90 = vector.broadcast %89 : vector<1x512xi1> to vector<16x512xi1>
    %91 = arith.select %90, %83, %88 : vector<16x512xi1>, vector<16x512xbf16>
    %c112 = arith.constant 112 : index
    %c0_47 = arith.constant 0 : index
    %92 = vector.load %arg10[%c112, %c0_47] : memref<512x512xbf16, #tpu.memory_space<vmem>>, vector<16x512xbf16>
    tpu.vector_store %arg10[%c112, %c0_47], %91 {strides = array<i32>} : memref<512x512xbf16, #tpu.memory_space<vmem>>, vector<16x512xbf16>,
    %c0_48 = arith.constant 0 : index
    %c73 = arith.constant 73 : index
    %93 = vector.load %arg9[%c0_48, %c73] : memref<16x768xbf16, #tpu.memory_space<vmem>>, vector<16x512xbf16>
    %c256_i32 = arith.constant 256 : i32
    %94 = vector.broadcast %c256_i32 : i32 to vector<1x512xi32>
    %95 = arith.andi %12, %94 : vector<1x512xi32>
    %c0_i32_49 = arith.constant 0 : i32
    %96 = vector.broadcast %c0_i32_49 : i32 to vector<1x512xi32>
    %97 = arith.cmpi ne, %95, %96 : vector<1x512xi32>
    %cst_50 = arith.constant 0.000000e+00 : bf16
    %98 = vector.broadcast %cst_50 : bf16 to vector<16x512xbf16>
    %99 = vector.shape_cast %97 : vector<1x512xi1> to vector<1x512xi1>
    %100 = vector.broadcast %99 : vector<1x512xi1> to vector<16x512xi1>
    %101 = arith.select %100, %93, %98 : vector<16x512xi1>, vector<16x512xbf16>
    %c128_51 = arith.constant 128 : index
    %c0_52 = arith.constant 0 : index
    %102 = vector.load %arg10[%c128_51, %c0_52] : memref<512x512xbf16, #tpu.memory_space<vmem>>, vector<16x512xbf16>
    tpu.vector_store %arg10[%c128_51, %c0_52], %101 {strides = array<i32>} : memref<512x512xbf16, #tpu.memory_space<vmem>>, vector<16x512xbf16>,
    %c0_53 = arith.constant 0 : index
    %c119 = arith.constant 119 : index
    %103 = vector.load %arg9[%c0_53, %c119] : memref<16x768xbf16, #tpu.memory_space<vmem>>, vector<16x512xbf16>
    %c512_i32 = arith.constant 512 : i32
    %104 = vector.broadcast %c512_i32 : i32 to vector<1x512xi32>
    %105 = arith.andi %12, %104 : vector<1x512xi32>
    %c0_i32_54 = arith.constant 0 : i32
    %106 = vector.broadcast %c0_i32_54 : i32 to vector<1x512xi32>
    %107 = arith.cmpi ne, %105, %106 : vector<1x512xi32>
    %cst_55 = arith.constant 0.000000e+00 : bf16
    %108 = vector.broadcast %cst_55 : bf16 to vector<16x512xbf16>
    %109 = vector.shape_cast %107 : vector<1x512xi1> to vector<1x512xi1>
    %110 = vector.broadcast %109 : vector<1x512xi1> to vector<16x512xi1>
    %111 = arith.select %110, %103, %108 : vector<16x512xi1>, vector<16x512xbf16>
    %c144 = arith.constant 144 : index
    %c0_56 = arith.constant 0 : index
    %112 = vector.load %arg10[%c144, %c0_56] : memref<512x512xbf16, #tpu.memory_space<vmem>>, vector<16x512xbf16>
    tpu.vector_store %arg10[%c144, %c0_56], %111 {strides = array<i32>} : memref<512x512xbf16, #tpu.memory_space<vmem>>, vector<16x512xbf16>,
    %c0_57 = arith.constant 0 : index
    %c120 = arith.constant 120 : index
    %113 = vector.load %arg9[%c0_57, %c120] : memref<16x768xbf16, #tpu.memory_space<vmem>>, vector<16x512xbf16>
    %c1024_i32 = arith.constant 1024 : i32
    %114 = vector.broadcast %c1024_i32 : i32 to vector<1x512xi32>
    %115 = arith.andi %12, %114 : vector<1x512xi32>
    %c0_i32_58 = arith.constant 0 : i32
    %116 = vector.broadcast %c0_i32_58 : i32 to vector<1x512xi32>
    %117 = arith.cmpi ne, %115, %116 : vector<1x512xi32>
    %cst_59 = arith.constant 0.000000e+00 : bf16
    %118 = vector.broadcast %cst_59 : bf16 to vector<16x512xbf16>
    %119 = vector.shape_cast %117 : vector<1x512xi1> to vector<1x512xi1>
    %120 = vector.broadcast %119 : vector<1x512xi1> to vector<16x512xi1>
    %121 = arith.select %120, %113, %118 : vector<16x512xi1>, vector<16x512xbf16>
    %c160 = arith.constant 160 : index
    %c0_60 = arith.constant 0 : index
    %122 = vector.load %arg10[%c160, %c0_60] : memref<512x512xbf16, #tpu.memory_space<vmem>>, vector<16x512xbf16>
    tpu.vector_store %arg10[%c160, %c0_60], %121 {strides = array<i32>} : memref<512x512xbf16, #tpu.memory_space<vmem>>, vector<16x512xbf16>,
    %c0_61 = arith.constant 0 : index
    %c121 = arith.constant 121 : index
    %123 = vector.load %arg9[%c0_61, %c121] : memref<16x768xbf16, #tpu.memory_space<vmem>>, vector<16x512xbf16>
    %c2048_i32 = arith.constant 2048 : i32
    %124 = vector.broadcast %c2048_i32 : i32 to vector<1x512xi32>
    %125 = arith.andi %12, %124 : vector<1x512xi32>
    %c0_i32_62 = arith.constant 0 : i32
    %126 = vector.broadcast %c0_i32_62 : i32 to vector<1x512xi32>
    %127 = arith.cmpi ne, %125, %126 : vector<1x512xi32>
    %cst_63 = arith.constant 0.000000e+00 : bf16
    %128 = vector.broadcast %cst_63 : bf16 to vector<16x512xbf16>
    %129 = vector.shape_cast %127 : vector<1x512xi1> to vector<1x512xi1>
    %130 = vector.broadcast %129 : vector<1x512xi1> to vector<16x512xi1>
    %131 = arith.select %130, %123, %128 : vector<16x512xi1>, vector<16x512xbf16>
    %c176 = arith.constant 176 : index
    %c0_64 = arith.constant 0 : index
    %132 = vector.load %arg10[%c176, %c0_64] : memref<512x512xbf16, #tpu.memory_space<vmem>>, vector<16x512xbf16>
    tpu.vector_store %arg10[%c176, %c0_64], %131 {strides = array<i32>} : memref<512x512xbf16, #tpu.memory_space<vmem>>, vector<16x512xbf16>,
    %c0_65 = arith.constant 0 : index
    %c127 = arith.constant 127 : index
    %133 = vector.load %arg9[%c0_65, %c127] : memref<16x768xbf16, #tpu.memory_space<vmem>>, vector<16x512xbf16>
    %c4096_i32 = arith.constant 4096 : i32
    %134 = vector.broadcast %c4096_i32 : i32 to vector<1x512xi32>
    %135 = arith.andi %12, %134 : vector<1x512xi32>
    %c0_i32_66 = arith.constant 0 : i32
    %136 = vector.broadcast %c0_i32_66 : i32 to vector<1x512xi32>
    %137 = arith.cmpi ne, %135, %136 : vector<1x512xi32>
    %cst_67 = arith.constant 0.000000e+00 : bf16
    %138 = vector.broadcast %cst_67 : bf16 to vector<16x512xbf16>
    %139 = vector.shape_cast %137 : vector<1x512xi1> to vector<1x512xi1>
    %140 = vector.broadcast %139 : vector<1x512xi1> to vector<16x512xi1>
    %141 = arith.select %140, %133, %138 : vector<16x512xi1>, vector<16x512xbf16>
    %c192 = arith.constant 192 : index
    %c0_68 = arith.constant 0 : index
    %142 = vector.load %arg10[%c192, %c0_68] : memref<512x512xbf16, #tpu.memory_space<vmem>>, vector<16x512xbf16>
    tpu.vector_store %arg10[%c192, %c0_68], %141 {strides = array<i32>} : memref<512x512xbf16, #tpu.memory_space<vmem>>, vector<16x512xbf16>,
    %c0_69 = arith.constant 0 : index
    %c128_70 = arith.constant 128 : index
    %143 = vector.load %arg9[%c0_69, %c128_70] : memref<16x768xbf16, #tpu.memory_space<vmem>>, vector<16x512xbf16>
    %c8192_i32 = arith.constant 8192 : i32
    %144 = vector.broadcast %c8192_i32 : i32 to vector<1x512xi32>
    %145 = arith.andi %12, %144 : vector<1x512xi32>
    %c0_i32_71 = arith.constant 0 : i32
    %146 = vector.broadcast %c0_i32_71 : i32 to vector<1x512xi32>
    %147 = arith.cmpi ne, %145, %146 : vector<1x512xi32>
    %cst_72 = arith.constant 0.000000e+00 : bf16
    %148 = vector.broadcast %cst_72 : bf16 to vector<16x512xbf16>
    %149 = vector.shape_cast %147 : vector<1x512xi1> to vector<1x512xi1>
    %150 = vector.broadcast %149 : vector<1x512xi1> to vector<16x512xi1>
    %151 = arith.select %150, %143, %148 : vector<16x512xi1>, vector<16x512xbf16>
    %c208 = arith.constant 208 : index
    %c0_73 = arith.constant 0 : index
    %152 = vector.load %arg10[%c208, %c0_73] : memref<512x512xbf16, #tpu.memory_space<vmem>>, vector<16x512xbf16>
    tpu.vector_store %arg10[%c208, %c0_73], %151 {strides = array<i32>} : memref<512x512xbf16, #tpu.memory_space<vmem>>, vector<16x512xbf16>,
    %c0_74 = arith.constant 0 : index
    %c129 = arith.constant 129 : index
    %153 = vector.load %arg9[%c0_74, %c129] : memref<16x768xbf16, #tpu.memory_space<vmem>>, vector<16x512xbf16>
    %c16384_i32 = arith.constant 16384 : i32
    %154 = vector.broadcast %c16384_i32 : i32 to vector<1x512xi32>
    %155 = arith.andi %12, %154 : vector<1x512xi32>
    %c0_i32_75 = arith.constant 0 : i32
    %156 = vector.broadcast %c0_i32_75 : i32 to vector<1x512xi32>
    %157 = arith.cmpi ne, %155, %156 : vector<1x512xi32>
    %cst_76 = arith.constant 0.000000e+00 : bf16
    %158 = vector.broadcast %cst_76 : bf16 to vector<16x512xbf16>
    %159 = vector.shape_cast %157 : vector<1x512xi1> to vector<1x512xi1>
    %160 = vector.broadcast %159 : vector<1x512xi1> to vector<16x512xi1>
    %161 = arith.select %160, %153, %158 : vector<16x512xi1>, vector<16x512xbf16>
    %c224 = arith.constant 224 : index
    %c0_77 = arith.constant 0 : index
    %162 = vector.load %arg10[%c224, %c0_77] : memref<512x512xbf16, #tpu.memory_space<vmem>>, vector<16x512xbf16>
    tpu.vector_store %arg10[%c224, %c0_77], %161 {strides = array<i32>} : memref<512x512xbf16, #tpu.memory_space<vmem>>, vector<16x512xbf16>,
    %c0_78 = arith.constant 0 : index
    %c135 = arith.constant 135 : index
    %163 = vector.load %arg9[%c0_78, %c135] : memref<16x768xbf16, #tpu.memory_space<vmem>>, vector<16x512xbf16>
    %c32768_i32 = arith.constant 32768 : i32
    %164 = vector.broadcast %c32768_i32 : i32 to vector<1x512xi32>
    %165 = arith.andi %12, %164 : vector<1x512xi32>
    %c0_i32_79 = arith.constant 0 : i32
    %166 = vector.broadcast %c0_i32_79 : i32 to vector<1x512xi32>
    %167 = arith.cmpi ne, %165, %166 : vector<1x512xi32>
    %cst_80 = arith.constant 0.000000e+00 : bf16
    %168 = vector.broadcast %cst_80 : bf16 to vector<16x512xbf16>
    %169 = vector.shape_cast %167 : vector<1x512xi1> to vector<1x512xi1>
    %170 = vector.broadcast %169 : vector<1x512xi1> to vector<16x512xi1>
    %171 = arith.select %170, %163, %168 : vector<16x512xi1>, vector<16x512xbf16>
    %c240 = arith.constant 240 : index
    %c0_81 = arith.constant 0 : index
    %172 = vector.load %arg10[%c240, %c0_81] : memref<512x512xbf16, #tpu.memory_space<vmem>>, vector<16x512xbf16>
    tpu.vector_store %arg10[%c240, %c0_81], %171 {strides = array<i32>} : memref<512x512xbf16, #tpu.memory_space<vmem>>, vector<16x512xbf16>,
    %c0_82 = arith.constant 0 : index
    %c136 = arith.constant 136 : index
    %173 = vector.load %arg9[%c0_82, %c136] : memref<16x768xbf16, #tpu.memory_space<vmem>>, vector<16x512xbf16>
    %c65536_i32 = arith.constant 65536 : i32
    %174 = vector.broadcast %c65536_i32 : i32 to vector<1x512xi32>
    %175 = arith.andi %12, %174 : vector<1x512xi32>
    %c0_i32_83 = arith.constant 0 : i32
    %176 = vector.broadcast %c0_i32_83 : i32 to vector<1x512xi32>
    %177 = arith.cmpi ne, %175, %176 : vector<1x512xi32>
    %cst_84 = arith.constant 0.000000e+00 : bf16
    %178 = vector.broadcast %cst_84 : bf16 to vector<16x512xbf16>
    %179 = vector.shape_cast %177 : vector<1x512xi1> to vector<1x512xi1>
    %180 = vector.broadcast %179 : vector<1x512xi1> to vector<16x512xi1>
    %181 = arith.select %180, %173, %178 : vector<16x512xi1>, vector<16x512xbf16>
    %c256 = arith.constant 256 : index
    %c0_85 = arith.constant 0 : index
    %182 = vector.load %arg10[%c256, %c0_85] : memref<512x512xbf16, #tpu.memory_space<vmem>>, vector<16x512xbf16>
    tpu.vector_store %arg10[%c256, %c0_85], %181 {strides = array<i32>} : memref<512x512xbf16, #tpu.memory_space<vmem>>, vector<16x512xbf16>,
    %c0_86 = arith.constant 0 : index
    %c137 = arith.constant 137 : index
    %183 = vector.load %arg9[%c0_86, %c137] : memref<16x768xbf16, #tpu.memory_space<vmem>>, vector<16x512xbf16>
    %c131072_i32 = arith.constant 131072 : i32
    %184 = vector.broadcast %c131072_i32 : i32 to vector<1x512xi32>
    %185 = arith.andi %12, %184 : vector<1x512xi32>
    %c0_i32_87 = arith.constant 0 : i32
    %186 = vector.broadcast %c0_i32_87 : i32 to vector<1x512xi32>
    %187 = arith.cmpi ne, %185, %186 : vector<1x512xi32>
    %cst_88 = arith.constant 0.000000e+00 : bf16
    %188 = vector.broadcast %cst_88 : bf16 to vector<16x512xbf16>
    %189 = vector.shape_cast %187 : vector<1x512xi1> to vector<1x512xi1>
    %190 = vector.broadcast %189 : vector<1x512xi1> to vector<16x512xi1>
    %191 = arith.select %190, %183, %188 : vector<16x512xi1>, vector<16x512xbf16>
    %c272 = arith.constant 272 : index
    %c0_89 = arith.constant 0 : index
    %192 = vector.load %arg10[%c272, %c0_89] : memref<512x512xbf16, #tpu.memory_space<vmem>>, vector<16x512xbf16>
    tpu.vector_store %arg10[%c272, %c0_89], %191 {strides = array<i32>} : memref<512x512xbf16, #tpu.memory_space<vmem>>, vector<16x512xbf16>,
    %c0_90 = arith.constant 0 : index
    %c183 = arith.constant 183 : index
    %193 = vector.load %arg9[%c0_90, %c183] : memref<16x768xbf16, #tpu.memory_space<vmem>>, vector<16x512xbf16>
    %c262144_i32 = arith.constant 262144 : i32
    %194 = vector.broadcast %c262144_i32 : i32 to vector<1x512xi32>
    %195 = arith.andi %12, %194 : vector<1x512xi32>
    %c0_i32_91 = arith.constant 0 : i32
    %196 = vector.broadcast %c0_i32_91 : i32 to vector<1x512xi32>
    %197 = arith.cmpi ne, %195, %196 : vector<1x512xi32>
    %cst_92 = arith.constant 0.000000e+00 : bf16
    %198 = vector.broadcast %cst_92 : bf16 to vector<16x512xbf16>
    %199 = vector.shape_cast %197 : vector<1x512xi1> to vector<1x512xi1>
    %200 = vector.broadcast %199 : vector<1x512xi1> to vector<16x512xi1>
    %201 = arith.select %200, %193, %198 : vector<16x512xi1>, vector<16x512xbf16>
    %c288 = arith.constant 288 : index
    %c0_93 = arith.constant 0 : index
    %202 = vector.load %arg10[%c288, %c0_93] : memref<512x512xbf16, #tpu.memory_space<vmem>>, vector<16x512xbf16>
    tpu.vector_store %arg10[%c288, %c0_93], %201 {strides = array<i32>} : memref<512x512xbf16, #tpu.memory_space<vmem>>, vector<16x512xbf16>,
    %c0_94 = arith.constant 0 : index
    %c184 = arith.constant 184 : index
    %203 = vector.load %arg9[%c0_94, %c184] : memref<16x768xbf16, #tpu.memory_space<vmem>>, vector<16x512xbf16>
    %c524288_i32 = arith.constant 524288 : i32
    %204 = vector.broadcast %c524288_i32 : i32 to vector<1x512xi32>
    %205 = arith.andi %12, %204 : vector<1x512xi32>
    %c0_i32_95 = arith.constant 0 : i32
    %206 = vector.broadcast %c0_i32_95 : i32 to vector<1x512xi32>
    %207 = arith.cmpi ne, %205, %206 : vector<1x512xi32>
    %cst_96 = arith.constant 0.000000e+00 : bf16
    %208 = vector.broadcast %cst_96 : bf16 to vector<16x512xbf16>
    %209 = vector.shape_cast %207 : vector<1x512xi1> to vector<1x512xi1>
    %210 = vector.broadcast %209 : vector<1x512xi1> to vector<16x512xi1>
    %211 = arith.select %210, %203, %208 : vector<16x512xi1>, vector<16x512xbf16>
    %c304 = arith.constant 304 : index
    %c0_97 = arith.constant 0 : index
    %212 = vector.load %arg10[%c304, %c0_97] : memref<512x512xbf16, #tpu.memory_space<vmem>>, vector<16x512xbf16>
    tpu.vector_store %arg10[%c304, %c0_97], %211 {strides = array<i32>} : memref<512x512xbf16, #tpu.memory_space<vmem>>, vector<16x512xbf16>,
    %c0_98 = arith.constant 0 : index
    %c185 = arith.constant 185 : index
    %213 = vector.load %arg9[%c0_98, %c185] : memref<16x768xbf16, #tpu.memory_space<vmem>>, vector<16x512xbf16>
    %c1048576_i32 = arith.constant 1048576 : i32
    %214 = vector.broadcast %c1048576_i32 : i32 to vector<1x512xi32>
    %215 = arith.andi %12, %214 : vector<1x512xi32>
    %c0_i32_99 = arith.constant 0 : i32
    %216 = vector.broadcast %c0_i32_99 : i32 to vector<1x512xi32>
    %217 = arith.cmpi ne, %215, %216 : vector<1x512xi32>
    %cst_100 = arith.constant 0.000000e+00 : bf16
    %218 = vector.broadcast %cst_100 : bf16 to vector<16x512xbf16>
    %219 = vector.shape_cast %217 : vector<1x512xi1> to vector<1x512xi1>
    %220 = vector.broadcast %219 : vector<1x512xi1> to vector<16x512xi1>
    %221 = arith.select %220, %213, %218 : vector<16x512xi1>, vector<16x512xbf16>
    %c320 = arith.constant 320 : index
    %c0_101 = arith.constant 0 : index
    %222 = vector.load %arg10[%c320, %c0_101] : memref<512x512xbf16, #tpu.memory_space<vmem>>, vector<16x512xbf16>
    tpu.vector_store %arg10[%c320, %c0_101], %221 {strides = array<i32>} : memref<512x512xbf16, #tpu.memory_space<vmem>>, vector<16x512xbf16>,
    %c0_102 = arith.constant 0 : index
    %c191 = arith.constant 191 : index
    %223 = vector.load %arg9[%c0_102, %c191] : memref<16x768xbf16, #tpu.memory_space<vmem>>, vector<16x512xbf16>
    %c2097152_i32 = arith.constant 2097152 : i32
    %224 = vector.broadcast %c2097152_i32 : i32 to vector<1x512xi32>
    %225 = arith.andi %12, %224 : vector<1x512xi32>
    %c0_i32_103 = arith.constant 0 : i32
    %226 = vector.broadcast %c0_i32_103 : i32 to vector<1x512xi32>
    %227 = arith.cmpi ne, %225, %226 : vector<1x512xi32>
    %cst_104 = arith.constant 0.000000e+00 : bf16
    %228 = vector.broadcast %cst_104 : bf16 to vector<16x512xbf16>
    %229 = vector.shape_cast %227 : vector<1x512xi1> to vector<1x512xi1>
    %230 = vector.broadcast %229 : vector<1x512xi1> to vector<16x512xi1>
    %231 = arith.select %230, %223, %228 : vector<16x512xi1>, vector<16x512xbf16>
    %c336 = arith.constant 336 : index
    %c0_105 = arith.constant 0 : index
    %232 = vector.load %arg10[%c336, %c0_105] : memref<512x512xbf16, #tpu.memory_space<vmem>>, vector<16x512xbf16>
    tpu.vector_store %arg10[%c336, %c0_105], %231 {strides = array<i32>} : memref<512x512xbf16, #tpu.memory_space<vmem>>, vector<16x512xbf16>,
    %c0_106 = arith.constant 0 : index
    %c192_107 = arith.constant 192 : index
    %233 = vector.load %arg9[%c0_106, %c192_107] : memref<16x768xbf16, #tpu.memory_space<vmem>>, vector<16x512xbf16>
    %c4194304_i32 = arith.constant 4194304 : i32
    %234 = vector.broadcast %c4194304_i32 : i32 to vector<1x512xi32>
    %235 = arith.andi %12, %234 : vector<1x512xi32>
    %c0_i32_108 = arith.constant 0 : i32
    %236 = vector.broadcast %c0_i32_108 : i32 to vector<1x512xi32>
    %237 = arith.cmpi ne, %235, %236 : vector<1x512xi32>
    %cst_109 = arith.constant 0.000000e+00 : bf16
    %238 = vector.broadcast %cst_109 : bf16 to vector<16x512xbf16>
    %239 = vector.shape_cast %237 : vector<1x512xi1> to vector<1x512xi1>
    %240 = vector.broadcast %239 : vector<1x512xi1> to vector<16x512xi1>
    %241 = arith.select %240, %233, %238 : vector<16x512xi1>, vector<16x512xbf16>
    %c352 = arith.constant 352 : index
    %c0_110 = arith.constant 0 : index
    %242 = vector.load %arg10[%c352, %c0_110] : memref<512x512xbf16, #tpu.memory_space<vmem>>, vector<16x512xbf16>
    tpu.vector_store %arg10[%c352, %c0_110], %241 {strides = array<i32>} : memref<512x512xbf16, #tpu.memory_space<vmem>>, vector<16x512xbf16>,
    %c0_111 = arith.constant 0 : index
    %c193 = arith.constant 193 : index
    %243 = vector.load %arg9[%c0_111, %c193] : memref<16x768xbf16, #tpu.memory_space<vmem>>, vector<16x512xbf16>
    %c8388608_i32 = arith.constant 8388608 : i32
    %244 = vector.broadcast %c8388608_i32 : i32 to vector<1x512xi32>
    %245 = arith.andi %12, %244 : vector<1x512xi32>
    %c0_i32_112 = arith.constant 0 : i32
    %246 = vector.broadcast %c0_i32_112 : i32 to vector<1x512xi32>
    %247 = arith.cmpi ne, %245, %246 : vector<1x512xi32>
    %cst_113 = arith.constant 0.000000e+00 : bf16
    %248 = vector.broadcast %cst_113 : bf16 to vector<16x512xbf16>
    %249 = vector.shape_cast %247 : vector<1x512xi1> to vector<1x512xi1>
    %250 = vector.broadcast %249 : vector<1x512xi1> to vector<16x512xi1>
    %251 = arith.select %250, %243, %248 : vector<16x512xi1>, vector<16x512xbf16>
    %c368 = arith.constant 368 : index
    %c0_114 = arith.constant 0 : index
    %252 = vector.load %arg10[%c368, %c0_114] : memref<512x512xbf16, #tpu.memory_space<vmem>>, vector<16x512xbf16>
    tpu.vector_store %arg10[%c368, %c0_114], %251 {strides = array<i32>} : memref<512x512xbf16, #tpu.memory_space<vmem>>, vector<16x512xbf16>,
    %c0_115 = arith.constant 0 : index
    %c199 = arith.constant 199 : index
    %253 = vector.load %arg9[%c0_115, %c199] : memref<16x768xbf16, #tpu.memory_space<vmem>>, vector<16x512xbf16>
    %c16777216_i32 = arith.constant 16777216 : i32
    %254 = vector.broadcast %c16777216_i32 : i32 to vector<1x512xi32>
    %255 = arith.andi %12, %254 : vector<1x512xi32>
    %c0_i32_116 = arith.constant 0 : i32
    %256 = vector.broadcast %c0_i32_116 : i32 to vector<1x512xi32>
    %257 = arith.cmpi ne, %255, %256 : vector<1x512xi32>
    %cst_117 = arith.constant 0.000000e+00 : bf16
    %258 = vector.broadcast %cst_117 : bf16 to vector<16x512xbf16>
    %259 = vector.shape_cast %257 : vector<1x512xi1> to vector<1x512xi1>
    %260 = vector.broadcast %259 : vector<1x512xi1> to vector<16x512xi1>
    %261 = arith.select %260, %253, %258 : vector<16x512xi1>, vector<16x512xbf16>
    %c384 = arith.constant 384 : index
    %c0_118 = arith.constant 0 : index
    %262 = vector.load %arg10[%c384, %c0_118] : memref<512x512xbf16, #tpu.memory_space<vmem>>, vector<16x512xbf16>
    tpu.vector_store %arg10[%c384, %c0_118], %261 {strides = array<i32>} : memref<512x512xbf16, #tpu.memory_space<vmem>>, vector<16x512xbf16>,
    %c0_119 = arith.constant 0 : index
    %c200 = arith.constant 200 : index
    %263 = vector.load %arg9[%c0_119, %c200] : memref<16x768xbf16, #tpu.memory_space<vmem>>, vector<16x512xbf16>
    %c33554432_i32 = arith.constant 33554432 : i32
    %264 = vector.broadcast %c33554432_i32 : i32 to vector<1x512xi32>
    %265 = arith.andi %12, %264 : vector<1x512xi32>
    %c0_i32_120 = arith.constant 0 : i32
    %266 = vector.broadcast %c0_i32_120 : i32 to vector<1x512xi32>
    %267 = arith.cmpi ne, %265, %266 : vector<1x512xi32>
    %cst_121 = arith.constant 0.000000e+00 : bf16
    %268 = vector.broadcast %cst_121 : bf16 to vector<16x512xbf16>
    %269 = vector.shape_cast %267 : vector<1x512xi1> to vector<1x512xi1>
    %270 = vector.broadcast %269 : vector<1x512xi1> to vector<16x512xi1>
    %271 = arith.select %270, %263, %268 : vector<16x512xi1>, vector<16x512xbf16>
    %c400 = arith.constant 400 : index
    %c0_122 = arith.constant 0 : index
    %272 = vector.load %arg10[%c400, %c0_122] : memref<512x512xbf16, #tpu.memory_space<vmem>>, vector<16x512xbf16>
    tpu.vector_store %arg10[%c400, %c0_122], %271 {strides = array<i32>} : memref<512x512xbf16, #tpu.memory_space<vmem>>, vector<16x512xbf16>,
    %c0_123 = arith.constant 0 : index
    %c201 = arith.constant 201 : index
    %273 = vector.load %arg9[%c0_123, %c201] : memref<16x768xbf16, #tpu.memory_space<vmem>>, vector<16x512xbf16>
    %c67108864_i32 = arith.constant 67108864 : i32
    %274 = vector.broadcast %c67108864_i32 : i32 to vector<1x512xi32>
    %275 = arith.andi %12, %274 : vector<1x512xi32>
    %c0_i32_124 = arith.constant 0 : i32
    %276 = vector.broadcast %c0_i32_124 : i32 to vector<1x512xi32>
    %277 = arith.cmpi ne, %275, %276 : vector<1x512xi32>
    %cst_125 = arith.constant 0.000000e+00 : bf16
    %278 = vector.broadcast %cst_125 : bf16 to vector<16x512xbf16>
    %279 = vector.shape_cast %277 : vector<1x512xi1> to vector<1x512xi1>
    %280 = vector.broadcast %279 : vector<1x512xi1> to vector<16x512xi1>
    %281 = arith.select %280, %273, %278 : vector<16x512xi1>, vector<16x512xbf16>
    %c416 = arith.constant 416 : index
    %c0_126 = arith.constant 0 : index
    %282 = vector.load %arg10[%c416, %c0_126] : memref<512x512xbf16, #tpu.memory_space<vmem>>, vector<16x512xbf16>
    tpu.vector_store %arg10[%c416, %c0_126], %281 {strides = array<i32>} : memref<512x512xbf16, #tpu.memory_space<vmem>>, vector<16x512xbf16>,
    %c0_127 = arith.constant 0 : index
    %c0_128 = arith.constant 0 : index
    %283 = vector.load %arg6[%c0_127, %c0_128] : memref<8x512xbf16, #tpu.memory_space<vmem>>, vector<8x512xbf16>
    %c0_129 = arith.constant 0 : index
    %c0_130 = arith.constant 0 : index
    %284 = vector.load %arg10[%c0_129, %c0_130] : memref<512x512xbf16, #tpu.memory_space<vmem>>, vector<512x512xbf16>
    %cst_131 = arith.constant dense<0.000000e+00> : vector<8x512xf32>
    %285 = tpu.matmul %283, %284, %cst_131 {dimension_numbers = #tpu.dot_dimension_numbers<[1], [0], [0], [1], [0, 0, 1, 1], [], []>} : vector<8x512xbf16>, vector<512x512xbf16>, vector<8x512xf32> -> vector<8x512xf32>
    %c0_132 = arith.constant 0 : index
    %c0_133 = arith.constant 0 : index
    %286 = vector.load %arg7[%c0_132, %c0_133] : memref<8x1xf32, #tpu.memory_space<vmem>>, vector<8x1xf32>
    %287 = vector.broadcast %286 : vector<8x1xf32> to vector<8x512xf32>
    %288 = arith.addf %285, %287 : vector<8x512xf32>
    %cst_134 = arith.constant 0.000000e+00 : f32
    %289 = vector.broadcast %cst_134 : f32 to vector<8x512xf32>
    %290 = arith.maximumf %288, %289 : vector<8x512xf32>
    %291 = vector.extract_strided_slice %290 {offsets = [0, 0], sizes = [4, 512], strides = [1, 1]} : vector<8x512xf32> to vector<4x512xf32>
    %c134217728_i32 = arith.constant 134217728 : i32
    %292 = vector.broadcast %c134217728_i32 : i32 to vector<1x512xi32>
    %293 = arith.andi %12, %292 : vector<1x512xi32>
    %c0_i32_135 = arith.constant 0 : i32
    %294 = vector.broadcast %c0_i32_135 : i32 to vector<1x512xi32>
    %295 = arith.cmpi ne, %293, %294 : vector<1x512xi32>
    %cst_136 = arith.constant 0.000000e+00 : f32
    %296 = vector.shape_cast %295 : vector<1x512xi1> to vector<1x512xi1>
    %297 = vector.broadcast %296 : vector<1x512xi1> to vector<4x512xi1>
    %298 = vector.broadcast %cst_136 : f32 to vector<4x512xf32>
    %299 = arith.select %297, %291, %298 : vector<4x512xi1>, vector<4x512xf32>
    %c512_i32_137 = arith.constant 512 : i32
    %300 = arith.muli %arg1, %c512_i32_137 : i32
    %301 = tpu.assume_multiple %300, 512 : i32
    %c0_138 = arith.constant 0 : index
    %c0_139 = arith.constant 0 : index
    %302 = arith.index_cast %301 : i32 to index
    %303 = vector.load %arg8[%c0_138, %c0_139, %302] : memref<1x4x512xf32, #tpu.memory_space<vmem>>, vector<1x4x512xf32>
    %304 = vector.shape_cast %303 : vector<1x4x512xf32> to vector<4x512xf32>
    %305 = vector.shape_cast %299 : vector<4x512xf32> to vector<1x4x512xf32>
    tpu.vector_store %arg8[%c0_138, %c0_139, %302], %305 {strides = array<i32>} : memref<1x4x512xf32, #tpu.memory_space<vmem>>, vector<1x4x512xf32>,
    %c0_140 = arith.constant 0 : index
    %c0_141 = arith.constant 0 : index
    %306 = vector.load %arg11[%c0_140, %c0_141] : memref<4x1xf32, #tpu.memory_space<vmem>>, vector<4x1xf32>
    %cst_142 = arith.constant dense<0xFF800000> : vector<4xf32>
    %307 = vector.multi_reduction <maximumf>, %299, %cst_142 [1] : vector<4x512xf32> to vector<4xf32>
    %308 = vector.shape_cast %307 : vector<4xf32> to vector<4x1xf32>
    %309 = arith.maximumf %306, %308 : vector<4x1xf32>
    %c0_143 = arith.constant 0 : index
    %c0_144 = arith.constant 0 : index
    %310 = vector.load %arg11[%c0_143, %c0_144] : memref<4x1xf32, #tpu.memory_space<vmem>>, vector<4x1xf32>
    tpu.vector_store %arg11[%c0_143, %c0_144], %309 {strides = array<i32>} : memref<4x1xf32, #tpu.memory_space<vmem>>, vector<4x1xf32>,
    %c0_i32_145 = arith.constant 0 : i32
    %311 = arith.cmpi eq, %arg1, %c0_i32_145 : i32
    %312 = arith.extui %311 : i1 to i32
    %c0_i32_146 = arith.constant 0 : i32
    %313 = arith.cmpi ne, %312, %c0_i32_146 : i32
    scf.if %313 {
      %c0_147 = arith.constant 0 : index
      %c0_148 = arith.constant 0 : index
      %314 = vector.load %arg11[%c0_147, %c0_148] : memref<4x1xf32, #tpu.memory_space<vmem>>, vector<4x1xf32>
      %cst_149 = arith.constant 9.99999971E-10 : f32
      %315 = vector.broadcast %cst_149 : f32 to vector<4x1xf32>
      %316 = arith.addf %314, %315 : vector<4x1xf32>
      %317 = tpu.reciprocal %316 : vector<4x1xf32> -> vector<4x1xf32>
      %c0_150 = arith.constant 0 : index
      %c0_151 = arith.constant 0 : index
      %c0_152 = arith.constant 0 : index
      %318 = vector.load %arg8[%c0_150, %c0_151, %c0_152] : memref<1x4x512xf32, #tpu.memory_space<vmem>>, vector<1x4x512xf32>
      %319 = vector.shape_cast %318 : vector<1x4x512xf32> to vector<4x512xf32>
      %320 = vector.broadcast %317 : vector<4x1xf32> to vector<4x512xf32>
      %321 = arith.mulf %319, %320 : vector<4x512xf32>
      %c0_153 = arith.constant 0 : index
      %c0_154 = arith.constant 0 : index
      %c0_155 = arith.constant 0 : index
      %322 = vector.load %arg8[%c0_153, %c0_154, %c0_155] : memref<1x4x512xf32, #tpu.memory_space<vmem>>, vector<1x4x512xf32>
      %323 = vector.shape_cast %322 : vector<1x4x512xf32> to vector<4x512xf32>
      %324 = vector.shape_cast %321 : vector<4x512xf32> to vector<1x4x512xf32>
      tpu.vector_store %arg8[%c0_153, %c0_154, %c0_155], %324 {strides = array<i32>} : memref<1x4x512xf32, #tpu.memory_space<vmem>>, vector<1x4x512xf32>,
    } else {
    }
    return
  }
  func.func @transform_0(%arg0: i32, %arg1: i32) -> (i32, i32) {
    %c0_i32 = arith.constant 0 : i32
    %c0_i32_0 = arith.constant 0 : i32
    return %c0_i32, %arg1 : i32, i32
  }
  func.func @transform_1(%arg0: i32, %arg1: i32) -> (i32, i32, i32) {
    %c4_i32 = arith.constant 4 : i32
    %0 = arith.muli %arg1, %c4_i32 : i32
    %c1_i32 = arith.constant 1 : i32
    %1 = arith.subi %0, %c1_i32 : i32
    %c0_i32 = arith.constant 0 : i32
    %2 = arith.maxsi %1, %c0_i32 : i32
    %c0_i32_0 = arith.constant 0 : i32
    %c0_i32_1 = arith.constant 0 : i32
    return %arg0, %c0_i32_0, %2 : i32, i32, i32
  }
  func.func @transform_2(%arg0: i32, %arg1: i32) -> (i32, i32, i32) {
    %c0_i32 = arith.constant 0 : i32
    %c0_i32_0 = arith.constant 0 : i32
    return %arg0, %c0_i32, %arg1 : i32, i32, i32
  }
  func.func @transform_3(%arg0: i32, %arg1: i32) -> (i32, i32, i32) {
    %c1_i32 = arith.constant 1 : i32
    %0 = arith.addi %arg1, %c1_i32 : i32
    %c4_i32 = arith.constant 4 : i32
    %1 = arith.muli %0, %c4_i32 : i32
    %c3_i32 = arith.constant 3 : i32
    %2 = arith.minsi %1, %c3_i32 : i32
    %c0_i32 = arith.constant 0 : i32
    %c0_i32_0 = arith.constant 0 : i32
    return %arg0, %c0_i32, %2 : i32, i32, i32
  }
  func.func @transform_4(%arg0: i32, %arg1: i32) -> (i32, i32) {
    %c0_i32 = arith.constant 0 : i32
    %c0_i32_0 = arith.constant 0 : i32
    %c0_i32_1 = arith.constant 0 : i32
    return %c0_i32, %c0_i32_0 : i32, i32
  }
  func.func @transform_5(%arg0: i32, %arg1: i32) -> (i32, i32) {
    %c0_i32 = arith.constant 0 : i32
    %c0_i32_0 = arith.constant 0 : i32
    %c0_i32_1 = arith.constant 0 : i32
    return %c0_i32, %c0_i32_0 : i32, i32
  }
  func.func @transform_6(%arg0: i32, %arg1: i32) -> (i32, i32, i32) {
    %c0_i32 = arith.constant 0 : i32
    %c0_i32_0 = arith.constant 0 : i32
    %c0_i32_1 = arith.constant 0 : i32
    return %arg0, %c0_i32, %c0_i32_0 : i32, i32, i32
  }
}

</mosaic_0001>

<llo_original>
// kernel: tpu_custom_call.1
$region0: #{tpu_custom_call.1}
  #allocation0 [shape = 'u32[]', space=smem, size = 0x4, offset = 0x4, fixed_abs, tag = 'smem constant byte address 0x4 - core index']
  #allocation1 [shape = 'u32[144,128]{1,0:T(1,128)}', space=vmem, size = 0x12000, scoped, tag = 'internal scratch']
  #allocation2 [shape = 'bf16[16,768]{1,0:T(16,128)(2,1)}', space=vmem, size = 0x6000, scoped, tag = 'scratch operand']
  #allocation3 [shape = 'bf16[512,512]{1,0:T(16,128)(2,1)}', space=vmem, size = 0x80000, scoped, tag = 'scratch operand']
  #allocation4 [shape = 'f32[4,1]{1,0:T(4,128)}', space=vmem, size = 0x800, scoped, tag = 'scratch operand']
  %s0 = inlined_call_operand.vmem [shape: s32[1,512], index: 0, kind: input, shape index: {}]
  %s1 = inlined_call_operand.hbm [shape: bf16[2,16,512], index: 1, kind: input, shape index: {}]
  %s2 = inlined_call_operand.hbm [shape: bf16[2,16,512], index: 2, kind: input, shape index: {}]
  %s3 = inlined_call_operand.hbm [shape: bf16[2,16,512], index: 3, kind: input, shape index: {}]
  %s4 = inlined_call_operand.vmem [shape: bf16[8,512], index: 4, kind: input, shape index: {}]
  %s5 = inlined_call_operand.vmem [shape: f32[8,1], index: 5, kind: input, shape index: {}]
  %s6 = inlined_call_operand.hbm [shape: f32[2,4,512], index: 6, kind: output, shape index: {}]
  %s7 = sld [smem:[#allocation0]]
  $region77: #{tpu_custom_call.1} parent=0
    _
  %s9 = ssub.s32 1, %s7
  %s10 = scalar_select 0, %s9, %s7
  $region1: #{tpu_custom_call.1} parent=0
    #allocation5 [shape = 'u8[8192]{0}', space=vmem, size = 0x2000, scoped, tag = 'input window, operand 1']
    #allocation6 [shape = 's32[2]{0}', space=sflag, size = 0x8, scoped, tag = 'scoped memory for tpu_custom_call.1']
    #allocation7 [shape = 's32[2]{0}', space=sflag, size = 0x8, scoped, tag = 'scoped memory for tpu_custom_call.1']
    #allocation8 [shape = 'u8[32768]{0}', space=vmem, size = 0x8000, scoped, tag = 'input window, operand 2']
    #allocation9 [shape = 's32[2]{0}', space=sflag, size = 0x8, scoped, tag = 'scoped memory for tpu_custom_call.1']
    #allocation10 [shape = 'u8[8192]{0}', space=vmem, size = 0x2000, scoped, tag = 'input window, operand 3']
    #allocation11 [shape = 'u8[16384]{0}', space=vmem, size = 0x4000, scoped, tag = 'output window, operand 0']
    %11 = vsyncpa [#allocation6], 0
    %s12 = scalar_lea.sflag [#allocation6], 1
    %13 = vsyncpa %s12, 0
    %14 = vsyncpa [#allocation9], 0
    %s15 = scalar_lea.sflag [#allocation9], 1
    %16 = vsyncpa %s15, 0
    %17 = vsyncpa [#allocation7], 0
    %s18 = scalar_lea.sflag [#allocation7], 1
    %19 = vsyncpa %s18, 0
    loop: start=0, step=1, limit=4
    $region2: #{tpu_custom_call.1} parent=1 // loop_pre_header
      _
    $region3: #{tpu_custom_call.1} parent=1 // loop_header
      %s21 = sphi 0, %s25
      %p22 = scmp.ge.s32.totalorder %s21, 4
      %s28 = sphi 0, %s40
      %s29 = sphi 0, %s36
      %s30 = sphi 0, %s28
      %s31 = sphi 0, %s29
      %s32 = sphi 0, %s30
      %s33 = sphi 0, %s31
      %s43 = sphi 0, %s45
      %s46 = sphi 0, %s43
      %s47 = sphi 0, %s46
      %s63 = sphi 0, %s47
      %s79 = sphi 0, %s81
      %s82 = sphi 0, %s79
      %s83 = sphi 0, %s82
      %s99 = sphi 0, %s83
      %s107 = sphi 0, %s109
      %s110 = sphi 0, %s107
      %s111 = sphi 0, %s110
      %s127 = sphi 0, %s111
      %s143 = sphi 0, %s145
      %s146 = sphi 0, %s143
      %s147 = sphi 0, %s146
      %s163 = sphi 0, %s147
      %s167 = sphi 0, %s167
      %s169 = sphi 0, %s167
      %s170 = sphi 0, %s169
      %s184 = sphi 0, %s170
      %s188 = sphi 0, %s188
      %s190 = sphi 0, %s188
      %s191 = sphi 0, %s190
      %s205 = sphi 0, %s191
      %s211 = sphi 0, %s213
      %s214 = sphi 0, %s211
      %s215 = sphi 0, %s214
      %s231 = sphi 0, %s215
    $region4: #{tpu_custom_call.1} parent=1 // loop_header_branch
      %24 = sbr.rel (%p22) target = $region8
    $region5: #{tpu_custom_call.1} parent=1 // loop_body
      %s26 = ssub.s32 %s21, 1
      %s27 = ssub.s32 %s21, 2
      %s34 = sadd.s32 1, %s29
      %p35 = scmp.ge.s32.totalorder %s34, 1
      %s36 = scalar_select %p35, 0, %s34
      %s37 = sadd.s32 1, %s28
      %s38 = scalar_select %p35, %s37, %s28
      %p39 = scmp.ge.s32.totalorder %s38, 2
      %s40 = scalar_select %p39, 0, %s38
      %s41 = ssub.s32 %s29, %s36
      %p42 = scmp.eq.s32.totalorder %s41, 0
      %s44 = sadd.s32 %s43, 1
      %s45 = scalar_select %p42, %s43, %s44
      %p48 = pneg %p42
      %p49 = scmp.eq.s32.totalorder %s21, 1
      %p50 = por %p48, %p49
      %p51 = scmp.ne.s32.totalorder %s43, %s46
      %p52 = scmp.eq.s32.totalorder %s21, 0
      %p53 = por %p51, %p52
      %p54 = scmp.ne.s32.totalorder %s43, %s46
      %p55 = scmp.eq.s32.totalorder %s26, 1
      %p56 = por %p54, %p55
      %p57 = scmp.ne.s32.totalorder %s46, %s47
      %p58 = scmp.eq.s32.totalorder %s26, 0
      %p59 = por %p57, %p58
      %p60 = scmp.ne.s32.totalorder %s46, %s47
      %p61 = scmp.eq.s32.totalorder %s27, 1
      %p62 = por %p60, %p61
      %p64 = scmp.ne.s32.totalorder %s47, %s63
      %p65 = scmp.eq.s32.totalorder %s27, 0
      %p66 = por %p64, %p65
      %s67 = smul.u32 %s29, 4
      %s68 = ssub.s32 %s67, 1
      %p69 = scmp.gt.s32.totalorder %s68, 0
      %s70 = scalar_select %p69, %s68, 0
      %s71 = smul.u32 %s36, 4
      %s72 = ssub.s32 %s71, 1
      %p73 = scmp.gt.s32.totalorder %s72, 0
      %s74 = scalar_select %p73, %s72, 0
      %s75 = ssub.s32 %s28, %s40
      %s76 = ssub.s32 %s70, %s74
      %s77 = sor.u32 %s75, %s76
      %p78 = scmp.eq.s32.totalorder %s77, 0
      %s80 = sadd.s32 %s79, 1
      %s81 = scalar_select %p78, %s79, %s80
      %p84 = pneg %p78
      %p85 = scmp.eq.s32.totalorder %s21, 1
      %p86 = por %p84, %p85
      %p87 = scmp.ne.s32.totalorder %s79, %s82
      %p88 = scmp.eq.s32.totalorder %s21, 0
      %p89 = por %p87, %p88
      %p90 = scmp.ne.s32.totalorder %s79, %s82
      %p91 = scmp.eq.s32.totalorder %s26, 1
      %p92 = por %p90, %p91
      %p93 = scmp.ne.s32.totalorder %s82, %s83
      %p94 = scmp.eq.s32.totalorder %s26, 0
      %p95 = por %p93, %p94
      %p96 = scmp.ne.s32.totalorder %s82, %s83
      %p97 = scmp.eq.s32.totalorder %s27, 1
      %p98 = por %p96, %p97
      %p100 = scmp.ne.s32.totalorder %s83, %s99
      %p101 = scmp.eq.s32.totalorder %s27, 0
      %p102 = por %p100, %p101
      %s103 = ssub.s32 %s28, %s40
      %s104 = ssub.s32 %s29, %s36
      %s105 = sor.u32 %s103, %s104
      %p106 = scmp.eq.s32.totalorder %s105, 0
      %s108 = sadd.s32 %s107, 1
      %s109 = scalar_select %p106, %s107, %s108
      %p112 = pneg %p106
      %p113 = scmp.eq.s32.totalorder %s21, 1
      %p114 = por %p112, %p113
      %p115 = scmp.ne.s32.totalorder %s107, %s110
      %p116 = scmp.eq.s32.totalorder %s21, 0
      %p117 = por %p115, %p116
      %p118 = scmp.ne.s32.totalorder %s107, %s110
      %p119 = scmp.eq.s32.totalorder %s26, 1
      %p120 = por %p118, %p119
      %p121 = scmp.ne.s32.totalorder %s110, %s111
      %p122 = scmp.eq.s32.totalorder %s26, 0
      %p123 = por %p121, %p122
      %p124 = scmp.ne.s32.totalorder %s110, %s111
      %p125 = scmp.eq.s32.totalorder %s27, 1
      %p126 = por %p124, %p125
      %p128 = scmp.ne.s32.totalorder %s111, %s127
      %p129 = scmp.eq.s32.totalorder %s27, 0
      %p130 = por %p128, %p129
      %s131 = sadd.s32 %s29, 1
      %s132 = smul.u32 %s131, 4
      %p133 = scmp.lt.s32.totalorder %s132, 3
      %s134 = scalar_select %p133, %s132, 3
      %s135 = sadd.s32 %s36, 1
      %s136 = smul.u32 %s135, 4
      %p137 = scmp.lt.s32.totalorder %s136, 3
      %s138 = scalar_select %p137, %s136, 3
      %s139 = ssub.s32 %s28, %s40
      %s140 = ssub.s32 %s134, %s138
      %s141 = sor.u32 %s139, %s140
      %p142 = scmp.eq.s32.totalorder %s141, 0
      %s144 = sadd.s32 %s143, 1
      %s145 = scalar_select %p142, %s143, %s144
      %p148 = pneg %p142
      %p149 = scmp.eq.s32.totalorder %s21, 1
      %p150 = por %p148, %p149
      %p151 = scmp.ne.s32.totalorder %s143, %s146
      %p152 = scmp.eq.s32.totalorder %s21, 0
      %p153 = por %p151, %p152
      %p154 = scmp.ne.s32.totalorder %s143, %s146
      %p155 = scmp.eq.s32.totalorder %s26, 1
      %p156 = por %p154, %p155
      %p157 = scmp.ne.s32.totalorder %s146, %s147
      %p158 = scmp.eq.s32.totalorder %s26, 0
      %p159 = por %p157, %p158
      %p160 = scmp.ne.s32.totalorder %s146, %s147
      %p161 = scmp.eq.s32.totalorder %s27, 1
      %p162 = por %p160, %p161
      %p164 = scmp.ne.s32.totalorder %s147, %s163
      %p165 = scmp.eq.s32.totalorder %s27, 0
      %p166 = por %p164, %p165
      %s168 = sadd.s32 %s167, 1
      %p171 = scmp.eq.s32.totalorder %s21, 1
      %p172 = scmp.ne.s32.totalorder %s167, %s169
      %p173 = scmp.eq.s32.totalorder %s21, 0
      %p174 = por %p172, %p173
      %p175 = scmp.ne.s32.totalorder %s167, %s169
      %p176 = scmp.eq.s32.totalorder %s26, 1
      %p177 = por %p175, %p176
      %p178 = scmp.ne.s32.totalorder %s169, %s170
      %p179 = scmp.eq.s32.totalorder %s26, 0
      %p180 = por %p178, %p179
      %p181 = scmp.ne.s32.totalorder %s169, %s170
      %p182 = scmp.eq.s32.totalorder %s27, 1
      %p183 = por %p181, %p182
      %p185 = scmp.ne.s32.totalorder %s170, %s184
      %p186 = scmp.eq.s32.totalorder %s27, 0
      %p187 = por %p185, %p186
      %s189 = sadd.s32 %s188, 1
      %p192 = scmp.eq.s32.totalorder %s21, 1
      %p193 = scmp.ne.s32.totalorder %s188, %s190
      %p194 = scmp.eq.s32.totalorder %s21, 0
      %p195 = por %p193, %p194
      %p196 = scmp.ne.s32.totalorder %s188, %s190
      %p197 = scmp.eq.s32.totalorder %s26, 1
      %p198 = por %p196, %p197
      %p199 = scmp.ne.s32.totalorder %s190, %s191
      %p200 = scmp.eq.s32.totalorder %s26, 0
      %p201 = por %p199, %p200
      %p202 = scmp.ne.s32.totalorder %s190, %s191
      %p203 = scmp.eq.s32.totalorder %s27, 1
      %p204 = por %p202, %p203
      %p206 = scmp.ne.s32.totalorder %s191, %s205
      %p207 = scmp.eq.s32.totalorder %s27, 0
      %p208 = por %p206, %p207
      %s209 = ssub.s32 %s28, %s40
      %p210 = scmp.eq.s32.totalorder %s209, 0
      %s212 = sadd.s32 %s211, 1
      %s213 = scalar_select %p210, %s211, %s212
      %p216 = pneg %p210
      %p217 = scmp.eq.s32.totalorder %s21, 1
      %p218 = por %p216, %p217
      %p219 = scmp.ne.s32.totalorder %s211, %s214
      %p220 = scmp.eq.s32.totalorder %s21, 0
      %p221 = por %p219, %p220
      %p222 = scmp.ne.s32.totalorder %s211, %s214
      %p223 = scmp.eq.s32.totalorder %s26, 1
      %p224 = por %p222, %p223
      %p225 = scmp.ne.s32.totalorder %s214, %s215
      %p226 = scmp.eq.s32.totalorder %s26, 0
      %p227 = por %p225, %p226
      %p228 = scmp.ne.s32.totalorder %s214, %s215
      %p229 = scmp.eq.s32.totalorder %s27, 1
      %p230 = por %p228, %p229
      %p232 = scmp.ne.s32.totalorder %s215, %s231
      %p233 = scmp.eq.s32.totalorder %s27, 0
      %p234 = por %p232, %p233
      %p235 = scmp.le.s32.totalorder 1, %s21
      %p236 = scmp.lt.s32.totalorder %s21, 3
      %p237 = pnand %p235, %p236
      %p238 = pneg %p237
      // Predicated region
      $region9: #{tpu_custom_call.1} parent=5 // pred_check
        _
      $region10: #{tpu_custom_call.1} parent=5 // pred_check_branch
        %240 = sbr.rel (%p237) target = $region12
      $region11: #{tpu_custom_call.1} parent=5 // pred_region
        %s241 = ssub.s32 %s21, 1
        // Predicated region
        $region13: #{tpu_custom_call.1} parent=11 // pred_check
          %p242 = pneg %p59
        $region14: #{tpu_custom_call.1} parent=11 // pred_check_branch
          %244 = sbr.rel (%p242) target = $region16
        $region15: #{tpu_custom_call.1} parent=11 // pred_region
          %s245 = smul.u32 4, %s31
          %p246 = scmp.lt.s32.totalorder %s245, 3
          %s247 = scalar_select %p246, %s245, 3
          %s248 = scalar_lea.vmem %s0, %s247
          %s249 = smul.u32 4, %s31
        $region16: #{tpu_custom_call.1} parent=11 // pred_fallthru
          _
        // Predicated region
        $region17: #{tpu_custom_call.1} parent=11 // pred_check
          %p250 = pneg %p180
        $region18: #{tpu_custom_call.1} parent=11 // pred_check_branch
          %252 = sbr.rel (%p250) target = $region20
        $region19: #{tpu_custom_call.1} parent=11 // pred_region
          _
        $region20: #{tpu_custom_call.1} parent=11 // pred_fallthru
          _
        // Predicated region
        $region21: #{tpu_custom_call.1} parent=11 // pred_check
          %p253 = pneg %p201
        $region22: #{tpu_custom_call.1} parent=11 // pred_check_branch
          %255 = sbr.rel (%p253) target = $region24
        $region23: #{tpu_custom_call.1} parent=11 // pred_region
          _
        $region24: #{tpu_custom_call.1} parent=11 // pred_fallthru
          _
      $region12: #{tpu_custom_call.1} parent=5 // pred_fallthru
        _
      %p256 = scmp.lt.s32.totalorder %s21, 2
      // Predicated region
      $region25: #{tpu_custom_call.1} parent=5 // pred_check
        %p257 = pneg %p256
      $region26: #{tpu_custom_call.1} parent=5 // pred_check_branch
        %259 = sbr.rel (%p257) target = $region28
      $region27: #{tpu_custom_call.1} parent=5 // pred_region
        // Predicated region
        $region29: #{tpu_custom_call.1} parent=27 // pred_check
          %p260 = pneg %p89
        $region30: #{tpu_custom_call.1} parent=27 // pred_check_branch
          %262 = sbr.rel (%p260) target = $region32
        $region31: #{tpu_custom_call.1} parent=27 // pred_region
          %s263 = sand.u32 %s79, 1
          %s264 = scalar_lea.sflag [#allocation6], %s263
          %s265 = sand.u32 %s79, 1
          %s266 = smul.addr %s265, 8
          %s267 = scalar_lea.vmem [#allocation5], %s266
          %s268 = smul.u32 %s29, 4
          %s269 = ssub.s32 %s268, 1
          %p270 = scmp.gt.s32.totalorder %s269, 0
          %s271 = scalar_select %p270, %s269, 0
          %s273 = ssub.s32 128, 128
          %274 = vsyncadd %s264, %s273
          %s275 = smul.addr %s28, 8
          %s276 = sadd.s32 %s271, %s275
          %s277 = smul.addr %s276, 64
          %s278 = scalar_lea.hbm %s1, %s277
          %s279 = sshll.u32 %s267, 4
          %s280 = int_to_ptr.vmem [resolvable:$true] %s279
          %285 = dma.hbm_to_vmem [thread:$0]  %s278, 128, %s280, %s264, 256, 64, 4
        $region32: #{tpu_custom_call.1} parent=27 // pred_fallthru
          _
        // Predicated region
        $region33: #{tpu_custom_call.1} parent=27 // pred_check
          %p286 = pneg %p117
        $region34: #{tpu_custom_call.1} parent=27 // pred_check_branch
          %288 = sbr.rel (%p286) target = $region36
        $region35: #{tpu_custom_call.1} parent=27 // pred_region
          %s289 = sand.u32 %s21, 1
          %s290 = scalar_lea.sflag [#allocation9], %s289
          %s291 = sand.u32 %s107, 1
          %s292 = smul.addr %s291, 32
          %s293 = scalar_lea.vmem [#allocation8], %s292
          %s294 = smul.u32 4, %s29
          %s296 = ssub.s32 512, 512
          %297 = vsyncadd %s290, %s296
          %s298 = smul.addr %s28, 8
          %s299 = sadd.s32 %s294, %s298
          %s300 = smul.addr %s299, 64
          %s301 = scalar_lea.hbm %s2, %s300
          %s302 = sshll.u32 %s293, 4
          %s303 = int_to_ptr.vmem [resolvable:$true] %s302
          %308 = dma.hbm_to_vmem [thread:$0]  %s301, 512, %s303, %s290, 256, 256, 16
        $region36: #{tpu_custom_call.1} parent=27 // pred_fallthru
          _
        // Predicated region
        $region37: #{tpu_custom_call.1} parent=27 // pred_check
          %p309 = pneg %p153
        $region38: #{tpu_custom_call.1} parent=27 // pred_check_branch
          %311 = sbr.rel (%p309) target = $region40
        $region39: #{tpu_custom_call.1} parent=27 // pred_region
          %s312 = sand.u32 %s21, 1
          %s313 = scalar_lea.sflag [#allocation9], %s312
          %s314 = sand.u32 %s143, 1
          %s315 = smul.addr %s314, 8
          %s316 = scalar_lea.vmem [#allocation10], %s315
          %s317 = sadd.s32 %s29, 1
          %s318 = smul.u32 %s317, 4
          %p319 = scmp.lt.s32.totalorder %s318, 3
          %s320 = scalar_select %p319, %s318, 3
          %s322 = ssub.s32 128, 128
          %323 = vsyncadd %s313, %s322
          %s324 = smul.addr %s28, 8
          %s325 = sadd.s32 %s320, %s324
          %s326 = smul.addr %s325, 64
          %s327 = scalar_lea.hbm %s3, %s326
          %s328 = sshll.u32 %s316, 4
          %s329 = int_to_ptr.vmem [resolvable:$true] %s328
          %334 = dma.hbm_to_vmem [thread:$0]  %s327, 128, %s329, %s313, 256, 64, 4
        $region40: #{tpu_custom_call.1} parent=27 // pred_fallthru
          _
      $region28: #{tpu_custom_call.1} parent=5 // pred_fallthru
        _
      %p335 = scmp.le.s32.totalorder 1, %s21
      %p336 = scmp.lt.s32.totalorder %s21, 3
      %p337 = pnand %p335, %p336
      %p338 = pneg %p337
      // Predicated region
      $region41: #{tpu_custom_call.1} parent=5 // pred_check
        _
      $region42: #{tpu_custom_call.1} parent=5 // pred_check_branch
        %340 = sbr.rel (%p337) target = $region44
      $region43: #{tpu_custom_call.1} parent=5 // pred_region
        %s341 = ssub.s32 %s21, 1
        %s342 = sand.u32 %s82, 1
        %s343 = scalar_lea.sflag [#allocation6], %s342
        %s344 = sand.u32 %s82, 1
        %s345 = smul.addr %s344, 8
        %s346 = scalar_lea.vmem [#allocation5], %s345
        // Predicated region
        $region45: #{tpu_custom_call.1} parent=43 // pred_check
          %p347 = pneg %p95
        $region46: #{tpu_custom_call.1} parent=43 // pred_check_branch
          %349 = sbr.rel (%p347) target = $region48
        $region47: #{tpu_custom_call.1} parent=43 // pred_region
          %350 = dma.done %s343, 128
        $region48: #{tpu_custom_call.1} parent=43 // pred_fallthru
          _
        %s351 = sand.u32 %s26, 1
        %s352 = scalar_lea.sflag [#allocation9], %s351
        %s353 = sand.u32 %s110, 1
        %s354 = smul.addr %s353, 32
        %s355 = scalar_lea.vmem [#allocation8], %s354
        // Predicated region
        $region49: #{tpu_custom_call.1} parent=43 // pred_check
          %p356 = pneg %p123
        $region50: #{tpu_custom_call.1} parent=43 // pred_check_branch
          %358 = sbr.rel (%p356) target = $region52
        $region51: #{tpu_custom_call.1} parent=43 // pred_region
          %359 = dma.done %s352, 512
        $region52: #{tpu_custom_call.1} parent=43 // pred_fallthru
          _
        %s360 = sand.u32 %s26, 1
        %s361 = scalar_lea.sflag [#allocation9], %s360
        %s362 = sand.u32 %s146, 1
        %s363 = smul.addr %s362, 8
        %s364 = scalar_lea.vmem [#allocation10], %s363
        // Predicated region
        $region53: #{tpu_custom_call.1} parent=43 // pred_check
          %p365 = pneg %p159
        $region54: #{tpu_custom_call.1} parent=43 // pred_check_branch
          %367 = sbr.rel (%p365) target = $region56
        $region55: #{tpu_custom_call.1} parent=43 // pred_region
          %368 = dma.done %s361, 128
        $region56: #{tpu_custom_call.1} parent=43 // pred_fallthru
          _
        %s369 = smul.u32 4, %s31
        %p370 = scmp.lt.s32.totalorder %s369, 3
        %s371 = scalar_select %p370, %s369, 3
        %s372 = scalar_lea.vmem %s0, %s371
        %p373 = pneg %p59
        %p374 = pneg %p56
        %s375 = sand.u32 %s82, 1
        %s376 = scalar_lea.sflag [#allocation6], %s375
        %s377 = sand.u32 %s82, 1
        %s378 = smul.addr %s377, 8
        %s379 = scalar_lea.vmem [#allocation5], %s378
        %p380 = pneg %p95
        %p381 = pneg %p92
        %s382 = sand.u32 %s26, 1
        %s383 = scalar_lea.sflag [#allocation9], %s382
        %s384 = sand.u32 %s110, 1
        %s385 = smul.addr %s384, 32
        %s386 = scalar_lea.vmem [#allocation8], %s385
        %p387 = pneg %p123
        %p388 = pneg %p120
        %s389 = sand.u32 %s26, 1
        %s390 = scalar_lea.sflag [#allocation9], %s389
        %s391 = sand.u32 %s146, 1
        %s392 = smul.addr %s391, 8
        %s393 = scalar_lea.vmem [#allocation10], %s392
        %p394 = pneg %p159
        %p395 = pneg %p156
        %p396 = pneg %p180
        %p397 = pneg %p177
        %p398 = pneg %p201
        %p399 = pneg %p198
        %p400 = pneg %p227
        %p401 = pneg %p224
        %s402 = sand.u32 %s214, 1
        %s403 = scalar_lea.sflag [#allocation7], %s402
        %s404 = sand.u32 %s214, 1
        %s405 = smul.addr %s404, 16
        %s406 = scalar_lea.vmem [#allocation11], %s405
        %s407 = smul.u32 4, %s31
        %p408 = scmp.lt.s32.totalorder %s407, 3
        %s409 = scalar_select %p408, %s407, 3
        %s410 = scalar_lea.vmem %s0, %s409
        %s411 = smul.u32 4, %s31
        %s412 = smul.u32 %s31, 4
        %s413 = ssub.s32 %s412, 1
        %p414 = scmp.gt.s32.totalorder %s413, 0
        %s415 = scalar_select %p414, %s413, 0
        %s416 = smul.u32 4, %s31
        %s417 = sadd.s32 %s31, 1
        %s418 = smul.u32 %s417, 4
        %p419 = scmp.lt.s32.totalorder %s418, 3
        %s420 = scalar_select %p419, %s418, 3
        %p424 = scmp.eq.s32.totalorder %s31, 0
        // Predicated region
        $region57: #{tpu_custom_call.1} parent=43 // pred_check
          %p425 = pneg %p424
        $region58: #{tpu_custom_call.1} parent=43 // pred_check_branch
          %427 = sbr.rel (%p425) target = $region60
        $region59: #{tpu_custom_call.1} parent=43 // pred_region
          %vm428 = vcmask 3072
          %429 = vst.msk [vmem:[#allocation4] sm:$0xf] %vm428, 0.0
          %430 = vst [vmem:[#allocation3 + $0x360] sm:$0xff] 0
          %431 = vst [vmem:[#allocation3 + $0x368] sm:$0xff] 0
          %432 = vst [vmem:[#allocation3 + $0x370] sm:$0xff] 0
          %433 = vst [vmem:[#allocation3 + $0x378] sm:$0xff] 0
          %434 = vst [vmem:[#allocation3 + $0x380] sm:$0xff] 0
          %435 = vst [vmem:[#allocation3 + $0x388] sm:$0xff] 0
          %436 = vst [vmem:[#allocation3 + $0x390] sm:$0xff] 0
          %437 = vst [vmem:[#allocation3 + $0x398] sm:$0xff] 0
          %438 = vst [vmem:[#allocation3 + $0x3a0] sm:$0xff] 0
          %439 = vst [vmem:[#allocation3 + $0x3a8] sm:$0xff] 0
          %440 = vst [vmem:[#allocation3 + $0x3b0] sm:$0xff] 0
          %441 = vst [vmem:[#allocation3 + $0x3b8] sm:$0xff] 0
          %442 = vst [vmem:[#allocation3 + $0x3c0] sm:$0xff] 0
          %443 = vst [vmem:[#allocation3 + $0x3c8] sm:$0xff] 0
          %444 = vst [vmem:[#allocation3 + $0x3d0] sm:$0xff] 0
          %445 = vst [vmem:[#allocation3 + $0x3d8] sm:$0xff] 0
          %446 = vst [vmem:[#allocation3 + $0x3e0] sm:$0xff] 0
          %447 = vst [vmem:[#allocation3 + $0x3e8] sm:$0xff] 0
          %448 = vst [vmem:[#allocation3 + $0x3f0] sm:$0xff] 0
          %449 = vst [vmem:[#allocation3 + $0x3f8] sm:$0xff] 0
        $region60: #{tpu_custom_call.1} parent=43 // pred_fallthru
          _
        %v450 = vld [vmem:[%s346] sm:$0xf]
        %v451 = vld [vmem:[%s346 + $0x4] sm:$0xf]
        %v454 = vunpack.c.l.b16 %v450
        %v455 = vunpack.c.l.b16 %v451
        %v456 = vpack.c.b16 %v455, %v454
        %458 = vst [vmem:[#allocation2] sm:$0xff] %v456
        %v459 = vld [vmem:[%s355] sm:$0xff]
        %v460 = vld [vmem:[%s355 + $0x8] sm:$0xff]
        %v461 = vld [vmem:[%s355 + $0x10] sm:$0xff]
        %v462 = vld [vmem:[%s355 + $0x18] sm:$0xff]
        %v467 = vunpack.c.l.b16 %v459
        %v468 = vunpack.c.h.b16 %v459
        %v469 = vunpack.c.l.b16 %v460
        %v470 = vunpack.c.h.b16 %v460
        %v471 = vunpack.c.l.b16 %v461
        %v472 = vunpack.c.h.b16 %v461
        %v473 = vunpack.c.l.b16 %v462
        %v474 = vunpack.c.h.b16 %v462
        %v475 = vpack.c.b16 %v471, %v467
        %v476 = vpack.c.b16 %v472, %v468
        %v477 = vpack.c.b16 %v473, %v469
        %v478 = vpack.c.b16 %v474, %v470
        %483 = vst [vmem:[#allocation2 + $0x8] sm:$0xff] %v475
        %484 = vst [vmem:[#allocation2 + $0x10] sm:$0xff] %v476
        %485 = vst [vmem:[#allocation2 + $0x18] sm:$0xff] %v477
        %486 = vst [vmem:[#allocation2 + $0x20] sm:$0xff] %v478
        %v487 = vld [vmem:[%s364] sm:$0xf]
        %v488 = vld [vmem:[%s364 + $0x4] sm:$0xf]
        %v491 = vunpack.c.l.b16 %v487
        %v492 = vunpack.c.l.b16 %v488
        %v493 = vpack.c.b16 %v492, %v491
        %495 = vst [vmem:[#allocation2 + $0x28] sm:$0xff] %v493
        %v496 = vld [vmem:[%s410] sm:$0xf]
        %v497 = vld [vmem:[#allocation2] sm:$0xff]
        %v498 = vld [vmem:[#allocation2 + $0x8] sm:$0xff]
        %v499 = vld [vmem:[#allocation2 + $0x10] sm:$0xff]
        %v500 = vld [vmem:[#allocation2 + $0x18] sm:$0xff]
        %v501 = vld [vmem:[#allocation2 + $0x20] sm:$0xff]
        %v502 = vand.u32 %v496, 1
        %vm503 = vcmp.ne.s32.totalorder %v502, 0
        %v504 = vsel %vm503, 1, 0
        %v505 = vlaneseq
        %v506 = vshrl.u32 %v505, 7
        %v507 = vsub.s32 0, %v506
        %v508 = vrot.slane %v504, %v507
        %v509 = vlaneseq
        %v510 = vshrl.u32 %v509, 7
        %v511 = vsub.s32 1, %v510
        %v512 = vrot.slane %v504, %v511
        %v513 = vlaneseq
        %v514 = vshrl.u32 %v513, 7
        %v515 = vsub.s32 2, %v514
        %v516 = vrot.slane %v504, %v515
        %v517 = vlaneseq
        %v518 = vshrl.u32 %v517, 7
        %v519 = vsub.s32 3, %v518
        %v520 = vrot.slane %v504, %v519
        %vm521 = vcmp.eq.s32.totalorder %v508, 1
        %vm522 = vcmp.eq.s32.totalorder %v512, 1
        %vm523 = vcmp.eq.s32.totalorder %v516, 1
        %vm524 = vcmp.eq.s32.totalorder %v520, 1
        %vm525 = vmpackc.low %vm522, %vm521
        %vm526 = vmpackc.low %vm524, %vm523
        %v527 = vsel %vm525, 65537, 0
        %v528 = vsel %vm526, 65537, 0
        %v529 = vlaneseq
        %v530 = vshrl.u32 %v529, 7
        %v531 = vsub.s32 0, %v530
        %v532 = vrot.slane %v527, %v531
        %v533 = vlaneseq
        %v534 = vshrl.u32 %v533, 7
        %v535 = vsub.s32 4, %v534
        %v536 = vrot.slane %v527, %v535
        %v537 = vlaneseq
        %v538 = vshrl.u32 %v537, 7
        %v539 = vsub.s32 0, %v538
        %v540 = vrot.slane %v528, %v539
        %v541 = vlaneseq
        %v542 = vshrl.u32 %v541, 7
        %v543 = vsub.s32 4, %v542
        %v544 = vrot.slane %v528, %v543
        %545 = vrot.lane.b32.xlu0 %v532, 55
        %v546 = vpop.permute.xlu0 %545
        %547 = vrot.lane.b32.xlu0 %v536, 55
        %v548 = vpop.permute.xlu0 %547
        %549 = vrot.lane.b32.xlu0 %v540, 55
        %v550 = vpop.permute.xlu0 %549
        %551 = vrot.lane.b32.xlu0 %v544, 55
        %v552 = vpop.permute.xlu0 %551
        %vm553 = vcmask 449536
        %v554 = vsel %vm553, %v546, %v548
        %v555 = vsel %vm553, %v548, %v550
        %v556 = vsel %vm553, %v550, %v552
        %vm557 = vcmp.ne.s16.totalorder %v546, 0
        %vm558 = vcmp.ne.s16.totalorder %v554, 0
        %vm559 = vcmp.ne.s16.totalorder %v555, 0
        %vm560 = vcmp.ne.s16.totalorder %v556, 0
        %vm561 = vcmp.ne.s16.totalorder %v552, 0
        %v562 = vsel %vm557, %v497, 0
        %v563 = vsel %vm558, %v498, 0
        %v564 = vsel %vm559, %v499, 0
        %v565 = vsel %vm560, %v500, 0
        %v566 = vsel %vm561, %v501, 0
        %572 = vrot.lane.b32.xlu0 %v562, 73
        %v573 = vpop.permute.xlu0 %572
        %574 = vrot.lane.b32.xlu0 %v563, 73
        %v575 = vpop.permute.xlu0 %574
        %576 = vrot.lane.b32.xlu0 %v564, 73
        %v577 = vpop.permute.xlu0 %576
        %578 = vrot.lane.b32.xlu0 %v565, 73
        %v579 = vpop.permute.xlu0 %578
        %580 = vrot.lane.b32.xlu0 %v566, 73
        %v581 = vpop.permute.xlu0 %580
        %vm582 = vcmask 596992
        %v583 = vsel %vm582, %v573, %v575
        %v584 = vsel %vm582, %v575, %v577
        %v585 = vsel %vm582, %v577, %v579
        %v586 = vsel %vm582, %v579, %v581
        %591 = vst [vmem:[#allocation3] sm:$0xff] %v583
        %592 = vst [vmem:[#allocation3 + $0x8] sm:$0xff] %v584
        %593 = vst [vmem:[#allocation3 + $0x10] sm:$0xff] %v585
        %594 = vst [vmem:[#allocation3 + $0x18] sm:$0xff] %v586
        %v595 = vld [vmem:[#allocation2] sm:$0xff]
        %v596 = vld [vmem:[#allocation2 + $0x8] sm:$0xff]
        %v597 = vld [vmem:[#allocation2 + $0x10] sm:$0xff]
        %v598 = vld [vmem:[#allocation2 + $0x18] sm:$0xff]
        %v599 = vld [vmem:[#allocation2 + $0x20] sm:$0xff]
        %v600 = vand.u32 %v496, 2
        %vm601 = vcmp.ne.s32.totalorder %v600, 0
        %v602 = vsel %vm601, 1, 0
        %v603 = vlaneseq
        %v604 = vshrl.u32 %v603, 7
        %v605 = vsub.s32 0, %v604
        %v606 = vrot.slane %v602, %v605
        %v607 = vlaneseq
        %v608 = vshrl.u32 %v607, 7
        %v609 = vsub.s32 1, %v608
        %v610 = vrot.slane %v602, %v609
        %v611 = vlaneseq
        %v612 = vshrl.u32 %v611, 7
        %v613 = vsub.s32 2, %v612
        %v614 = vrot.slane %v602, %v613
        %v615 = vlaneseq
        %v616 = vshrl.u32 %v615, 7
        %v617 = vsub.s32 3, %v616
        %v618 = vrot.slane %v602, %v617
        %vm619 = vcmp.eq.s32.totalorder %v606, 1
        %vm620 = vcmp.eq.s32.totalorder %v610, 1
        %vm621 = vcmp.eq.s32.totalorder %v614, 1
        %vm622 = vcmp.eq.s32.totalorder %v618, 1
        %vm623 = vmpackc.low %vm620, %vm619
        %vm624 = vmpackc.low %vm622, %vm621
        %v625 = vsel %vm623, 65537, 0
        %v626 = vsel %vm624, 65537, 0
        %v627 = vlaneseq
        %v628 = vshrl.u32 %v627, 7
        %v629 = vsub.s32 0, %v628
        %v630 = vrot.slane %v625, %v629
        %v631 = vlaneseq
        %v632 = vshrl.u32 %v631, 7
        %v633 = vsub.s32 4, %v632
        %v634 = vrot.slane %v625, %v633
        %v635 = vlaneseq
        %v636 = vshrl.u32 %v635, 7
        %v637 = vsub.s32 0, %v636
        %v638 = vrot.slane %v626, %v637
        %v639 = vlaneseq
        %v640 = vshrl.u32 %v639, 7
        %v641 = vsub.s32 4, %v640
        %v642 = vrot.slane %v626, %v641
        %643 = vrot.lane.b32.xlu0 %v630, 56
        %v644 = vpop.permute.xlu0 %643
        %645 = vrot.lane.b32.xlu0 %v634, 56
        %v646 = vpop.permute.xlu0 %645
        %647 = vrot.lane.b32.xlu0 %v638, 56
        %v648 = vpop.permute.xlu0 %647
        %649 = vrot.lane.b32.xlu0 %v642, 56
        %v650 = vpop.permute.xlu0 %649
        %vm651 = vcmask 457728
        %v652 = vsel %vm651, %v644, %v646
        %v653 = vsel %vm651, %v646, %v648
        %v654 = vsel %vm651, %v648, %v650
        %vm655 = vcmp.ne.s16.totalorder %v644, 0
        %vm656 = vcmp.ne.s16.totalorder %v652, 0
        %vm657 = vcmp.ne.s16.totalorder %v653, 0
        %vm658 = vcmp.ne.s16.totalorder %v654, 0
        %vm659 = vcmp.ne.s16.totalorder %v650, 0
        %v660 = vsel %vm655, %v595, 0
        %v661 = vsel %vm656, %v596, 0
        %v662 = vsel %vm657, %v597, 0
        %v663 = vsel %vm658, %v598, 0
        %v664 = vsel %vm659, %v599, 0
        %670 = vrot.lane.b32.xlu0 %v660, 72
        %v671 = vpop.permute.xlu0 %670
        %672 = vrot.lane.b32.xlu0 %v661, 72
        %v673 = vpop.permute.xlu0 %672
        %674 = vrot.lane.b32.xlu0 %v662, 72
        %v675 = vpop.permute.xlu0 %674
        %676 = vrot.lane.b32.xlu0 %v663, 72
        %v677 = vpop.permute.xlu0 %676
        %678 = vrot.lane.b32.xlu0 %v664, 72
        %v679 = vpop.permute.xlu0 %678
        %vm680 = vcmask 588800
        %v681 = vsel %vm680, %v671, %v673
        %v682 = vsel %vm680, %v673, %v675
        %v683 = vsel %vm680, %v675, %v677
        %v684 = vsel %vm680, %v677, %v679
        %689 = vst [vmem:[#allocation3 + $0x20] sm:$0xff] %v681
        %690 = vst [vmem:[#allocation3 + $0x28] sm:$0xff] %v682
        %691 = vst [vmem:[#allocation3 + $0x30] sm:$0xff] %v683
        %692 = vst [vmem:[#allocation3 + $0x38] sm:$0xff] %v684
        %v693 = vld [vmem:[#allocation2] sm:$0xff]
        %v694 = vld [vmem:[#allocation2 + $0x8] sm:$0xff]
        %v695 = vld [vmem:[#allocation2 + $0x10] sm:$0xff]
        %v696 = vld [vmem:[#allocation2 + $0x18] sm:$0xff]
        %v697 = vld [vmem:[#allocation2 + $0x20] sm:$0xff]
        %v698 = vand.u32 %v496, 4
        %vm699 = vcmp.ne.s32.totalorder %v698, 0
        %v700 = vsel %vm699, 1, 0
        %v701 = vlaneseq
        %v702 = vshrl.u32 %v701, 7
        %v703 = vsub.s32 0, %v702
        %v704 = vrot.slane %v700, %v703
        %v705 = vlaneseq
        %v706 = vshrl.u32 %v705, 7
        %v707 = vsub.s32 1, %v706
        %v708 = vrot.slane %v700, %v707
        %v709 = vlaneseq
        %v710 = vshrl.u32 %v709, 7
        %v711 = vsub.s32 2, %v710
        %v712 = vrot.slane %v700, %v711
        %v713 = vlaneseq
        %v714 = vshrl.u32 %v713, 7
        %v715 = vsub.s32 3, %v714
        %v716 = vrot.slane %v700, %v715
        %vm717 = vcmp.eq.s32.totalorder %v704, 1
        %vm718 = vcmp.eq.s32.totalorder %v708, 1
        %vm719 = vcmp.eq.s32.totalorder %v712, 1
        %vm720 = vcmp.eq.s32.totalorder %v716, 1
        %vm721 = vmpackc.low %vm718, %vm717
        %vm722 = vmpackc.low %vm720, %vm719
        %v723 = vsel %vm721, 65537, 0
        %v724 = vsel %vm722, 65537, 0
        %v725 = vlaneseq
        %v726 = vshrl.u32 %v725, 7
        %v727 = vsub.s32 0, %v726
        %v728 = vrot.slane %v723, %v727
        %v729 = vlaneseq
        %v730 = vshrl.u32 %v729, 7
        %v731 = vsub.s32 4, %v730
        %v732 = vrot.slane %v723, %v731
        %v733 = vlaneseq
        %v734 = vshrl.u32 %v733, 7
        %v735 = vsub.s32 0, %v734
        %v736 = vrot.slane %v724, %v735
        %v737 = vlaneseq
        %v738 = vshrl.u32 %v737, 7
        %v739 = vsub.s32 4, %v738
        %v740 = vrot.slane %v724, %v739
        %741 = vrot.lane.b32.xlu0 %v728, 57
        %v742 = vpop.permute.xlu0 %741
        %743 = vrot.lane.b32.xlu0 %v732, 57
        %v744 = vpop.permute.xlu0 %743
        %745 = vrot.lane.b32.xlu0 %v736, 57
        %v746 = vpop.permute.xlu0 %745
        %747 = vrot.lane.b32.xlu0 %v740, 57
        %v748 = vpop.permute.xlu0 %747
        %vm749 = vcmask 465920
        %v750 = vsel %vm749, %v742, %v744
        %v751 = vsel %vm749, %v744, %v746
        %v752 = vsel %vm749, %v746, %v748
        %vm753 = vcmp.ne.s16.totalorder %v742, 0
        %vm754 = vcmp.ne.s16.totalorder %v750, 0
        %vm755 = vcmp.ne.s16.totalorder %v751, 0
        %vm756 = vcmp.ne.s16.totalorder %v752, 0
        %vm757 = vcmp.ne.s16.totalorder %v748, 0
        %v758 = vsel %vm753, %v693, 0
        %v759 = vsel %vm754, %v694, 0
        %v760 = vsel %vm755, %v695, 0
        %v761 = vsel %vm756, %v696, 0
        %v762 = vsel %vm757, %v697, 0
        %768 = vrot.lane.b32.xlu0 %v758, 71
        %v769 = vpop.permute.xlu0 %768
        %770 = vrot.lane.b32.xlu0 %v759, 71
        %v771 = vpop.permute.xlu0 %770
        %772 = vrot.lane.b32.xlu0 %v760, 71
        %v773 = vpop.permute.xlu0 %772
        %774 = vrot.lane.b32.xlu0 %v761, 71
        %v775 = vpop.permute.xlu0 %774
        %776 = vrot.lane.b32.xlu0 %v762, 71
        %v777 = vpop.permute.xlu0 %776
        %vm778 = vcmask 580608
        %v779 = vsel %vm778, %v769, %v771
        %v780 = vsel %vm778, %v771, %v773
        %v781 = vsel %vm778, %v773, %v775
        %v782 = vsel %vm778, %v775, %v777
        %787 = vst [vmem:[#allocation3 + $0x40] sm:$0xff] %v779
        %788 = vst [vmem:[#allocation3 + $0x48] sm:$0xff] %v780
        %789 = vst [vmem:[#allocation3 + $0x50] sm:$0xff] %v781
        %790 = vst [vmem:[#allocation3 + $0x58] sm:$0xff] %v782
        %v791 = vld [vmem:[#allocation2] sm:$0xff]
        %v792 = vld [vmem:[#allocation2 + $0x8] sm:$0xff]
        %v793 = vld [vmem:[#allocation2 + $0x10] sm:$0xff]
        %v794 = vld [vmem:[#allocation2 + $0x18] sm:$0xff]
        %v795 = vld [vmem:[#allocation2 + $0x20] sm:$0xff]
        %v796 = vand.u32 %v496, 8
        %vm797 = vcmp.ne.s32.totalorder %v796, 0
        %v798 = vsel %vm797, 1, 0
        %v799 = vlaneseq
        %v800 = vshrl.u32 %v799, 7
        %v801 = vsub.s32 0, %v800
        %v802 = vrot.slane %v798, %v801
        %v803 = vlaneseq
        %v804 = vshrl.u32 %v803, 7
        %v805 = vsub.s32 1, %v804
        %v806 = vrot.slane %v798, %v805
        %v807 = vlaneseq
        %v808 = vshrl.u32 %v807, 7
        %v809 = vsub.s32 2, %v808
        %v810 = vrot.slane %v798, %v809
        %v811 = vlaneseq
        %v812 = vshrl.u32 %v811, 7
        %v813 = vsub.s32 3, %v812
        %v814 = vrot.slane %v798, %v813
        %vm815 = vcmp.eq.s32.totalorder %v802, 1
        %vm816 = vcmp.eq.s32.totalorder %v806, 1
        %vm817 = vcmp.eq.s32.totalorder %v810, 1
        %vm818 = vcmp.eq.s32.totalorder %v814, 1
        %vm819 = vmpackc.low %vm816, %vm815
        %vm820 = vmpackc.low %vm818, %vm817
        %v821 = vsel %vm819, 65537, 0
        %v822 = vsel %vm820, 65537, 0
        %v823 = vlaneseq
        %v824 = vshrl.u32 %v823, 7
        %v825 = vsub.s32 0, %v824
        %v826 = vrot.slane %v821, %v825
        %v827 = vlaneseq
        %v828 = vshrl.u32 %v827, 7
        %v829 = vsub.s32 4, %v828
        %v830 = vrot.slane %v821, %v829
        %v831 = vlaneseq
        %v832 = vshrl.u32 %v831, 7
        %v833 = vsub.s32 0, %v832
        %v834 = vrot.slane %v822, %v833
        %v835 = vlaneseq
        %v836 = vshrl.u32 %v835, 7
        %v837 = vsub.s32 4, %v836
        %v838 = vrot.slane %v822, %v837
        %839 = vrot.lane.b32.xlu0 %v826, 63
        %v840 = vpop.permute.xlu0 %839
        %841 = vrot.lane.b32.xlu0 %v830, 63
        %v842 = vpop.permute.xlu0 %841
        %843 = vrot.lane.b32.xlu0 %v834, 63
        %v844 = vpop.permute.xlu0 %843
        %845 = vrot.lane.b32.xlu0 %v838, 63
        %v846 = vpop.permute.xlu0 %845
        %vm847 = vcmask 515072
        %v848 = vsel %vm847, %v840, %v842
        %v849 = vsel %vm847, %v842, %v844
        %v850 = vsel %vm847, %v844, %v846
        %vm851 = vcmp.ne.s16.totalorder %v840, 0
        %vm852 = vcmp.ne.s16.totalorder %v848, 0
        %vm853 = vcmp.ne.s16.totalorder %v849, 0
        %vm854 = vcmp.ne.s16.totalorder %v850, 0
        %vm855 = vcmp.ne.s16.totalorder %v846, 0
        %v856 = vsel %vm851, %v791, 0
        %v857 = vsel %vm852, %v792, 0
        %v858 = vsel %vm853, %v793, 0
        %v859 = vsel %vm854, %v794, 0
        %v860 = vsel %vm855, %v795, 0
        %866 = vrot.lane.b32.xlu0 %v856, 65
        %v867 = vpop.permute.xlu0 %866
        %868 = vrot.lane.b32.xlu0 %v857, 65
        %v869 = vpop.permute.xlu0 %868
        %870 = vrot.lane.b32.xlu0 %v858, 65
        %v871 = vpop.permute.xlu0 %870
        %872 = vrot.lane.b32.xlu0 %v859, 65
        %v873 = vpop.permute.xlu0 %872
        %874 = vrot.lane.b32.xlu0 %v860, 65
        %v875 = vpop.permute.xlu0 %874
        %vm876 = vcmask 531456
        %v877 = vsel %vm876, %v867, %v869
        %v878 = vsel %vm876, %v869, %v871
        %v879 = vsel %vm876, %v871, %v873
        %v880 = vsel %vm876, %v873, %v875
        %885 = vst [vmem:[#allocation3 + $0x60] sm:$0xff] %v877
        %886 = vst [vmem:[#allocation3 + $0x68] sm:$0xff] %v878
        %887 = vst [vmem:[#allocation3 + $0x70] sm:$0xff] %v879
        %888 = vst [vmem:[#allocation3 + $0x78] sm:$0xff] %v880
        %v889 = vld [vmem:[#allocation2] sm:$0xff]
        %v890 = vld [vmem:[#allocation2 + $0x8] sm:$0xff]
        %v891 = vld [vmem:[#allocation2 + $0x10] sm:$0xff]
        %v892 = vld [vmem:[#allocation2 + $0x18] sm:$0xff]
        %v893 = vld [vmem:[#allocation2 + $0x20] sm:$0xff]
        %v894 = vand.u32 %v496, 16
        %vm895 = vcmp.ne.s32.totalorder %v894, 0
        %v896 = vsel %vm895, 1, 0
        %v897 = vlaneseq
        %v898 = vshrl.u32 %v897, 7
        %v899 = vsub.s32 0, %v898
        %v900 = vrot.slane %v896, %v899
        %v901 = vlaneseq
        %v902 = vshrl.u32 %v901, 7
        %v903 = vsub.s32 1, %v902
        %v904 = vrot.slane %v896, %v903
        %v905 = vlaneseq
        %v906 = vshrl.u32 %v905, 7
        %v907 = vsub.s32 2, %v906
        %v908 = vrot.slane %v896, %v907
        %v909 = vlaneseq
        %v910 = vshrl.u32 %v909, 7
        %v911 = vsub.s32 3, %v910
        %v912 = vrot.slane %v896, %v911
        %vm913 = vcmp.eq.s32.totalorder %v900, 1
        %vm914 = vcmp.eq.s32.totalorder %v904, 1
        %vm915 = vcmp.eq.s32.totalorder %v908, 1
        %vm916 = vcmp.eq.s32.totalorder %v912, 1
        %vm917 = vmpackc.low %vm914, %vm913
        %vm918 = vmpackc.low %vm916, %vm915
        %v919 = vsel %vm917, 65537, 0
        %v920 = vsel %vm918, 65537, 0
        %v921 = vlaneseq
        %v922 = vshrl.u32 %v921, 7
        %v923 = vsub.s32 0, %v922
        %v924 = vrot.slane %v919, %v923
        %v925 = vlaneseq
        %v926 = vshrl.u32 %v925, 7
        %v927 = vsub.s32 4, %v926
        %v928 = vrot.slane %v919, %v927
        %v929 = vlaneseq
        %v930 = vshrl.u32 %v929, 7
        %v931 = vsub.s32 0, %v930
        %v932 = vrot.slane %v920, %v931
        %v933 = vlaneseq
        %v934 = vshrl.u32 %v933, 7
        %v935 = vsub.s32 4, %v934
        %v936 = vrot.slane %v920, %v935
        %937 = vrot.lane.b32.xlu0 %v924, 64
        %v938 = vpop.permute.xlu0 %937
        %939 = vrot.lane.b32.xlu0 %v928, 64
        %v940 = vpop.permute.xlu0 %939
        %941 = vrot.lane.b32.xlu0 %v932, 64
        %v942 = vpop.permute.xlu0 %941
        %943 = vrot.lane.b32.xlu0 %v936, 64
        %v944 = vpop.permute.xlu0 %943
        %vm945 = vcmask 523264
        %v946 = vsel %vm945, %v938, %v940
        %v947 = vsel %vm945, %v940, %v942
        %v948 = vsel %vm945, %v942, %v944
        %vm949 = vcmp.ne.s16.totalorder %v938, 0
        %vm950 = vcmp.ne.s16.totalorder %v946, 0
        %vm951 = vcmp.ne.s16.totalorder %v947, 0
        %vm952 = vcmp.ne.s16.totalorder %v948, 0
        %vm953 = vcmp.ne.s16.totalorder %v944, 0
        %v954 = vsel %vm949, %v889, 0
        %v955 = vsel %vm950, %v890, 0
        %v956 = vsel %vm951, %v891, 0
        %v957 = vsel %vm952, %v892, 0
        %v958 = vsel %vm953, %v893, 0
        %964 = vrot.lane.b32.xlu0 %v954, 64
        %v965 = vpop.permute.xlu0 %964
        %966 = vrot.lane.b32.xlu0 %v955, 64
        %v967 = vpop.permute.xlu0 %966
        %968 = vrot.lane.b32.xlu0 %v956, 64
        %v969 = vpop.permute.xlu0 %968
        %970 = vrot.lane.b32.xlu0 %v957, 64
        %v971 = vpop.permute.xlu0 %970
        %972 = vrot.lane.b32.xlu0 %v958, 64
        %v973 = vpop.permute.xlu0 %972
        %v974 = vsel %vm945, %v965, %v967
        %v975 = vsel %vm945, %v967, %v969
        %v976 = vsel %vm945, %v969, %v971
        %v977 = vsel %vm945, %v971, %v973
        %982 = vst [vmem:[#allocation3 + $0x80] sm:$0xff] %v974
        %983 = vst [vmem:[#allocation3 + $0x88] sm:$0xff] %v975
        %984 = vst [vmem:[#allocation3 + $0x90] sm:$0xff] %v976
        %985 = vst [vmem:[#allocation3 + $0x98] sm:$0xff] %v977
        %v986 = vld [vmem:[#allocation2] sm:$0xff]
        %v987 = vld [vmem:[#allocation2 + $0x8] sm:$0xff]
        %v988 = vld [vmem:[#allocation2 + $0x10] sm:$0xff]
        %v989 = vld [vmem:[#allocation2 + $0x18] sm:$0xff]
        %v990 = vld [vmem:[#allocation2 + $0x20] sm:$0xff]
        %v991 = vand.u32 %v496, 32
        %vm992 = vcmp.ne.s32.totalorder %v991, 0
        %v993 = vsel %vm992, 1, 0
        %v994 = vlaneseq
        %v995 = vshrl.u32 %v994, 7
        %v996 = vsub.s32 0, %v995
        %v997 = vrot.slane %v993, %v996
        %v998 = vlaneseq
        %v999 = vshrl.u32 %v998, 7
        %v1000 = vsub.s32 1, %v999
        %v1001 = vrot.slane %v993, %v1000
        %v1002 = vlaneseq
        %v1003 = vshrl.u32 %v1002, 7
        %v1004 = vsub.s32 2, %v1003
        %v1005 = vrot.slane %v993, %v1004
        %v1006 = vlaneseq
        %v1007 = vshrl.u32 %v1006, 7
        %v1008 = vsub.s32 3, %v1007
        %v1009 = vrot.slane %v993, %v1008
        %vm1010 = vcmp.eq.s32.totalorder %v997, 1
        %vm1011 = vcmp.eq.s32.totalorder %v1001, 1
        %vm1012 = vcmp.eq.s32.totalorder %v1005, 1
        %vm1013 = vcmp.eq.s32.totalorder %v1009, 1
        %vm1014 = vmpackc.low %vm1011, %vm1010
        %vm1015 = vmpackc.low %vm1013, %vm1012
        %v1016 = vsel %vm1014, 65537, 0
        %v1017 = vsel %vm1015, 65537, 0
        %v1018 = vlaneseq
        %v1019 = vshrl.u32 %v1018, 7
        %v1020 = vsub.s32 0, %v1019
        %v1021 = vrot.slane %v1016, %v1020
        %v1022 = vlaneseq
        %v1023 = vshrl.u32 %v1022, 7
        %v1024 = vsub.s32 4, %v1023
        %v1025 = vrot.slane %v1016, %v1024
        %v1026 = vlaneseq
        %v1027 = vshrl.u32 %v1026, 7
        %v1028 = vsub.s32 0, %v1027
        %v1029 = vrot.slane %v1017, %v1028
        %v1030 = vlaneseq
        %v1031 = vshrl.u32 %v1030, 7
        %v1032 = vsub.s32 4, %v1031
        %v1033 = vrot.slane %v1017, %v1032
        %1034 = vrot.lane.b32.xlu0 %v1021, 65
        %v1035 = vpop.permute.xlu0 %1034
        %1036 = vrot.lane.b32.xlu0 %v1025, 65
        %v1037 = vpop.permute.xlu0 %1036
        %1038 = vrot.lane.b32.xlu0 %v1029, 65
        %v1039 = vpop.permute.xlu0 %1038
        %1040 = vrot.lane.b32.xlu0 %v1033, 65
        %v1041 = vpop.permute.xlu0 %1040
        %v1042 = vsel %vm876, %v1035, %v1037
        %v1043 = vsel %vm876, %v1037, %v1039
        %v1044 = vsel %vm876, %v1039, %v1041
        %vm1045 = vcmp.ne.s16.totalorder %v1035, 0
        %vm1046 = vcmp.ne.s16.totalorder %v1042, 0
        %vm1047 = vcmp.ne.s16.totalorder %v1043, 0
        %vm1048 = vcmp.ne.s16.totalorder %v1044, 0
        %vm1049 = vcmp.ne.s16.totalorder %v1041, 0
        %v1050 = vsel %vm1045, %v986, 0
        %v1051 = vsel %vm1046, %v987, 0
        %v1052 = vsel %vm1047, %v988, 0
        %v1053 = vsel %vm1048, %v989, 0
        %v1054 = vsel %vm1049, %v990, 0
        %1060 = vrot.lane.b32.xlu0 %v1050, 63
        %v1061 = vpop.permute.xlu0 %1060
        %1062 = vrot.lane.b32.xlu0 %v1051, 63
        %v1063 = vpop.permute.xlu0 %1062
        %1064 = vrot.lane.b32.xlu0 %v1052, 63
        %v1065 = vpop.permute.xlu0 %1064
        %1066 = vrot.lane.b32.xlu0 %v1053, 63
        %v1067 = vpop.permute.xlu0 %1066
        %1068 = vrot.lane.b32.xlu0 %v1054, 63
        %v1069 = vpop.permute.xlu0 %1068
        %v1070 = vsel %vm847, %v1061, %v1063
        %v1071 = vsel %vm847, %v1063, %v1065
        %v1072 = vsel %vm847, %v1065, %v1067
        %v1073 = vsel %vm847, %v1067, %v1069
        %1078 = vst [vmem:[#allocation3 + $0xa0] sm:$0xff] %v1070
        %1079 = vst [vmem:[#allocation3 + $0xa8] sm:$0xff] %v1071
        %1080 = vst [vmem:[#allocation3 + $0xb0] sm:$0xff] %v1072
        %1081 = vst [vmem:[#allocation3 + $0xb8] sm:$0xff] %v1073
        %v1082 = vld [vmem:[#allocation2] sm:$0xff]
        %v1083 = vld [vmem:[#allocation2 + $0x8] sm:$0xff]
        %v1084 = vld [vmem:[#allocation2 + $0x10] sm:$0xff]
        %v1085 = vld [vmem:[#allocation2 + $0x18] sm:$0xff]
        %v1086 = vld [vmem:[#allocation2 + $0x20] sm:$0xff]
        %v1087 = vand.u32 %v496, 64
        %vm1088 = vcmp.ne.s32.totalorder %v1087, 0
        %v1089 = vsel %vm1088, 1, 0
        %v1090 = vlaneseq
        %v1091 = vshrl.u32 %v1090, 7
        %v1092 = vsub.s32 0, %v1091
        %v1093 = vrot.slane %v1089, %v1092
        %v1094 = vlaneseq
        %v1095 = vshrl.u32 %v1094, 7
        %v1096 = vsub.s32 1, %v1095
        %v1097 = vrot.slane %v1089, %v1096
        %v1098 = vlaneseq
        %v1099 = vshrl.u32 %v1098, 7
        %v1100 = vsub.s32 2, %v1099
        %v1101 = vrot.slane %v1089, %v1100
        %v1102 = vlaneseq
        %v1103 = vshrl.u32 %v1102, 7
        %v1104 = vsub.s32 3, %v1103
        %v1105 = vrot.slane %v1089, %v1104
        %vm1106 = vcmp.eq.s32.totalorder %v1093, 1
        %vm1107 = vcmp.eq.s32.totalorder %v1097, 1
        %vm1108 = vcmp.eq.s32.totalorder %v1101, 1
        %vm1109 = vcmp.eq.s32.totalorder %v1105, 1
        %vm1110 = vmpackc.low %vm1107, %vm1106
        %vm1111 = vmpackc.low %vm1109, %vm1108
        %v1112 = vsel %vm1110, 65537, 0
        %v1113 = vsel %vm1111, 65537, 0
        %v1114 = vlaneseq
        %v1115 = vshrl.u32 %v1114, 7
        %v1116 = vsub.s32 0, %v1115
        %v1117 = vrot.slane %v1112, %v1116
        %v1118 = vlaneseq
        %v1119 = vshrl.u32 %v1118, 7
        %v1120 = vsub.s32 4, %v1119
        %v1121 = vrot.slane %v1112, %v1120
        %v1122 = vlaneseq
        %v1123 = vshrl.u32 %v1122, 7
        %v1124 = vsub.s32 0, %v1123
        %v1125 = vrot.slane %v1113, %v1124
        %v1126 = vlaneseq
        %v1127 = vshrl.u32 %v1126, 7
        %v1128 = vsub.s32 4, %v1127
        %v1129 = vrot.slane %v1113, %v1128
        %1130 = vrot.lane.b32.xlu0 %v1117, 71
        %v1131 = vpop.permute.xlu0 %1130
        %1132 = vrot.lane.b32.xlu0 %v1121, 71
        %v1133 = vpop.permute.xlu0 %1132
        %1134 = vrot.lane.b32.xlu0 %v1125, 71
        %v1135 = vpop.permute.xlu0 %1134
        %1136 = vrot.lane.b32.xlu0 %v1129, 71
        %v1137 = vpop.permute.xlu0 %1136
        %v1138 = vsel %vm778, %v1131, %v1133
        %v1139 = vsel %vm778, %v1133, %v1135
        %v1140 = vsel %vm778, %v1135, %v1137
        %vm1141 = vcmp.ne.s16.totalorder %v1131, 0
        %vm1142 = vcmp.ne.s16.totalorder %v1138, 0
        %vm1143 = vcmp.ne.s16.totalorder %v1139, 0
        %vm1144 = vcmp.ne.s16.totalorder %v1140, 0
        %vm1145 = vcmp.ne.s16.totalorder %v1137, 0
        %v1146 = vsel %vm1141, %v1082, 0
        %v1147 = vsel %vm1142, %v1083, 0
        %v1148 = vsel %vm1143, %v1084, 0
        %v1149 = vsel %vm1144, %v1085, 0
        %v1150 = vsel %vm1145, %v1086, 0
        %1156 = vrot.lane.b32.xlu0 %v1146, 57
        %v1157 = vpop.permute.xlu0 %1156
        %1158 = vrot.lane.b32.xlu0 %v1147, 57
        %v1159 = vpop.permute.xlu0 %1158
        %1160 = vrot.lane.b32.xlu0 %v1148, 57
        %v1161 = vpop.permute.xlu0 %1160
        %1162 = vrot.lane.b32.xlu0 %v1149, 57
        %v1163 = vpop.permute.xlu0 %1162
        %1164 = vrot.lane.b32.xlu0 %v1150, 57
        %v1165 = vpop.permute.xlu0 %1164
        %v1166 = vsel %vm749, %v1157, %v1159
        %v1167 = vsel %vm749, %v1159, %v1161
        %v1168 = vsel %vm749, %v1161, %v1163
        %v1169 = vsel %vm749, %v1163, %v1165
        %1174 = vst [vmem:[#allocation3 + $0xc0] sm:$0xff] %v1166
        %1175 = vst [vmem:[#allocation3 + $0xc8] sm:$0xff] %v1167
        %1176 = vst [vmem:[#allocation3 + $0xd0] sm:$0xff] %v1168
        %1177 = vst [vmem:[#allocation3 + $0xd8] sm:$0xff] %v1169
        %v1178 = vld [vmem:[#allocation2] sm:$0xff]
        %v1179 = vld [vmem:[#allocation2 + $0x8] sm:$0xff]
        %v1180 = vld [vmem:[#allocation2 + $0x10] sm:$0xff]
        %v1181 = vld [vmem:[#allocation2 + $0x18] sm:$0xff]
        %v1182 = vld [vmem:[#allocation2 + $0x20] sm:$0xff]
        %v1183 = vand.u32 %v496, 128
        %vm1184 = vcmp.ne.s32.totalorder %v1183, 0
        %v1185 = vsel %vm1184, 1, 0
        %v1186 = vlaneseq
        %v1187 = vshrl.u32 %v1186, 7
        %v1188 = vsub.s32 0, %v1187
        %v1189 = vrot.slane %v1185, %v1188
        %v1190 = vlaneseq
        %v1191 = vshrl.u32 %v1190, 7
        %v1192 = vsub.s32 1, %v1191
        %v1193 = vrot.slane %v1185, %v1192
        %v1194 = vlaneseq
        %v1195 = vshrl.u32 %v1194, 7
        %v1196 = vsub.s32 2, %v1195
        %v1197 = vrot.slane %v1185, %v1196
        %v1198 = vlaneseq
        %v1199 = vshrl.u32 %v1198, 7
        %v1200 = vsub.s32 3, %v1199
        %v1201 = vrot.slane %v1185, %v1200
        %vm1202 = vcmp.eq.s32.totalorder %v1189, 1
        %vm1203 = vcmp.eq.s32.totalorder %v1193, 1
        %vm1204 = vcmp.eq.s32.totalorder %v1197, 1
        %vm1205 = vcmp.eq.s32.totalorder %v1201, 1
        %vm1206 = vmpackc.low %vm1203, %vm1202
        %vm1207 = vmpackc.low %vm1205, %vm1204
        %v1208 = vsel %vm1206, 65537, 0
        %v1209 = vsel %vm1207, 65537, 0
        %v1210 = vlaneseq
        %v1211 = vshrl.u32 %v1210, 7
        %v1212 = vsub.s32 0, %v1211
        %v1213 = vrot.slane %v1208, %v1212
        %v1214 = vlaneseq
        %v1215 = vshrl.u32 %v1214, 7
        %v1216 = vsub.s32 4, %v1215
        %v1217 = vrot.slane %v1208, %v1216
        %v1218 = vlaneseq
        %v1219 = vshrl.u32 %v1218, 7
        %v1220 = vsub.s32 0, %v1219
        %v1221 = vrot.slane %v1209, %v1220
        %v1222 = vlaneseq
        %v1223 = vshrl.u32 %v1222, 7
        %v1224 = vsub.s32 4, %v1223
        %v1225 = vrot.slane %v1209, %v1224
        %1226 = vrot.lane.b32.xlu0 %v1213, 72
        %v1227 = vpop.permute.xlu0 %1226
        %1228 = vrot.lane.b32.xlu0 %v1217, 72
        %v1229 = vpop.permute.xlu0 %1228
        %1230 = vrot.lane.b32.xlu0 %v1221, 72
        %v1231 = vpop.permute.xlu0 %1230
        %1232 = vrot.lane.b32.xlu0 %v1225, 72
        %v1233 = vpop.permute.xlu0 %1232
        %v1234 = vsel %vm680, %v1227, %v1229
        %v1235 = vsel %vm680, %v1229, %v1231
        %v1236 = vsel %vm680, %v1231, %v1233
        %vm1237 = vcmp.ne.s16.totalorder %v1227, 0
        %vm1238 = vcmp.ne.s16.totalorder %v1234, 0
        %vm1239 = vcmp.ne.s16.totalorder %v1235, 0
        %vm1240 = vcmp.ne.s16.totalorder %v1236, 0
        %vm1241 = vcmp.ne.s16.totalorder %v1233, 0
        %v1242 = vsel %vm1237, %v1178, 0
        %v1243 = vsel %vm1238, %v1179, 0
        %v1244 = vsel %vm1239, %v1180, 0
        %v1245 = vsel %vm1240, %v1181, 0
        %v1246 = vsel %vm1241, %v1182, 0
        %1252 = vrot.lane.b32.xlu0 %v1242, 56
        %v1253 = vpop.permute.xlu0 %1252
        %1254 = vrot.lane.b32.xlu0 %v1243, 56
        %v1255 = vpop.permute.xlu0 %1254
        %1256 = vrot.lane.b32.xlu0 %v1244, 56
        %v1257 = vpop.permute.xlu0 %1256
        %1258 = vrot.lane.b32.xlu0 %v1245, 56
        %v1259 = vpop.permute.xlu0 %1258
        %1260 = vrot.lane.b32.xlu0 %v1246, 56
        %v1261 = vpop.permute.xlu0 %1260
        %v1262 = vsel %vm651, %v1253, %v1255
        %v1263 = vsel %vm651, %v1255, %v1257
        %v1264 = vsel %vm651, %v1257, %v1259
        %v1265 = vsel %vm651, %v1259, %v1261
        %1270 = vst [vmem:[#allocation3 + $0xe0] sm:$0xff] %v1262
        %1271 = vst [vmem:[#allocation3 + $0xe8] sm:$0xff] %v1263
        %1272 = vst [vmem:[#allocation3 + $0xf0] sm:$0xff] %v1264
        %1273 = vst [vmem:[#allocation3 + $0xf8] sm:$0xff] %v1265
        %v1274 = vld [vmem:[#allocation2] sm:$0xff]
        %v1275 = vld [vmem:[#allocation2 + $0x8] sm:$0xff]
        %v1276 = vld [vmem:[#allocation2 + $0x10] sm:$0xff]
        %v1277 = vld [vmem:[#allocation2 + $0x18] sm:$0xff]
        %v1278 = vld [vmem:[#allocation2 + $0x20] sm:$0xff]
        %v1279 = vand.u32 %v496, 256
        %vm1280 = vcmp.ne.s32.totalorder %v1279, 0
        %v1281 = vsel %vm1280, 1, 0
        %v1282 = vlaneseq
        %v1283 = vshrl.u32 %v1282, 7
        %v1284 = vsub.s32 0, %v1283
        %v1285 = vrot.slane %v1281, %v1284
        %v1286 = vlaneseq
        %v1287 = vshrl.u32 %v1286, 7
        %v1288 = vsub.s32 1, %v1287
        %v1289 = vrot.slane %v1281, %v1288
        %v1290 = vlaneseq
        %v1291 = vshrl.u32 %v1290, 7
        %v1292 = vsub.s32 2, %v1291
        %v1293 = vrot.slane %v1281, %v1292
        %v1294 = vlaneseq
        %v1295 = vshrl.u32 %v1294, 7
        %v1296 = vsub.s32 3, %v1295
        %v1297 = vrot.slane %v1281, %v1296
        %vm1298 = vcmp.eq.s32.totalorder %v1285, 1
        %vm1299 = vcmp.eq.s32.totalorder %v1289, 1
        %vm1300 = vcmp.eq.s32.totalorder %v1293, 1
        %vm1301 = vcmp.eq.s32.totalorder %v1297, 1
        %vm1302 = vmpackc.low %vm1299, %vm1298
        %vm1303 = vmpackc.low %vm1301, %vm1300
        %v1304 = vsel %vm1302, 65537, 0
        %v1305 = vsel %vm1303, 65537, 0
        %v1306 = vlaneseq
        %v1307 = vshrl.u32 %v1306, 7
        %v1308 = vsub.s32 0, %v1307
        %v1309 = vrot.slane %v1304, %v1308
        %v1310 = vlaneseq
        %v1311 = vshrl.u32 %v1310, 7
        %v1312 = vsub.s32 4, %v1311
        %v1313 = vrot.slane %v1304, %v1312
        %v1314 = vlaneseq
        %v1315 = vshrl.u32 %v1314, 7
        %v1316 = vsub.s32 0, %v1315
        %v1317 = vrot.slane %v1305, %v1316
        %v1318 = vlaneseq
        %v1319 = vshrl.u32 %v1318, 7
        %v1320 = vsub.s32 4, %v1319
        %v1321 = vrot.slane %v1305, %v1320
        %1322 = vrot.lane.b32.xlu0 %v1309, 73
        %v1323 = vpop.permute.xlu0 %1322
        %1324 = vrot.lane.b32.xlu0 %v1313, 73
        %v1325 = vpop.permute.xlu0 %1324
        %1326 = vrot.lane.b32.xlu0 %v1317, 73
        %v1327 = vpop.permute.xlu0 %1326
        %1328 = vrot.lane.b32.xlu0 %v1321, 73
        %v1329 = vpop.permute.xlu0 %1328
        %v1330 = vsel %vm582, %v1323, %v1325
        %v1331 = vsel %vm582, %v1325, %v1327
        %v1332 = vsel %vm582, %v1327, %v1329
        %vm1333 = vcmp.ne.s16.totalorder %v1323, 0
        %vm1334 = vcmp.ne.s16.totalorder %v1330, 0
        %vm1335 = vcmp.ne.s16.totalorder %v1331, 0
        %vm1336 = vcmp.ne.s16.totalorder %v1332, 0
        %vm1337 = vcmp.ne.s16.totalorder %v1329, 0
        %v1338 = vsel %vm1333, %v1274, 0
        %v1339 = vsel %vm1334, %v1275, 0
        %v1340 = vsel %vm1335, %v1276, 0
        %v1341 = vsel %vm1336, %v1277, 0
        %v1342 = vsel %vm1337, %v1278, 0
        %1348 = vrot.lane.b32.xlu0 %v1338, 55
        %v1349 = vpop.permute.xlu0 %1348
        %1350 = vrot.lane.b32.xlu0 %v1339, 55
        %v1351 = vpop.permute.xlu0 %1350
        %1352 = vrot.lane.b32.xlu0 %v1340, 55
        %v1353 = vpop.permute.xlu0 %1352
        %1354 = vrot.lane.b32.xlu0 %v1341, 55
        %v1355 = vpop.permute.xlu0 %1354
        %1356 = vrot.lane.b32.xlu0 %v1342, 55
        %v1357 = vpop.permute.xlu0 %1356
        %v1358 = vsel %vm553, %v1349, %v1351
        %v1359 = vsel %vm553, %v1351, %v1353
        %v1360 = vsel %vm553, %v1353, %v1355
        %v1361 = vsel %vm553, %v1355, %v1357
        %1366 = vst [vmem:[#allocation3 + $0x100] sm:$0xff] %v1358
        %1367 = vst [vmem:[#allocation3 + $0x108] sm:$0xff] %v1359
        %1368 = vst [vmem:[#allocation3 + $0x110] sm:$0xff] %v1360
        %1369 = vst [vmem:[#allocation3 + $0x118] sm:$0xff] %v1361
        %v1370 = vld [vmem:[#allocation2] sm:$0xff]
        %v1371 = vld [vmem:[#allocation2 + $0x8] sm:$0xff]
        %v1372 = vld [vmem:[#allocation2 + $0x10] sm:$0xff]
        %v1373 = vld [vmem:[#allocation2 + $0x18] sm:$0xff]
        %v1374 = vld [vmem:[#allocation2 + $0x20] sm:$0xff]
        %v1375 = vand.u32 %v496, 512
        %vm1376 = vcmp.ne.s32.totalorder %v1375, 0
        %v1377 = vsel %vm1376, 1, 0
        %v1378 = vlaneseq
        %v1379 = vshrl.u32 %v1378, 7
        %v1380 = vsub.s32 0, %v1379
        %v1381 = vrot.slane %v1377, %v1380
        %v1382 = vlaneseq
        %v1383 = vshrl.u32 %v1382, 7
        %v1384 = vsub.s32 1, %v1383
        %v1385 = vrot.slane %v1377, %v1384
        %v1386 = vlaneseq
        %v1387 = vshrl.u32 %v1386, 7
        %v1388 = vsub.s32 2, %v1387
        %v1389 = vrot.slane %v1377, %v1388
        %v1390 = vlaneseq
        %v1391 = vshrl.u32 %v1390, 7
        %v1392 = vsub.s32 3, %v1391
        %v1393 = vrot.slane %v1377, %v1392
        %vm1394 = vcmp.eq.s32.totalorder %v1381, 1
        %vm1395 = vcmp.eq.s32.totalorder %v1385, 1
        %vm1396 = vcmp.eq.s32.totalorder %v1389, 1
        %vm1397 = vcmp.eq.s32.totalorder %v1393, 1
        %vm1398 = vmpackc.low %vm1395, %vm1394
        %vm1399 = vmpackc.low %vm1397, %vm1396
        %v1400 = vsel %vm1398, 65537, 0
        %v1401 = vsel %vm1399, 65537, 0
        %v1402 = vlaneseq
        %v1403 = vshrl.u32 %v1402, 7
        %v1404 = vsub.s32 0, %v1403
        %v1405 = vrot.slane %v1400, %v1404
        %v1406 = vlaneseq
        %v1407 = vshrl.u32 %v1406, 7
        %v1408 = vsub.s32 4, %v1407
        %v1409 = vrot.slane %v1400, %v1408
        %v1410 = vlaneseq
        %v1411 = vshrl.u32 %v1410, 7
        %v1412 = vsub.s32 0, %v1411
        %v1413 = vrot.slane %v1401, %v1412
        %v1414 = vlaneseq
        %v1415 = vshrl.u32 %v1414, 7
        %v1416 = vsub.s32 4, %v1415
        %v1417 = vrot.slane %v1401, %v1416
        %1418 = vrot.lane.b32.xlu0 %v1405, 119
        %v1419 = vpop.permute.xlu0 %1418
        %1420 = vrot.lane.b32.xlu0 %v1409, 119
        %v1421 = vpop.permute.xlu0 %1420
        %1422 = vrot.lane.b32.xlu0 %v1413, 119
        %v1423 = vpop.permute.xlu0 %1422
        %1424 = vrot.lane.b32.xlu0 %v1417, 119
        %v1425 = vpop.permute.xlu0 %1424
        %vm1426 = vcmask 973824
        %v1427 = vsel %vm1426, %v1419, %v1421
        %v1428 = vsel %vm1426, %v1421, %v1423
        %v1429 = vsel %vm1426, %v1423, %v1425
        %vm1430 = vcmp.ne.s16.totalorder %v1419, 0
        %vm1431 = vcmp.ne.s16.totalorder %v1427, 0
        %vm1432 = vcmp.ne.s16.totalorder %v1428, 0
        %vm1433 = vcmp.ne.s16.totalorder %v1429, 0
        %vm1434 = vcmp.ne.s16.totalorder %v1425, 0
        %v1435 = vsel %vm1430, %v1370, 0
        %v1436 = vsel %vm1431, %v1371, 0
        %v1437 = vsel %vm1432, %v1372, 0
        %v1438 = vsel %vm1433, %v1373, 0
        %v1439 = vsel %vm1434, %v1374, 0
        %1445 = vrot.lane.b32.xlu0 %v1435, 9
        %v1446 = vpop.permute.xlu0 %1445
        %1447 = vrot.lane.b32.xlu0 %v1436, 9
        %v1448 = vpop.permute.xlu0 %1447
        %1449 = vrot.lane.b32.xlu0 %v1437, 9
        %v1450 = vpop.permute.xlu0 %1449
        %1451 = vrot.lane.b32.xlu0 %v1438, 9
        %v1452 = vpop.permute.xlu0 %1451
        %1453 = vrot.lane.b32.xlu0 %v1439, 9
        %v1454 = vpop.permute.xlu0 %1453
        %vm1455 = vcmask 72704
        %v1456 = vsel %vm1455, %v1446, %v1448
        %v1457 = vsel %vm1455, %v1448, %v1450
        %v1458 = vsel %vm1455, %v1450, %v1452
        %v1459 = vsel %vm1455, %v1452, %v1454
        %1464 = vst [vmem:[#allocation3 + $0x120] sm:$0xff] %v1456
        %1465 = vst [vmem:[#allocation3 + $0x128] sm:$0xff] %v1457
        %1466 = vst [vmem:[#allocation3 + $0x130] sm:$0xff] %v1458
        %1467 = vst [vmem:[#allocation3 + $0x138] sm:$0xff] %v1459
        %v1468 = vld [vmem:[#allocation2] sm:$0xff]
        %v1469 = vld [vmem:[#allocation2 + $0x8] sm:$0xff]
        %v1470 = vld [vmem:[#allocation2 + $0x10] sm:$0xff]
        %v1471 = vld [vmem:[#allocation2 + $0x18] sm:$0xff]
        %v1472 = vld [vmem:[#allocation2 + $0x20] sm:$0xff]
        %v1473 = vand.u32 %v496, 1024
        %vm1474 = vcmp.ne.s32.totalorder %v1473, 0
        %v1475 = vsel %vm1474, 1, 0
        %v1476 = vlaneseq
        %v1477 = vshrl.u32 %v1476, 7
        %v1478 = vsub.s32 0, %v1477
        %v1479 = vrot.slane %v1475, %v1478
        %v1480 = vlaneseq
        %v1481 = vshrl.u32 %v1480, 7
        %v1482 = vsub.s32 1, %v1481
        %v1483 = vrot.slane %v1475, %v1482
        %v1484 = vlaneseq
        %v1485 = vshrl.u32 %v1484, 7
        %v1486 = vsub.s32 2, %v1485
        %v1487 = vrot.slane %v1475, %v1486
        %v1488 = vlaneseq
        %v1489 = vshrl.u32 %v1488, 7
        %v1490 = vsub.s32 3, %v1489
        %v1491 = vrot.slane %v1475, %v1490
        %vm1492 = vcmp.eq.s32.totalorder %v1479, 1
        %vm1493 = vcmp.eq.s32.totalorder %v1483, 1
        %vm1494 = vcmp.eq.s32.totalorder %v1487, 1
        %vm1495 = vcmp.eq.s32.totalorder %v1491, 1
        %vm1496 = vmpackc.low %vm1493, %vm1492
        %vm1497 = vmpackc.low %vm1495, %vm1494
        %v1498 = vsel %vm1496, 65537, 0
        %v1499 = vsel %vm1497, 65537, 0
        %v1500 = vlaneseq
        %v1501 = vshrl.u32 %v1500, 7
        %v1502 = vsub.s32 0, %v1501
        %v1503 = vrot.slane %v1498, %v1502
        %v1504 = vlaneseq
        %v1505 = vshrl.u32 %v1504, 7
        %v1506 = vsub.s32 4, %v1505
        %v1507 = vrot.slane %v1498, %v1506
        %v1508 = vlaneseq
        %v1509 = vshrl.u32 %v1508, 7
        %v1510 = vsub.s32 0, %v1509
        %v1511 = vrot.slane %v1499, %v1510
        %v1512 = vlaneseq
        %v1513 = vshrl.u32 %v1512, 7
        %v1514 = vsub.s32 4, %v1513
        %v1515 = vrot.slane %v1499, %v1514
        %1516 = vrot.lane.b32.xlu0 %v1503, 120
        %v1517 = vpop.permute.xlu0 %1516
        %1518 = vrot.lane.b32.xlu0 %v1507, 120
        %v1519 = vpop.permute.xlu0 %1518
        %1520 = vrot.lane.b32.xlu0 %v1511, 120
        %v1521 = vpop.permute.xlu0 %1520
        %1522 = vrot.lane.b32.xlu0 %v1515, 120
        %v1523 = vpop.permute.xlu0 %1522
        %vm1524 = vcmask 982016
        %v1525 = vsel %vm1524, %v1517, %v1519
        %v1526 = vsel %vm1524, %v1519, %v1521
        %v1527 = vsel %vm1524, %v1521, %v1523
        %vm1528 = vcmp.ne.s16.totalorder %v1517, 0
        %vm1529 = vcmp.ne.s16.totalorder %v1525, 0
        %vm1530 = vcmp.ne.s16.totalorder %v1526, 0
        %vm1531 = vcmp.ne.s16.totalorder %v1527, 0
        %vm1532 = vcmp.ne.s16.totalorder %v1523, 0
        %v1533 = vsel %vm1528, %v1468, 0
        %v1534 = vsel %vm1529, %v1469, 0
        %v1535 = vsel %vm1530, %v1470, 0
        %v1536 = vsel %vm1531, %v1471, 0
        %v1537 = vsel %vm1532, %v1472, 0
        %1543 = vrot.lane.b32.xlu0 %v1533, 8
        %v1544 = vpop.permute.xlu0 %1543
        %1545 = vrot.lane.b32.xlu0 %v1534, 8
        %v1546 = vpop.permute.xlu0 %1545
        %1547 = vrot.lane.b32.xlu0 %v1535, 8
        %v1548 = vpop.permute.xlu0 %1547
        %1549 = vrot.lane.b32.xlu0 %v1536, 8
        %v1550 = vpop.permute.xlu0 %1549
        %1551 = vrot.lane.b32.xlu0 %v1537, 8
        %v1552 = vpop.permute.xlu0 %1551
        %vm1553 = vcmask 64512
        %v1554 = vsel %vm1553, %v1544, %v1546
        %v1555 = vsel %vm1553, %v1546, %v1548
        %v1556 = vsel %vm1553, %v1548, %v1550
        %v1557 = vsel %vm1553, %v1550, %v1552
        %1562 = vst [vmem:[#allocation3 + $0x140] sm:$0xff] %v1554
        %1563 = vst [vmem:[#allocation3 + $0x148] sm:$0xff] %v1555
        %1564 = vst [vmem:[#allocation3 + $0x150] sm:$0xff] %v1556
        %1565 = vst [vmem:[#allocation3 + $0x158] sm:$0xff] %v1557
        %v1566 = vld [vmem:[#allocation2] sm:$0xff]
        %v1567 = vld [vmem:[#allocation2 + $0x8] sm:$0xff]
        %v1568 = vld [vmem:[#allocation2 + $0x10] sm:$0xff]
        %v1569 = vld [vmem:[#allocation2 + $0x18] sm:$0xff]
        %v1570 = vld [vmem:[#allocation2 + $0x20] sm:$0xff]
        %v1571 = vand.u32 %v496, 2048
        %vm1572 = vcmp.ne.s32.totalorder %v1571, 0
        %v1573 = vsel %vm1572, 1, 0
        %v1574 = vlaneseq
        %v1575 = vshrl.u32 %v1574, 7
        %v1576 = vsub.s32 0, %v1575
        %v1577 = vrot.slane %v1573, %v1576
        %v1578 = vlaneseq
        %v1579 = vshrl.u32 %v1578, 7
        %v1580 = vsub.s32 1, %v1579
        %v1581 = vrot.slane %v1573, %v1580
        %v1582 = vlaneseq
        %v1583 = vshrl.u32 %v1582, 7
        %v1584 = vsub.s32 2, %v1583
        %v1585 = vrot.slane %v1573, %v1584
        %v1586 = vlaneseq
        %v1587 = vshrl.u32 %v1586, 7
        %v1588 = vsub.s32 3, %v1587
        %v1589 = vrot.slane %v1573, %v1588
        %vm1590 = vcmp.eq.s32.totalorder %v1577, 1
        %vm1591 = vcmp.eq.s32.totalorder %v1581, 1
        %vm1592 = vcmp.eq.s32.totalorder %v1585, 1
        %vm1593 = vcmp.eq.s32.totalorder %v1589, 1
        %vm1594 = vmpackc.low %vm1591, %vm1590
        %vm1595 = vmpackc.low %vm1593, %vm1592
        %v1596 = vsel %vm1594, 65537, 0
        %v1597 = vsel %vm1595, 65537, 0
        %v1598 = vlaneseq
        %v1599 = vshrl.u32 %v1598, 7
        %v1600 = vsub.s32 0, %v1599
        %v1601 = vrot.slane %v1596, %v1600
        %v1602 = vlaneseq
        %v1603 = vshrl.u32 %v1602, 7
        %v1604 = vsub.s32 4, %v1603
        %v1605 = vrot.slane %v1596, %v1604
        %v1606 = vlaneseq
        %v1607 = vshrl.u32 %v1606, 7
        %v1608 = vsub.s32 0, %v1607
        %v1609 = vrot.slane %v1597, %v1608
        %v1610 = vlaneseq
        %v1611 = vshrl.u32 %v1610, 7
        %v1612 = vsub.s32 4, %v1611
        %v1613 = vrot.slane %v1597, %v1612
        %1614 = vrot.lane.b32.xlu0 %v1601, 121
        %v1615 = vpop.permute.xlu0 %1614
        %1616 = vrot.lane.b32.xlu0 %v1605, 121
        %v1617 = vpop.permute.xlu0 %1616
        %1618 = vrot.lane.b32.xlu0 %v1609, 121
        %v1619 = vpop.permute.xlu0 %1618
        %1620 = vrot.lane.b32.xlu0 %v1613, 121
        %v1621 = vpop.permute.xlu0 %1620
        %vm1622 = vcmask 990208
        %v1623 = vsel %vm1622, %v1615, %v1617
        %v1624 = vsel %vm1622, %v1617, %v1619
        %v1625 = vsel %vm1622, %v1619, %v1621
        %vm1626 = vcmp.ne.s16.totalorder %v1615, 0
        %vm1627 = vcmp.ne.s16.totalorder %v1623, 0
        %vm1628 = vcmp.ne.s16.totalorder %v1624, 0
        %vm1629 = vcmp.ne.s16.totalorder %v1625, 0
        %vm1630 = vcmp.ne.s16.totalorder %v1621, 0
        %v1631 = vsel %vm1626, %v1566, 0
        %v1632 = vsel %vm1627, %v1567, 0
        %v1633 = vsel %vm1628, %v1568, 0
        %v1634 = vsel %vm1629, %v1569, 0
        %v1635 = vsel %vm1630, %v1570, 0
        %1641 = vrot.lane.b32.xlu0 %v1631, 7
        %v1642 = vpop.permute.xlu0 %1641
        %1643 = vrot.lane.b32.xlu0 %v1632, 7
        %v1644 = vpop.permute.xlu0 %1643
        %1645 = vrot.lane.b32.xlu0 %v1633, 7
        %v1646 = vpop.permute.xlu0 %1645
        %1647 = vrot.lane.b32.xlu0 %v1634, 7
        %v1648 = vpop.permute.xlu0 %1647
        %1649 = vrot.lane.b32.xlu0 %v1635, 7
        %v1650 = vpop.permute.xlu0 %1649
        %vm1651 = vcmask 56320
        %v1652 = vsel %vm1651, %v1642, %v1644
        %v1653 = vsel %vm1651, %v1644, %v1646
        %v1654 = vsel %vm1651, %v1646, %v1648
        %v1655 = vsel %vm1651, %v1648, %v1650
        %1660 = vst [vmem:[#allocation3 + $0x160] sm:$0xff] %v1652
        %1661 = vst [vmem:[#allocation3 + $0x168] sm:$0xff] %v1653
        %1662 = vst [vmem:[#allocation3 + $0x170] sm:$0xff] %v1654
        %1663 = vst [vmem:[#allocation3 + $0x178] sm:$0xff] %v1655
        %v1664 = vld [vmem:[#allocation2] sm:$0xff]
        %v1665 = vld [vmem:[#allocation2 + $0x8] sm:$0xff]
        %v1666 = vld [vmem:[#allocation2 + $0x10] sm:$0xff]
        %v1667 = vld [vmem:[#allocation2 + $0x18] sm:$0xff]
        %v1668 = vld [vmem:[#allocation2 + $0x20] sm:$0xff]
        %v1669 = vand.u32 %v496, 4096
        %vm1670 = vcmp.ne.s32.totalorder %v1669, 0
        %v1671 = vsel %vm1670, 1, 0
        %v1672 = vlaneseq
        %v1673 = vshrl.u32 %v1672, 7
        %v1674 = vsub.s32 0, %v1673
        %v1675 = vrot.slane %v1671, %v1674
        %v1676 = vlaneseq
        %v1677 = vshrl.u32 %v1676, 7
        %v1678 = vsub.s32 1, %v1677
        %v1679 = vrot.slane %v1671, %v1678
        %v1680 = vlaneseq
        %v1681 = vshrl.u32 %v1680, 7
        %v1682 = vsub.s32 2, %v1681
        %v1683 = vrot.slane %v1671, %v1682
        %v1684 = vlaneseq
        %v1685 = vshrl.u32 %v1684, 7
        %v1686 = vsub.s32 3, %v1685
        %v1687 = vrot.slane %v1671, %v1686
        %vm1688 = vcmp.eq.s32.totalorder %v1675, 1
        %vm1689 = vcmp.eq.s32.totalorder %v1679, 1
        %vm1690 = vcmp.eq.s32.totalorder %v1683, 1
        %vm1691 = vcmp.eq.s32.totalorder %v1687, 1
        %vm1692 = vmpackc.low %vm1689, %vm1688
        %vm1693 = vmpackc.low %vm1691, %vm1690
        %v1694 = vsel %vm1692, 65537, 0
        %v1695 = vsel %vm1693, 65537, 0
        %v1696 = vlaneseq
        %v1697 = vshrl.u32 %v1696, 7
        %v1698 = vsub.s32 0, %v1697
        %v1699 = vrot.slane %v1694, %v1698
        %v1700 = vlaneseq
        %v1701 = vshrl.u32 %v1700, 7
        %v1702 = vsub.s32 4, %v1701
        %v1703 = vrot.slane %v1694, %v1702
        %v1704 = vlaneseq
        %v1705 = vshrl.u32 %v1704, 7
        %v1706 = vsub.s32 0, %v1705
        %v1707 = vrot.slane %v1695, %v1706
        %v1708 = vlaneseq
        %v1709 = vshrl.u32 %v1708, 7
        %v1710 = vsub.s32 4, %v1709
        %v1711 = vrot.slane %v1695, %v1710
        %1712 = vrot.lane.b32.xlu0 %v1699, 127
        %v1713 = vpop.permute.xlu0 %1712
        %1714 = vrot.lane.b32.xlu0 %v1703, 127
        %v1715 = vpop.permute.xlu0 %1714
        %1716 = vrot.lane.b32.xlu0 %v1707, 127
        %v1717 = vpop.permute.xlu0 %1716
        %1718 = vrot.lane.b32.xlu0 %v1711, 127
        %v1719 = vpop.permute.xlu0 %1718
        %vm1720 = vcmask 1039360
        %v1721 = vsel %vm1720, %v1713, %v1715
        %v1722 = vsel %vm1720, %v1715, %v1717
        %v1723 = vsel %vm1720, %v1717, %v1719
        %vm1724 = vcmp.ne.s16.totalorder %v1713, 0
        %vm1725 = vcmp.ne.s16.totalorder %v1721, 0
        %vm1726 = vcmp.ne.s16.totalorder %v1722, 0
        %vm1727 = vcmp.ne.s16.totalorder %v1723, 0
        %vm1728 = vcmp.ne.s16.totalorder %v1719, 0
        %v1729 = vsel %vm1724, %v1664, 0
        %v1730 = vsel %vm1725, %v1665, 0
        %v1731 = vsel %vm1726, %v1666, 0
        %v1732 = vsel %vm1727, %v1667, 0
        %v1733 = vsel %vm1728, %v1668, 0
        %1739 = vrot.lane.b32.xlu0 %v1729, 1
        %v1740 = vpop.permute.xlu0 %1739
        %1741 = vrot.lane.b32.xlu0 %v1730, 1
        %v1742 = vpop.permute.xlu0 %1741
        %1743 = vrot.lane.b32.xlu0 %v1731, 1
        %v1744 = vpop.permute.xlu0 %1743
        %1745 = vrot.lane.b32.xlu0 %v1732, 1
        %v1746 = vpop.permute.xlu0 %1745
        %1747 = vrot.lane.b32.xlu0 %v1733, 1
        %v1748 = vpop.permute.xlu0 %1747
        %vm1749 = vcmask 7168
        %v1750 = vsel %vm1749, %v1740, %v1742
        %v1751 = vsel %vm1749, %v1742, %v1744
        %v1752 = vsel %vm1749, %v1744, %v1746
        %v1753 = vsel %vm1749, %v1746, %v1748
        %1758 = vst [vmem:[#allocation3 + $0x180] sm:$0xff] %v1750
        %1759 = vst [vmem:[#allocation3 + $0x188] sm:$0xff] %v1751
        %1760 = vst [vmem:[#allocation3 + $0x190] sm:$0xff] %v1752
        %1761 = vst [vmem:[#allocation3 + $0x198] sm:$0xff] %v1753
        %v1762 = vld [vmem:[#allocation2 + $0x8] sm:$0xff]
        %v1763 = vld [vmem:[#allocation2 + $0x10] sm:$0xff]
        %v1764 = vld [vmem:[#allocation2 + $0x18] sm:$0xff]
        %v1765 = vld [vmem:[#allocation2 + $0x20] sm:$0xff]
        %v1766 = vand.u32 %v496, 8192
        %vm1767 = vcmp.ne.s32.totalorder %v1766, 0
        %v1768 = vsel %vm1767, 1, 0
        %v1769 = vlaneseq
        %v1770 = vshrl.u32 %v1769, 7
        %v1771 = vsub.s32 0, %v1770
        %v1772 = vrot.slane %v1768, %v1771
        %v1773 = vlaneseq
        %v1774 = vshrl.u32 %v1773, 7
        %v1775 = vsub.s32 1, %v1774
        %v1776 = vrot.slane %v1768, %v1775
        %v1777 = vlaneseq
        %v1778 = vshrl.u32 %v1777, 7
        %v1779 = vsub.s32 2, %v1778
        %v1780 = vrot.slane %v1768, %v1779
        %v1781 = vlaneseq
        %v1782 = vshrl.u32 %v1781, 7
        %v1783 = vsub.s32 3, %v1782
        %v1784 = vrot.slane %v1768, %v1783
        %vm1785 = vcmp.eq.s32.totalorder %v1772, 1
        %vm1786 = vcmp.eq.s32.totalorder %v1776, 1
        %vm1787 = vcmp.eq.s32.totalorder %v1780, 1
        %vm1788 = vcmp.eq.s32.totalorder %v1784, 1
        %vm1789 = vmpackc.low %vm1786, %vm1785
        %vm1790 = vmpackc.low %vm1788, %vm1787
        %v1791 = vsel %vm1789, 65537, 0
        %v1792 = vsel %vm1790, 65537, 0
        %v1793 = vlaneseq
        %v1794 = vshrl.u32 %v1793, 7
        %v1795 = vsub.s32 0, %v1794
        %v1796 = vrot.slane %v1791, %v1795
        %v1797 = vlaneseq
        %v1798 = vshrl.u32 %v1797, 7
        %v1799 = vsub.s32 4, %v1798
        %v1800 = vrot.slane %v1791, %v1799
        %v1801 = vlaneseq
        %v1802 = vshrl.u32 %v1801, 7
        %v1803 = vsub.s32 0, %v1802
        %v1804 = vrot.slane %v1792, %v1803
        %v1805 = vlaneseq
        %v1806 = vshrl.u32 %v1805, 7
        %v1807 = vsub.s32 4, %v1806
        %v1808 = vrot.slane %v1792, %v1807
        %vm1809 = vcmp.ne.s16.totalorder %v1796, 0
        %vm1810 = vcmp.ne.s16.totalorder %v1800, 0
        %vm1811 = vcmp.ne.s16.totalorder %v1804, 0
        %vm1812 = vcmp.ne.s16.totalorder %v1808, 0
        %v1813 = vsel %vm1809, %v1762, 0
        %v1814 = vsel %vm1810, %v1763, 0
        %v1815 = vsel %vm1811, %v1764, 0
        %v1816 = vsel %vm1812, %v1765, 0
        %1817 = vst [vmem:[#allocation3 + $0x1a0] sm:$0xff] %v1813
        %1818 = vst [vmem:[#allocation3 + $0x1a8] sm:$0xff] %v1814
        %1819 = vst [vmem:[#allocation3 + $0x1b0] sm:$0xff] %v1815
        %1820 = vst [vmem:[#allocation3 + $0x1b8] sm:$0xff] %v1816
        %v1821 = vld [vmem:[#allocation2 + $0x8] sm:$0xff]
        %v1822 = vld [vmem:[#allocation2 + $0x10] sm:$0xff]
        %v1823 = vld [vmem:[#allocation2 + $0x18] sm:$0xff]
        %v1824 = vld [vmem:[#allocation2 + $0x20] sm:$0xff]
        %v1825 = vld [vmem:[#allocation2 + $0x28] sm:$0xff]
        %v1826 = vand.u32 %v496, 16384
        %vm1827 = vcmp.ne.s32.totalorder %v1826, 0
        %v1828 = vsel %vm1827, 1, 0
        %v1829 = vlaneseq
        %v1830 = vshrl.u32 %v1829, 7
        %v1831 = vsub.s32 0, %v1830
        %v1832 = vrot.slane %v1828, %v1831
        %v1833 = vlaneseq
        %v1834 = vshrl.u32 %v1833, 7
        %v1835 = vsub.s32 1, %v1834
        %v1836 = vrot.slane %v1828, %v1835
        %v1837 = vlaneseq
        %v1838 = vshrl.u32 %v1837, 7
        %v1839 = vsub.s32 2, %v1838
        %v1840 = vrot.slane %v1828, %v1839
        %v1841 = vlaneseq
        %v1842 = vshrl.u32 %v1841, 7
        %v1843 = vsub.s32 3, %v1842
        %v1844 = vrot.slane %v1828, %v1843
        %vm1845 = vcmp.eq.s32.totalorder %v1832, 1
        %vm1846 = vcmp.eq.s32.totalorder %v1836, 1
        %vm1847 = vcmp.eq.s32.totalorder %v1840, 1
        %vm1848 = vcmp.eq.s32.totalorder %v1844, 1
        %vm1849 = vmpackc.low %vm1846, %vm1845
        %vm1850 = vmpackc.low %vm1848, %vm1847
        %v1851 = vsel %vm1849, 65537, 0
        %v1852 = vsel %vm1850, 65537, 0
        %v1853 = vlaneseq
        %v1854 = vshrl.u32 %v1853, 7
        %v1855 = vsub.s32 0, %v1854
        %v1856 = vrot.slane %v1851, %v1855
        %v1857 = vlaneseq
        %v1858 = vshrl.u32 %v1857, 7
        %v1859 = vsub.s32 4, %v1858
        %v1860 = vrot.slane %v1851, %v1859
        %v1861 = vlaneseq
        %v1862 = vshrl.u32 %v1861, 7
        %v1863 = vsub.s32 0, %v1862
        %v1864 = vrot.slane %v1852, %v1863
        %v1865 = vlaneseq
        %v1866 = vshrl.u32 %v1865, 7
        %v1867 = vsub.s32 4, %v1866
        %v1868 = vrot.slane %v1852, %v1867
        %1869 = vrot.lane.b32.xlu0 %v1856, 1
        %v1870 = vpop.permute.xlu0 %1869
        %1871 = vrot.lane.b32.xlu0 %v1860, 1
        %v1872 = vpop.permute.xlu0 %1871
        %1873 = vrot.lane.b32.xlu0 %v1864, 1
        %v1874 = vpop.permute.xlu0 %1873
        %1875 = vrot.lane.b32.xlu0 %v1868, 1
        %v1876 = vpop.permute.xlu0 %1875
        %v1877 = vsel %vm1749, %v1870, %v1872
        %v1878 = vsel %vm1749, %v1872, %v1874
        %v1879 = vsel %vm1749, %v1874, %v1876
        %vm1880 = vcmp.ne.s16.totalorder %v1870, 0
        %vm1881 = vcmp.ne.s16.totalorder %v1877, 0
        %vm1882 = vcmp.ne.s16.totalorder %v1878, 0
        %vm1883 = vcmp.ne.s16.totalorder %v1879, 0
        %vm1884 = vcmp.ne.s16.totalorder %v1876, 0
        %v1885 = vsel %vm1880, %v1821, 0
        %v1886 = vsel %vm1881, %v1822, 0
        %v1887 = vsel %vm1882, %v1823, 0
        %v1888 = vsel %vm1883, %v1824, 0
        %v1889 = vsel %vm1884, %v1825, 0
        %1895 = vrot.lane.b32.xlu0 %v1885, 127
        %v1896 = vpop.permute.xlu0 %1895
        %1897 = vrot.lane.b32.xlu0 %v1886, 127
        %v1898 = vpop.permute.xlu0 %1897
        %1899 = vrot.lane.b32.xlu0 %v1887, 127
        %v1900 = vpop.permute.xlu0 %1899
        %1901 = vrot.lane.b32.xlu0 %v1888, 127
        %v1902 = vpop.permute.xlu0 %1901
        %1903 = vrot.lane.b32.xlu0 %v1889, 127
        %v1904 = vpop.permute.xlu0 %1903
        %v1905 = vsel %vm1720, %v1896, %v1898
        %v1906 = vsel %vm1720, %v1898, %v1900
        %v1907 = vsel %vm1720, %v1900, %v1902
        %v1908 = vsel %vm1720, %v1902, %v1904
        %1913 = vst [vmem:[#allocation3 + $0x1c0] sm:$0xff] %v1905
        %1914 = vst [vmem:[#allocation3 + $0x1c8] sm:$0xff] %v1906
        %1915 = vst [vmem:[#allocation3 + $0x1d0] sm:$0xff] %v1907
        %1916 = vst [vmem:[#allocation3 + $0x1d8] sm:$0xff] %v1908
        %v1917 = vld [vmem:[#allocation2 + $0x8] sm:$0xff]
        %v1918 = vld [vmem:[#allocation2 + $0x10] sm:$0xff]
        %v1919 = vld [vmem:[#allocation2 + $0x18] sm:$0xff]
        %v1920 = vld [vmem:[#allocation2 + $0x20] sm:$0xff]
        %v1921 = vld [vmem:[#allocation2 + $0x28] sm:$0xff]
        %v1922 = vand.u32 %v496, 32768
        %vm1923 = vcmp.ne.s32.totalorder %v1922, 0
        %v1924 = vsel %vm1923, 1, 0
        %v1925 = vlaneseq
        %v1926 = vshrl.u32 %v1925, 7
        %v1927 = vsub.s32 0, %v1926
        %v1928 = vrot.slane %v1924, %v1927
        %v1929 = vlaneseq
        %v1930 = vshrl.u32 %v1929, 7
        %v1931 = vsub.s32 1, %v1930
        %v1932 = vrot.slane %v1924, %v1931
        %v1933 = vlaneseq
        %v1934 = vshrl.u32 %v1933, 7
        %v1935 = vsub.s32 2, %v1934
        %v1936 = vrot.slane %v1924, %v1935
        %v1937 = vlaneseq
        %v1938 = vshrl.u32 %v1937, 7
        %v1939 = vsub.s32 3, %v1938
        %v1940 = vrot.slane %v1924, %v1939
        %vm1941 = vcmp.eq.s32.totalorder %v1928, 1
        %vm1942 = vcmp.eq.s32.totalorder %v1932, 1
        %vm1943 = vcmp.eq.s32.totalorder %v1936, 1
        %vm1944 = vcmp.eq.s32.totalorder %v1940, 1
        %vm1945 = vmpackc.low %vm1942, %vm1941
        %vm1946 = vmpackc.low %vm1944, %vm1943
        %v1947 = vsel %vm1945, 65537, 0
        %v1948 = vsel %vm1946, 65537, 0
        %v1949 = vlaneseq
        %v1950 = vshrl.u32 %v1949, 7
        %v1951 = vsub.s32 0, %v1950
        %v1952 = vrot.slane %v1947, %v1951
        %v1953 = vlaneseq
        %v1954 = vshrl.u32 %v1953, 7
        %v1955 = vsub.s32 4, %v1954
        %v1956 = vrot.slane %v1947, %v1955
        %v1957 = vlaneseq
        %v1958 = vshrl.u32 %v1957, 7
        %v1959 = vsub.s32 0, %v1958
        %v1960 = vrot.slane %v1948, %v1959
        %v1961 = vlaneseq
        %v1962 = vshrl.u32 %v1961, 7
        %v1963 = vsub.s32 4, %v1962
        %v1964 = vrot.slane %v1948, %v1963
        %1965 = vrot.lane.b32.xlu0 %v1952, 7
        %v1966 = vpop.permute.xlu0 %1965
        %1967 = vrot.lane.b32.xlu0 %v1956, 7
        %v1968 = vpop.permute.xlu0 %1967
        %1969 = vrot.lane.b32.xlu0 %v1960, 7
        %v1970 = vpop.permute.xlu0 %1969
        %1971 = vrot.lane.b32.xlu0 %v1964, 7
        %v1972 = vpop.permute.xlu0 %1971
        %v1973 = vsel %vm1651, %v1966, %v1968
        %v1974 = vsel %vm1651, %v1968, %v1970
        %v1975 = vsel %vm1651, %v1970, %v1972
        %vm1976 = vcmp.ne.s16.totalorder %v1966, 0
        %vm1977 = vcmp.ne.s16.totalorder %v1973, 0
        %vm1978 = vcmp.ne.s16.totalorder %v1974, 0
        %vm1979 = vcmp.ne.s16.totalorder %v1975, 0
        %vm1980 = vcmp.ne.s16.totalorder %v1972, 0
        %v1981 = vsel %vm1976, %v1917, 0
        %v1982 = vsel %vm1977, %v1918, 0
        %v1983 = vsel %vm1978, %v1919, 0
        %v1984 = vsel %vm1979, %v1920, 0
        %v1985 = vsel %vm1980, %v1921, 0
        %1991 = vrot.lane.b32.xlu0 %v1981, 121
        %v1992 = vpop.permute.xlu0 %1991
        %1993 = vrot.lane.b32.xlu0 %v1982, 121
        %v1994 = vpop.permute.xlu0 %1993
        %1995 = vrot.lane.b32.xlu0 %v1983, 121
        %v1996 = vpop.permute.xlu0 %1995
        %1997 = vrot.lane.b32.xlu0 %v1984, 121
        %v1998 = vpop.permute.xlu0 %1997
        %1999 = vrot.lane.b32.xlu0 %v1985, 121
        %v2000 = vpop.permute.xlu0 %1999
        %v2001 = vsel %vm1622, %v1992, %v1994
        %v2002 = vsel %vm1622, %v1994, %v1996
        %v2003 = vsel %vm1622, %v1996, %v1998
        %v2004 = vsel %vm1622, %v1998, %v2000
        %2009 = vst [vmem:[#allocation3 + $0x1e0] sm:$0xff] %v2001
        %2010 = vst [vmem:[#allocation3 + $0x1e8] sm:$0xff] %v2002
        %2011 = vst [vmem:[#allocation3 + $0x1f0] sm:$0xff] %v2003
        %2012 = vst [vmem:[#allocation3 + $0x1f8] sm:$0xff] %v2004
        %v2013 = vld [vmem:[#allocation2 + $0x8] sm:$0xff]
        %v2014 = vld [vmem:[#allocation2 + $0x10] sm:$0xff]
        %v2015 = vld [vmem:[#allocation2 + $0x18] sm:$0xff]
        %v2016 = vld [vmem:[#allocation2 + $0x20] sm:$0xff]
        %v2017 = vld [vmem:[#allocation2 + $0x28] sm:$0xff]
        %v2018 = vand.u32 %v496, 65536
        %vm2019 = vcmp.ne.s32.totalorder %v2018, 0
        %v2020 = vsel %vm2019, 1, 0
        %v2021 = vlaneseq
        %v2022 = vshrl.u32 %v2021, 7
        %v2023 = vsub.s32 0, %v2022
        %v2024 = vrot.slane %v2020, %v2023
        %v2025 = vlaneseq
        %v2026 = vshrl.u32 %v2025, 7
        %v2027 = vsub.s32 1, %v2026
        %v2028 = vrot.slane %v2020, %v2027
        %v2029 = vlaneseq
        %v2030 = vshrl.u32 %v2029, 7
        %v2031 = vsub.s32 2, %v2030
        %v2032 = vrot.slane %v2020, %v2031
        %v2033 = vlaneseq
        %v2034 = vshrl.u32 %v2033, 7
        %v2035 = vsub.s32 3, %v2034
        %v2036 = vrot.slane %v2020, %v2035
        %vm2037 = vcmp.eq.s32.totalorder %v2024, 1
        %vm2038 = vcmp.eq.s32.totalorder %v2028, 1
        %vm2039 = vcmp.eq.s32.totalorder %v2032, 1
        %vm2040 = vcmp.eq.s32.totalorder %v2036, 1
        %vm2041 = vmpackc.low %vm2038, %vm2037
        %vm2042 = vmpackc.low %vm2040, %vm2039
        %v2043 = vsel %vm2041, 65537, 0
        %v2044 = vsel %vm2042, 65537, 0
        %v2045 = vlaneseq
        %v2046 = vshrl.u32 %v2045, 7
        %v2047 = vsub.s32 0, %v2046
        %v2048 = vrot.slane %v2043, %v2047
        %v2049 = vlaneseq
        %v2050 = vshrl.u32 %v2049, 7
        %v2051 = vsub.s32 4, %v2050
        %v2052 = vrot.slane %v2043, %v2051
        %v2053 = vlaneseq
        %v2054 = vshrl.u32 %v2053, 7
        %v2055 = vsub.s32 0, %v2054
        %v2056 = vrot.slane %v2044, %v2055
        %v2057 = vlaneseq
        %v2058 = vshrl.u32 %v2057, 7
        %v2059 = vsub.s32 4, %v2058
        %v2060 = vrot.slane %v2044, %v2059
        %2061 = vrot.lane.b32.xlu0 %v2048, 8
        %v2062 = vpop.permute.xlu0 %2061
        %2063 = vrot.lane.b32.xlu0 %v2052, 8
        %v2064 = vpop.permute.xlu0 %2063
        %2065 = vrot.lane.b32.xlu0 %v2056, 8
        %v2066 = vpop.permute.xlu0 %2065
        %2067 = vrot.lane.b32.xlu0 %v2060, 8
        %v2068 = vpop.permute.xlu0 %2067
        %v2069 = vsel %vm1553, %v2062, %v2064
        %v2070 = vsel %vm1553, %v2064, %v2066
        %v2071 = vsel %vm1553, %v2066, %v2068
        %vm2072 = vcmp.ne.s16.totalorder %v2062, 0
        %vm2073 = vcmp.ne.s16.totalorder %v2069, 0
        %vm2074 = vcmp.ne.s16.totalorder %v2070, 0
        %vm2075 = vcmp.ne.s16.totalorder %v2071, 0
        %vm2076 = vcmp.ne.s16.totalorder %v2068, 0
        %v2077 = vsel %vm2072, %v2013, 0
        %v2078 = vsel %vm2073, %v2014, 0
        %v2079 = vsel %vm2074, %v2015, 0
        %v2080 = vsel %vm2075, %v2016, 0
        %v2081 = vsel %vm2076, %v2017, 0
        %2087 = vrot.lane.b32.xlu0 %v2077, 120
        %v2088 = vpop.permute.xlu0 %2087
        %2089 = vrot.lane.b32.xlu0 %v2078, 120
        %v2090 = vpop.permute.xlu0 %2089
        %2091 = vrot.lane.b32.xlu0 %v2079, 120
        %v2092 = vpop.permute.xlu0 %2091
        %2093 = vrot.lane.b32.xlu0 %v2080, 120
        %v2094 = vpop.permute.xlu0 %2093
        %2095 = vrot.lane.b32.xlu0 %v2081, 120
        %v2096 = vpop.permute.xlu0 %2095
        %v2097 = vsel %vm1524, %v2088, %v2090
        %v2098 = vsel %vm1524, %v2090, %v2092
        %v2099 = vsel %vm1524, %v2092, %v2094
        %v2100 = vsel %vm1524, %v2094, %v2096
        %2105 = vst [vmem:[#allocation3 + $0x200] sm:$0xff] %v2097
        %2106 = vst [vmem:[#allocation3 + $0x208] sm:$0xff] %v2098
        %2107 = vst [vmem:[#allocation3 + $0x210] sm:$0xff] %v2099
        %2108 = vst [vmem:[#allocation3 + $0x218] sm:$0xff] %v2100
        %v2109 = vld [vmem:[#allocation2 + $0x8] sm:$0xff]
        %v2110 = vld [vmem:[#allocation2 + $0x10] sm:$0xff]
        %v2111 = vld [vmem:[#allocation2 + $0x18] sm:$0xff]
        %v2112 = vld [vmem:[#allocation2 + $0x20] sm:$0xff]
        %v2113 = vld [vmem:[#allocation2 + $0x28] sm:$0xff]
        %v2114 = vand.u32 %v496, 131072
        %vm2115 = vcmp.ne.s32.totalorder %v2114, 0
        %v2116 = vsel %vm2115, 1, 0
        %v2117 = vlaneseq
        %v2118 = vshrl.u32 %v2117, 7
        %v2119 = vsub.s32 0, %v2118
        %v2120 = vrot.slane %v2116, %v2119
        %v2121 = vlaneseq
        %v2122 = vshrl.u32 %v2121, 7
        %v2123 = vsub.s32 1, %v2122
        %v2124 = vrot.slane %v2116, %v2123
        %v2125 = vlaneseq
        %v2126 = vshrl.u32 %v2125, 7
        %v2127 = vsub.s32 2, %v2126
        %v2128 = vrot.slane %v2116, %v2127
        %v2129 = vlaneseq
        %v2130 = vshrl.u32 %v2129, 7
        %v2131 = vsub.s32 3, %v2130
        %v2132 = vrot.slane %v2116, %v2131
        %vm2133 = vcmp.eq.s32.totalorder %v2120, 1
        %vm2134 = vcmp.eq.s32.totalorder %v2124, 1
        %vm2135 = vcmp.eq.s32.totalorder %v2128, 1
        %vm2136 = vcmp.eq.s32.totalorder %v2132, 1
        %vm2137 = vmpackc.low %vm2134, %vm2133
        %vm2138 = vmpackc.low %vm2136, %vm2135
        %v2139 = vsel %vm2137, 65537, 0
        %v2140 = vsel %vm2138, 65537, 0
        %v2141 = vlaneseq
        %v2142 = vshrl.u32 %v2141, 7
        %v2143 = vsub.s32 0, %v2142
        %v2144 = vrot.slane %v2139, %v2143
        %v2145 = vlaneseq
        %v2146 = vshrl.u32 %v2145, 7
        %v2147 = vsub.s32 4, %v2146
        %v2148 = vrot.slane %v2139, %v2147
        %v2149 = vlaneseq
        %v2150 = vshrl.u32 %v2149, 7
        %v2151 = vsub.s32 0, %v2150
        %v2152 = vrot.slane %v2140, %v2151
        %v2153 = vlaneseq
        %v2154 = vshrl.u32 %v2153, 7
        %v2155 = vsub.s32 4, %v2154
        %v2156 = vrot.slane %v2140, %v2155
        %2157 = vrot.lane.b32.xlu0 %v2144, 9
        %v2158 = vpop.permute.xlu0 %2157
        %2159 = vrot.lane.b32.xlu0 %v2148, 9
        %v2160 = vpop.permute.xlu0 %2159
        %2161 = vrot.lane.b32.xlu0 %v2152, 9
        %v2162 = vpop.permute.xlu0 %2161
        %2163 = vrot.lane.b32.xlu0 %v2156, 9
        %v2164 = vpop.permute.xlu0 %2163
        %v2165 = vsel %vm1455, %v2158, %v2160
        %v2166 = vsel %vm1455, %v2160, %v2162
        %v2167 = vsel %vm1455, %v2162, %v2164
        %vm2168 = vcmp.ne.s16.totalorder %v2158, 0
        %vm2169 = vcmp.ne.s16.totalorder %v2165, 0
        %vm2170 = vcmp.ne.s16.totalorder %v2166, 0
        %vm2171 = vcmp.ne.s16.totalorder %v2167, 0
        %vm2172 = vcmp.ne.s16.totalorder %v2164, 0
        %v2173 = vsel %vm2168, %v2109, 0
        %v2174 = vsel %vm2169, %v2110, 0
        %v2175 = vsel %vm2170, %v2111, 0
        %v2176 = vsel %vm2171, %v2112, 0
        %v2177 = vsel %vm2172, %v2113, 0
        %2183 = vrot.lane.b32.xlu0 %v2173, 119
        %v2184 = vpop.permute.xlu0 %2183
        %2185 = vrot.lane.b32.xlu0 %v2174, 119
        %v2186 = vpop.permute.xlu0 %2185
        %2187 = vrot.lane.b32.xlu0 %v2175, 119
        %v2188 = vpop.permute.xlu0 %2187
        %2189 = vrot.lane.b32.xlu0 %v2176, 119
        %v2190 = vpop.permute.xlu0 %2189
        %2191 = vrot.lane.b32.xlu0 %v2177, 119
        %v2192 = vpop.permute.xlu0 %2191
        %v2193 = vsel %vm1426, %v2184, %v2186
        %v2194 = vsel %vm1426, %v2186, %v2188
        %v2195 = vsel %vm1426, %v2188, %v2190
        %v2196 = vsel %vm1426, %v2190, %v2192
        %2201 = vst [vmem:[#allocation3 + $0x220] sm:$0xff] %v2193
        %2202 = vst [vmem:[#allocation3 + $0x228] sm:$0xff] %v2194
        %2203 = vst [vmem:[#allocation3 + $0x230] sm:$0xff] %v2195
        %2204 = vst [vmem:[#allocation3 + $0x238] sm:$0xff] %v2196
        %v2205 = vld [vmem:[#allocation2 + $0x8] sm:$0xff]
        %v2206 = vld [vmem:[#allocation2 + $0x10] sm:$0xff]
        %v2207 = vld [vmem:[#allocation2 + $0x18] sm:$0xff]
        %v2208 = vld [vmem:[#allocation2 + $0x20] sm:$0xff]
        %v2209 = vld [vmem:[#allocation2 + $0x28] sm:$0xff]
        %v2210 = vand.u32 %v496, 262144
        %vm2211 = vcmp.ne.s32.totalorder %v2210, 0
        %v2212 = vsel %vm2211, 1, 0
        %v2213 = vlaneseq
        %v2214 = vshrl.u32 %v2213, 7
        %v2215 = vsub.s32 0, %v2214
        %v2216 = vrot.slane %v2212, %v2215
        %v2217 = vlaneseq
        %v2218 = vshrl.u32 %v2217, 7
        %v2219 = vsub.s32 1, %v2218
        %v2220 = vrot.slane %v2212, %v2219
        %v2221 = vlaneseq
        %v2222 = vshrl.u32 %v2221, 7
        %v2223 = vsub.s32 2, %v2222
        %v2224 = vrot.slane %v2212, %v2223
        %v2225 = vlaneseq
        %v2226 = vshrl.u32 %v2225, 7
        %v2227 = vsub.s32 3, %v2226
        %v2228 = vrot.slane %v2212, %v2227
        %vm2229 = vcmp.eq.s32.totalorder %v2216, 1
        %vm2230 = vcmp.eq.s32.totalorder %v2220, 1
        %vm2231 = vcmp.eq.s32.totalorder %v2224, 1
        %vm2232 = vcmp.eq.s32.totalorder %v2228, 1
        %vm2233 = vmpackc.low %vm2230, %vm2229
        %vm2234 = vmpackc.low %vm2232, %vm2231
        %v2235 = vsel %vm2233, 65537, 0
        %v2236 = vsel %vm2234, 65537, 0
        %v2237 = vlaneseq
        %v2238 = vshrl.u32 %v2237, 7
        %v2239 = vsub.s32 0, %v2238
        %v2240 = vrot.slane %v2235, %v2239
        %v2241 = vlaneseq
        %v2242 = vshrl.u32 %v2241, 7
        %v2243 = vsub.s32 4, %v2242
        %v2244 = vrot.slane %v2235, %v2243
        %v2245 = vlaneseq
        %v2246 = vshrl.u32 %v2245, 7
        %v2247 = vsub.s32 0, %v2246
        %v2248 = vrot.slane %v2236, %v2247
        %v2249 = vlaneseq
        %v2250 = vshrl.u32 %v2249, 7
        %v2251 = vsub.s32 4, %v2250
        %v2252 = vrot.slane %v2236, %v2251
        %2253 = vrot.lane.b32.xlu0 %v2240, 55
        %v2254 = vpop.permute.xlu0 %2253
        %2255 = vrot.lane.b32.xlu0 %v2244, 55
        %v2256 = vpop.permute.xlu0 %2255
        %2257 = vrot.lane.b32.xlu0 %v2248, 55
        %v2258 = vpop.permute.xlu0 %2257
        %2259 = vrot.lane.b32.xlu0 %v2252, 55
        %v2260 = vpop.permute.xlu0 %2259
        %v2261 = vsel %vm553, %v2254, %v2256
        %v2262 = vsel %vm553, %v2256, %v2258
        %v2263 = vsel %vm553, %v2258, %v2260
        %vm2264 = vcmp.ne.s16.totalorder %v2254, 0
        %vm2265 = vcmp.ne.s16.totalorder %v2261, 0
        %vm2266 = vcmp.ne.s16.totalorder %v2262, 0
        %vm2267 = vcmp.ne.s16.totalorder %v2263, 0
        %vm2268 = vcmp.ne.s16.totalorder %v2260, 0
        %v2269 = vsel %vm2264, %v2205, 0
        %v2270 = vsel %vm2265, %v2206, 0
        %v2271 = vsel %vm2266, %v2207, 0
        %v2272 = vsel %vm2267, %v2208, 0
        %v2273 = vsel %vm2268, %v2209, 0
        %2279 = vrot.lane.b32.xlu0 %v2269, 73
        %v2280 = vpop.permute.xlu0 %2279
        %2281 = vrot.lane.b32.xlu0 %v2270, 73
        %v2282 = vpop.permute.xlu0 %2281
        %2283 = vrot.lane.b32.xlu0 %v2271, 73
        %v2284 = vpop.permute.xlu0 %2283
        %2285 = vrot.lane.b32.xlu0 %v2272, 73
        %v2286 = vpop.permute.xlu0 %2285
        %2287 = vrot.lane.b32.xlu0 %v2273, 73
        %v2288 = vpop.permute.xlu0 %2287
        %v2289 = vsel %vm582, %v2280, %v2282
        %v2290 = vsel %vm582, %v2282, %v2284
        %v2291 = vsel %vm582, %v2284, %v2286
        %v2292 = vsel %vm582, %v2286, %v2288
        %2297 = vst [vmem:[#allocation3 + $0x240] sm:$0xff] %v2289
        %2298 = vst [vmem:[#allocation3 + $0x248] sm:$0xff] %v2290
        %2299 = vst [vmem:[#allocation3 + $0x250] sm:$0xff] %v2291
        %2300 = vst [vmem:[#allocation3 + $0x258] sm:$0xff] %v2292
        %v2301 = vld [vmem:[#allocation2 + $0x8] sm:$0xff]
        %v2302 = vld [vmem:[#allocation2 + $0x10] sm:$0xff]
        %v2303 = vld [vmem:[#allocation2 + $0x18] sm:$0xff]
        %v2304 = vld [vmem:[#allocation2 + $0x20] sm:$0xff]
        %v2305 = vld [vmem:[#allocation2 + $0x28] sm:$0xff]
        %v2306 = vand.u32 %v496, 524288
        %vm2307 = vcmp.ne.s32.totalorder %v2306, 0
        %v2308 = vsel %vm2307, 1, 0
        %v2309 = vlaneseq
        %v2310 = vshrl.u32 %v2309, 7
        %v2311 = vsub.s32 0, %v2310
        %v2312 = vrot.slane %v2308, %v2311
        %v2313 = vlaneseq
        %v2314 = vshrl.u32 %v2313, 7
        %v2315 = vsub.s32 1, %v2314
        %v2316 = vrot.slane %v2308, %v2315
        %v2317 = vlaneseq
        %v2318 = vshrl.u32 %v2317, 7
        %v2319 = vsub.s32 2, %v2318
        %v2320 = vrot.slane %v2308, %v2319
        %v2321 = vlaneseq
        %v2322 = vshrl.u32 %v2321, 7
        %v2323 = vsub.s32 3, %v2322
        %v2324 = vrot.slane %v2308, %v2323
        %vm2325 = vcmp.eq.s32.totalorder %v2312, 1
        %vm2326 = vcmp.eq.s32.totalorder %v2316, 1
        %vm2327 = vcmp.eq.s32.totalorder %v2320, 1
        %vm2328 = vcmp.eq.s32.totalorder %v2324, 1
        %vm2329 = vmpackc.low %vm2326, %vm2325
        %vm2330 = vmpackc.low %vm2328, %vm2327
        %v2331 = vsel %vm2329, 65537, 0
        %v2332 = vsel %vm2330, 65537, 0
        %v2333 = vlaneseq
        %v2334 = vshrl.u32 %v2333, 7
        %v2335 = vsub.s32 0, %v2334
        %v2336 = vrot.slane %v2331, %v2335
        %v2337 = vlaneseq
        %v2338 = vshrl.u32 %v2337, 7
        %v2339 = vsub.s32 4, %v2338
        %v2340 = vrot.slane %v2331, %v2339
        %v2341 = vlaneseq
        %v2342 = vshrl.u32 %v2341, 7
        %v2343 = vsub.s32 0, %v2342
        %v2344 = vrot.slane %v2332, %v2343
        %v2345 = vlaneseq
        %v2346 = vshrl.u32 %v2345, 7
        %v2347 = vsub.s32 4, %v2346
        %v2348 = vrot.slane %v2332, %v2347
        %2349 = vrot.lane.b32.xlu0 %v2336, 56
        %v2350 = vpop.permute.xlu0 %2349
        %2351 = vrot.lane.b32.xlu0 %v2340, 56
        %v2352 = vpop.permute.xlu0 %2351
        %2353 = vrot.lane.b32.xlu0 %v2344, 56
        %v2354 = vpop.permute.xlu0 %2353
        %2355 = vrot.lane.b32.xlu0 %v2348, 56
        %v2356 = vpop.permute.xlu0 %2355
        %v2357 = vsel %vm651, %v2350, %v2352
        %v2358 = vsel %vm651, %v2352, %v2354
        %v2359 = vsel %vm651, %v2354, %v2356
        %vm2360 = vcmp.ne.s16.totalorder %v2350, 0
        %vm2361 = vcmp.ne.s16.totalorder %v2357, 0
        %vm2362 = vcmp.ne.s16.totalorder %v2358, 0
        %vm2363 = vcmp.ne.s16.totalorder %v2359, 0
        %vm2364 = vcmp.ne.s16.totalorder %v2356, 0
        %v2365 = vsel %vm2360, %v2301, 0
        %v2366 = vsel %vm2361, %v2302, 0
        %v2367 = vsel %vm2362, %v2303, 0
        %v2368 = vsel %vm2363, %v2304, 0
        %v2369 = vsel %vm2364, %v2305, 0
        %2375 = vrot.lane.b32.xlu0 %v2365, 72
        %v2376 = vpop.permute.xlu0 %2375
        %2377 = vrot.lane.b32.xlu0 %v2366, 72
        %v2378 = vpop.permute.xlu0 %2377
        %2379 = vrot.lane.b32.xlu0 %v2367, 72
        %v2380 = vpop.permute.xlu0 %2379
        %2381 = vrot.lane.b32.xlu0 %v2368, 72
        %v2382 = vpop.permute.xlu0 %2381
        %2383 = vrot.lane.b32.xlu0 %v2369, 72
        %v2384 = vpop.permute.xlu0 %2383
        %v2385 = vsel %vm680, %v2376, %v2378
        %v2386 = vsel %vm680, %v2378, %v2380
        %v2387 = vsel %vm680, %v2380, %v2382
        %v2388 = vsel %vm680, %v2382, %v2384
        %2393 = vst [vmem:[#allocation3 + $0x260] sm:$0xff] %v2385
        %2394 = vst [vmem:[#allocation3 + $0x268] sm:$0xff] %v2386
        %2395 = vst [vmem:[#allocation3 + $0x270] sm:$0xff] %v2387
        %2396 = vst [vmem:[#allocation3 + $0x278] sm:$0xff] %v2388
        %v2397 = vld [vmem:[#allocation2 + $0x8] sm:$0xff]
        %v2398 = vld [vmem:[#allocation2 + $0x10] sm:$0xff]
        %v2399 = vld [vmem:[#allocation2 + $0x18] sm:$0xff]
        %v2400 = vld [vmem:[#allocation2 + $0x20] sm:$0xff]
        %v2401 = vld [vmem:[#allocation2 + $0x28] sm:$0xff]
        %v2402 = vand.u32 %v496, 1048576
        %vm2403 = vcmp.ne.s32.totalorder %v2402, 0
        %v2404 = vsel %vm2403, 1, 0
        %v2405 = vlaneseq
        %v2406 = vshrl.u32 %v2405, 7
        %v2407 = vsub.s32 0, %v2406
        %v2408 = vrot.slane %v2404, %v2407
        %v2409 = vlaneseq
        %v2410 = vshrl.u32 %v2409, 7
        %v2411 = vsub.s32 1, %v2410
        %v2412 = vrot.slane %v2404, %v2411
        %v2413 = vlaneseq
        %v2414 = vshrl.u32 %v2413, 7
        %v2415 = vsub.s32 2, %v2414
        %v2416 = vrot.slane %v2404, %v2415
        %v2417 = vlaneseq
        %v2418 = vshrl.u32 %v2417, 7
        %v2419 = vsub.s32 3, %v2418
        %v2420 = vrot.slane %v2404, %v2419
        %vm2421 = vcmp.eq.s32.totalorder %v2408, 1
        %vm2422 = vcmp.eq.s32.totalorder %v2412, 1
        %vm2423 = vcmp.eq.s32.totalorder %v2416, 1
        %vm2424 = vcmp.eq.s32.totalorder %v2420, 1
        %vm2425 = vmpackc.low %vm2422, %vm2421
        %vm2426 = vmpackc.low %vm2424, %vm2423
        %v2427 = vsel %vm2425, 65537, 0
        %v2428 = vsel %vm2426, 65537, 0
        %v2429 = vlaneseq
        %v2430 = vshrl.u32 %v2429, 7
        %v2431 = vsub.s32 0, %v2430
        %v2432 = vrot.slane %v2427, %v2431
        %v2433 = vlaneseq
        %v2434 = vshrl.u32 %v2433, 7
        %v2435 = vsub.s32 4, %v2434
        %v2436 = vrot.slane %v2427, %v2435
        %v2437 = vlaneseq
        %v2438 = vshrl.u32 %v2437, 7
        %v2439 = vsub.s32 0, %v2438
        %v2440 = vrot.slane %v2428, %v2439
        %v2441 = vlaneseq
        %v2442 = vshrl.u32 %v2441, 7
        %v2443 = vsub.s32 4, %v2442
        %v2444 = vrot.slane %v2428, %v2443
        %2445 = vrot.lane.b32.xlu0 %v2432, 57
        %v2446 = vpop.permute.xlu0 %2445
        %2447 = vrot.lane.b32.xlu0 %v2436, 57
        %v2448 = vpop.permute.xlu0 %2447
        %2449 = vrot.lane.b32.xlu0 %v2440, 57
        %v2450 = vpop.permute.xlu0 %2449
        %2451 = vrot.lane.b32.xlu0 %v2444, 57
        %v2452 = vpop.permute.xlu0 %2451
        %v2453 = vsel %vm749, %v2446, %v2448
        %v2454 = vsel %vm749, %v2448, %v2450
        %v2455 = vsel %vm749, %v2450, %v2452
        %vm2456 = vcmp.ne.s16.totalorder %v2446, 0
        %vm2457 = vcmp.ne.s16.totalorder %v2453, 0
        %vm2458 = vcmp.ne.s16.totalorder %v2454, 0
        %vm2459 = vcmp.ne.s16.totalorder %v2455, 0
        %vm2460 = vcmp.ne.s16.totalorder %v2452, 0
        %v2461 = vsel %vm2456, %v2397, 0
        %v2462 = vsel %vm2457, %v2398, 0
        %v2463 = vsel %vm2458, %v2399, 0
        %v2464 = vsel %vm2459, %v2400, 0
        %v2465 = vsel %vm2460, %v2401, 0
        %2471 = vrot.lane.b32.xlu0 %v2461, 71
        %v2472 = vpop.permute.xlu0 %2471
        %2473 = vrot.lane.b32.xlu0 %v2462, 71
        %v2474 = vpop.permute.xlu0 %2473
        %2475 = vrot.lane.b32.xlu0 %v2463, 71
        %v2476 = vpop.permute.xlu0 %2475
        %2477 = vrot.lane.b32.xlu0 %v2464, 71
        %v2478 = vpop.permute.xlu0 %2477
        %2479 = vrot.lane.b32.xlu0 %v2465, 71
        %v2480 = vpop.permute.xlu0 %2479
        %v2481 = vsel %vm778, %v2472, %v2474
        %v2482 = vsel %vm778, %v2474, %v2476
        %v2483 = vsel %vm778, %v2476, %v2478
        %v2484 = vsel %vm778, %v2478, %v2480
        %2489 = vst [vmem:[#allocation3 + $0x280] sm:$0xff] %v2481
        %2490 = vst [vmem:[#allocation3 + $0x288] sm:$0xff] %v2482
        %2491 = vst [vmem:[#allocation3 + $0x290] sm:$0xff] %v2483
        %2492 = vst [vmem:[#allocation3 + $0x298] sm:$0xff] %v2484
        %v2493 = vld [vmem:[#allocation2 + $0x8] sm:$0xff]
        %v2494 = vld [vmem:[#allocation2 + $0x10] sm:$0xff]
        %v2495 = vld [vmem:[#allocation2 + $0x18] sm:$0xff]
        %v2496 = vld [vmem:[#allocation2 + $0x20] sm:$0xff]
        %v2497 = vld [vmem:[#allocation2 + $0x28] sm:$0xff]
        %v2498 = vand.u32 %v496, 2097152
        %vm2499 = vcmp.ne.s32.totalorder %v2498, 0
        %v2500 = vsel %vm2499, 1, 0
        %v2501 = vlaneseq
        %v2502 = vshrl.u32 %v2501, 7
        %v2503 = vsub.s32 0, %v2502
        %v2504 = vrot.slane %v2500, %v2503
        %v2505 = vlaneseq
        %v2506 = vshrl.u32 %v2505, 7
        %v2507 = vsub.s32 1, %v2506
        %v2508 = vrot.slane %v2500, %v2507
        %v2509 = vlaneseq
        %v2510 = vshrl.u32 %v2509, 7
        %v2511 = vsub.s32 2, %v2510
        %v2512 = vrot.slane %v2500, %v2511
        %v2513 = vlaneseq
        %v2514 = vshrl.u32 %v2513, 7
        %v2515 = vsub.s32 3, %v2514
        %v2516 = vrot.slane %v2500, %v2515
        %vm2517 = vcmp.eq.s32.totalorder %v2504, 1
        %vm2518 = vcmp.eq.s32.totalorder %v2508, 1
        %vm2519 = vcmp.eq.s32.totalorder %v2512, 1
        %vm2520 = vcmp.eq.s32.totalorder %v2516, 1
        %vm2521 = vmpackc.low %vm2518, %vm2517
        %vm2522 = vmpackc.low %vm2520, %vm2519
        %v2523 = vsel %vm2521, 65537, 0
        %v2524 = vsel %vm2522, 65537, 0
        %v2525 = vlaneseq
        %v2526 = vshrl.u32 %v2525, 7
        %v2527 = vsub.s32 0, %v2526
        %v2528 = vrot.slane %v2523, %v2527
        %v2529 = vlaneseq
        %v2530 = vshrl.u32 %v2529, 7
        %v2531 = vsub.s32 4, %v2530
        %v2532 = vrot.slane %v2523, %v2531
        %v2533 = vlaneseq
        %v2534 = vshrl.u32 %v2533, 7
        %v2535 = vsub.s32 0, %v2534
        %v2536 = vrot.slane %v2524, %v2535
        %v2537 = vlaneseq
        %v2538 = vshrl.u32 %v2537, 7
        %v2539 = vsub.s32 4, %v2538
        %v2540 = vrot.slane %v2524, %v2539
        %2541 = vrot.lane.b32.xlu0 %v2528, 63
        %v2542 = vpop.permute.xlu0 %2541
        %2543 = vrot.lane.b32.xlu0 %v2532, 63
        %v2544 = vpop.permute.xlu0 %2543
        %2545 = vrot.lane.b32.xlu0 %v2536, 63
        %v2546 = vpop.permute.xlu0 %2545
        %2547 = vrot.lane.b32.xlu0 %v2540, 63
        %v2548 = vpop.permute.xlu0 %2547
        %v2549 = vsel %vm847, %v2542, %v2544
        %v2550 = vsel %vm847, %v2544, %v2546
        %v2551 = vsel %vm847, %v2546, %v2548
        %vm2552 = vcmp.ne.s16.totalorder %v2542, 0
        %vm2553 = vcmp.ne.s16.totalorder %v2549, 0
        %vm2554 = vcmp.ne.s16.totalorder %v2550, 0
        %vm2555 = vcmp.ne.s16.totalorder %v2551, 0
        %vm2556 = vcmp.ne.s16.totalorder %v2548, 0
        %v2557 = vsel %vm2552, %v2493, 0
        %v2558 = vsel %vm2553, %v2494, 0
        %v2559 = vsel %vm2554, %v2495, 0
        %v2560 = vsel %vm2555, %v2496, 0
        %v2561 = vsel %vm2556, %v2497, 0
        %2567 = vrot.lane.b32.xlu0 %v2557, 65
        %v2568 = vpop.permute.xlu0 %2567
        %2569 = vrot.lane.b32.xlu0 %v2558, 65
        %v2570 = vpop.permute.xlu0 %2569
        %2571 = vrot.lane.b32.xlu0 %v2559, 65
        %v2572 = vpop.permute.xlu0 %2571
        %2573 = vrot.lane.b32.xlu0 %v2560, 65
        %v2574 = vpop.permute.xlu0 %2573
        %2575 = vrot.lane.b32.xlu0 %v2561, 65
        %v2576 = vpop.permute.xlu0 %2575
        %v2577 = vsel %vm876, %v2568, %v2570
        %v2578 = vsel %vm876, %v2570, %v2572
        %v2579 = vsel %vm876, %v2572, %v2574
        %v2580 = vsel %vm876, %v2574, %v2576
        %2585 = vst [vmem:[#allocation3 + $0x2a0] sm:$0xff] %v2577
        %2586 = vst [vmem:[#allocation3 + $0x2a8] sm:$0xff] %v2578
        %2587 = vst [vmem:[#allocation3 + $0x2b0] sm:$0xff] %v2579
        %2588 = vst [vmem:[#allocation3 + $0x2b8] sm:$0xff] %v2580
        %v2589 = vld [vmem:[#allocation2 + $0x8] sm:$0xff]
        %v2590 = vld [vmem:[#allocation2 + $0x10] sm:$0xff]
        %v2591 = vld [vmem:[#allocation2 + $0x18] sm:$0xff]
        %v2592 = vld [vmem:[#allocation2 + $0x20] sm:$0xff]
        %v2593 = vld [vmem:[#allocation2 + $0x28] sm:$0xff]
        %v2594 = vand.u32 %v496, 4194304
        %vm2595 = vcmp.ne.s32.totalorder %v2594, 0
        %v2596 = vsel %vm2595, 1, 0
        %v2597 = vlaneseq
        %v2598 = vshrl.u32 %v2597, 7
        %v2599 = vsub.s32 0, %v2598
        %v2600 = vrot.slane %v2596, %v2599
        %v2601 = vlaneseq
        %v2602 = vshrl.u32 %v2601, 7
        %v2603 = vsub.s32 1, %v2602
        %v2604 = vrot.slane %v2596, %v2603
        %v2605 = vlaneseq
        %v2606 = vshrl.u32 %v2605, 7
        %v2607 = vsub.s32 2, %v2606
        %v2608 = vrot.slane %v2596, %v2607
        %v2609 = vlaneseq
        %v2610 = vshrl.u32 %v2609, 7
        %v2611 = vsub.s32 3, %v2610
        %v2612 = vrot.slane %v2596, %v2611
        %vm2613 = vcmp.eq.s32.totalorder %v2600, 1
        %vm2614 = vcmp.eq.s32.totalorder %v2604, 1
        %vm2615 = vcmp.eq.s32.totalorder %v2608, 1
        %vm2616 = vcmp.eq.s32.totalorder %v2612, 1
        %vm2617 = vmpackc.low %vm2614, %vm2613
        %vm2618 = vmpackc.low %vm2616, %vm2615
        %v2619 = vsel %vm2617, 65537, 0
        %v2620 = vsel %vm2618, 65537, 0
        %v2621 = vlaneseq
        %v2622 = vshrl.u32 %v2621, 7
        %v2623 = vsub.s32 0, %v2622
        %v2624 = vrot.slane %v2619, %v2623
        %v2625 = vlaneseq
        %v2626 = vshrl.u32 %v2625, 7
        %v2627 = vsub.s32 4, %v2626
        %v2628 = vrot.slane %v2619, %v2627
        %v2629 = vlaneseq
        %v2630 = vshrl.u32 %v2629, 7
        %v2631 = vsub.s32 0, %v2630
        %v2632 = vrot.slane %v2620, %v2631
        %v2633 = vlaneseq
        %v2634 = vshrl.u32 %v2633, 7
        %v2635 = vsub.s32 4, %v2634
        %v2636 = vrot.slane %v2620, %v2635
        %2637 = vrot.lane.b32.xlu0 %v2624, 64
        %v2638 = vpop.permute.xlu0 %2637
        %2639 = vrot.lane.b32.xlu0 %v2628, 64
        %v2640 = vpop.permute.xlu0 %2639
        %2641 = vrot.lane.b32.xlu0 %v2632, 64
        %v2642 = vpop.permute.xlu0 %2641
        %2643 = vrot.lane.b32.xlu0 %v2636, 64
        %v2644 = vpop.permute.xlu0 %2643
        %v2645 = vsel %vm945, %v2638, %v2640
        %v2646 = vsel %vm945, %v2640, %v2642
        %v2647 = vsel %vm945, %v2642, %v2644
        %vm2648 = vcmp.ne.s16.totalorder %v2638, 0
        %vm2649 = vcmp.ne.s16.totalorder %v2645, 0
        %vm2650 = vcmp.ne.s16.totalorder %v2646, 0
        %vm2651 = vcmp.ne.s16.totalorder %v2647, 0
        %vm2652 = vcmp.ne.s16.totalorder %v2644, 0
        %v2653 = vsel %vm2648, %v2589, 0
        %v2654 = vsel %vm2649, %v2590, 0
        %v2655 = vsel %vm2650, %v2591, 0
        %v2656 = vsel %vm2651, %v2592, 0
        %v2657 = vsel %vm2652, %v2593, 0
        %2663 = vrot.lane.b32.xlu0 %v2653, 64
        %v2664 = vpop.permute.xlu0 %2663
        %2665 = vrot.lane.b32.xlu0 %v2654, 64
        %v2666 = vpop.permute.xlu0 %2665
        %2667 = vrot.lane.b32.xlu0 %v2655, 64
        %v2668 = vpop.permute.xlu0 %2667
        %2669 = vrot.lane.b32.xlu0 %v2656, 64
        %v2670 = vpop.permute.xlu0 %2669
        %2671 = vrot.lane.b32.xlu0 %v2657, 64
        %v2672 = vpop.permute.xlu0 %2671
        %v2673 = vsel %vm945, %v2664, %v2666
        %v2674 = vsel %vm945, %v2666, %v2668
        %v2675 = vsel %vm945, %v2668, %v2670
        %v2676 = vsel %vm945, %v2670, %v2672
        %2681 = vst [vmem:[#allocation3 + $0x2c0] sm:$0xff] %v2673
        %2682 = vst [vmem:[#allocation3 + $0x2c8] sm:$0xff] %v2674
        %2683 = vst [vmem:[#allocation3 + $0x2d0] sm:$0xff] %v2675
        %2684 = vst [vmem:[#allocation3 + $0x2d8] sm:$0xff] %v2676
        %v2685 = vld [vmem:[#allocation2 + $0x8] sm:$0xff]
        %v2686 = vld [vmem:[#allocation2 + $0x10] sm:$0xff]
        %v2687 = vld [vmem:[#allocation2 + $0x18] sm:$0xff]
        %v2688 = vld [vmem:[#allocation2 + $0x20] sm:$0xff]
        %v2689 = vld [vmem:[#allocation2 + $0x28] sm:$0xff]
        %v2690 = vand.u32 %v496, 8388608
        %vm2691 = vcmp.ne.s32.totalorder %v2690, 0
        %v2692 = vsel %vm2691, 1, 0
        %v2693 = vlaneseq
        %v2694 = vshrl.u32 %v2693, 7
        %v2695 = vsub.s32 0, %v2694
        %v2696 = vrot.slane %v2692, %v2695
        %v2697 = vlaneseq
        %v2698 = vshrl.u32 %v2697, 7
        %v2699 = vsub.s32 1, %v2698
        %v2700 = vrot.slane %v2692, %v2699
        %v2701 = vlaneseq
        %v2702 = vshrl.u32 %v2701, 7
        %v2703 = vsub.s32 2, %v2702
        %v2704 = vrot.slane %v2692, %v2703
        %v2705 = vlaneseq
        %v2706 = vshrl.u32 %v2705, 7
        %v2707 = vsub.s32 3, %v2706
        %v2708 = vrot.slane %v2692, %v2707
        %vm2709 = vcmp.eq.s32.totalorder %v2696, 1
        %vm2710 = vcmp.eq.s32.totalorder %v2700, 1
        %vm2711 = vcmp.eq.s32.totalorder %v2704, 1
        %vm2712 = vcmp.eq.s32.totalorder %v2708, 1
        %vm2713 = vmpackc.low %vm2710, %vm2709
        %vm2714 = vmpackc.low %vm2712, %vm2711
        %v2715 = vsel %vm2713, 65537, 0
        %v2716 = vsel %vm2714, 65537, 0
        %v2717 = vlaneseq
        %v2718 = vshrl.u32 %v2717, 7
        %v2719 = vsub.s32 0, %v2718
        %v2720 = vrot.slane %v2715, %v2719
        %v2721 = vlaneseq
        %v2722 = vshrl.u32 %v2721, 7
        %v2723 = vsub.s32 4, %v2722
        %v2724 = vrot.slane %v2715, %v2723
        %v2725 = vlaneseq
        %v2726 = vshrl.u32 %v2725, 7
        %v2727 = vsub.s32 0, %v2726
        %v2728 = vrot.slane %v2716, %v2727
        %v2729 = vlaneseq
        %v2730 = vshrl.u32 %v2729, 7
        %v2731 = vsub.s32 4, %v2730
        %v2732 = vrot.slane %v2716, %v2731
        %2733 = vrot.lane.b32.xlu0 %v2720, 65
        %v2734 = vpop.permute.xlu0 %2733
        %2735 = vrot.lane.b32.xlu0 %v2724, 65
        %v2736 = vpop.permute.xlu0 %2735
        %2737 = vrot.lane.b32.xlu0 %v2728, 65
        %v2738 = vpop.permute.xlu0 %2737
        %2739 = vrot.lane.b32.xlu0 %v2732, 65
        %v2740 = vpop.permute.xlu0 %2739
        %v2741 = vsel %vm876, %v2734, %v2736
        %v2742 = vsel %vm876, %v2736, %v2738
        %v2743 = vsel %vm876, %v2738, %v2740
        %vm2744 = vcmp.ne.s16.totalorder %v2734, 0
        %vm2745 = vcmp.ne.s16.totalorder %v2741, 0
        %vm2746 = vcmp.ne.s16.totalorder %v2742, 0
        %vm2747 = vcmp.ne.s16.totalorder %v2743, 0
        %vm2748 = vcmp.ne.s16.totalorder %v2740, 0
        %v2749 = vsel %vm2744, %v2685, 0
        %v2750 = vsel %vm2745, %v2686, 0
        %v2751 = vsel %vm2746, %v2687, 0
        %v2752 = vsel %vm2747, %v2688, 0
        %v2753 = vsel %vm2748, %v2689, 0
        %2759 = vrot.lane.b32.xlu0 %v2749, 63
        %v2760 = vpop.permute.xlu0 %2759
        %2761 = vrot.lane.b32.xlu0 %v2750, 63
        %v2762 = vpop.permute.xlu0 %2761
        %2763 = vrot.lane.b32.xlu0 %v2751, 63
        %v2764 = vpop.permute.xlu0 %2763
        %2765 = vrot.lane.b32.xlu0 %v2752, 63
        %v2766 = vpop.permute.xlu0 %2765
        %2767 = vrot.lane.b32.xlu0 %v2753, 63
        %v2768 = vpop.permute.xlu0 %2767
        %v2769 = vsel %vm847, %v2760, %v2762
        %v2770 = vsel %vm847, %v2762, %v2764
        %v2771 = vsel %vm847, %v2764, %v2766
        %v2772 = vsel %vm847, %v2766, %v2768
        %2777 = vst [vmem:[#allocation3 + $0x2e0] sm:$0xff] %v2769
        %2778 = vst [vmem:[#allocation3 + $0x2e8] sm:$0xff] %v2770
        %2779 = vst [vmem:[#allocation3 + $0x2f0] sm:$0xff] %v2771
        %2780 = vst [vmem:[#allocation3 + $0x2f8] sm:$0xff] %v2772
        %v2781 = vld [vmem:[#allocation2 + $0x8] sm:$0xff]
        %v2782 = vld [vmem:[#allocation2 + $0x10] sm:$0xff]
        %v2783 = vld [vmem:[#allocation2 + $0x18] sm:$0xff]
        %v2784 = vld [vmem:[#allocation2 + $0x20] sm:$0xff]
        %v2785 = vld [vmem:[#allocation2 + $0x28] sm:$0xff]
        %v2786 = vand.u32 %v496, 16777216
        %vm2787 = vcmp.ne.s32.totalorder %v2786, 0
        %v2788 = vsel %vm2787, 1, 0
        %v2789 = vlaneseq
        %v2790 = vshrl.u32 %v2789, 7
        %v2791 = vsub.s32 0, %v2790
        %v2792 = vrot.slane %v2788, %v2791
        %v2793 = vlaneseq
        %v2794 = vshrl.u32 %v2793, 7
        %v2795 = vsub.s32 1, %v2794
        %v2796 = vrot.slane %v2788, %v2795
        %v2797 = vlaneseq
        %v2798 = vshrl.u32 %v2797, 7
        %v2799 = vsub.s32 2, %v2798
        %v2800 = vrot.slane %v2788, %v2799
        %v2801 = vlaneseq
        %v2802 = vshrl.u32 %v2801, 7
        %v2803 = vsub.s32 3, %v2802
        %v2804 = vrot.slane %v2788, %v2803
        %vm2805 = vcmp.eq.s32.totalorder %v2792, 1
        %vm2806 = vcmp.eq.s32.totalorder %v2796, 1
        %vm2807 = vcmp.eq.s32.totalorder %v2800, 1
        %vm2808 = vcmp.eq.s32.totalorder %v2804, 1
        %vm2809 = vmpackc.low %vm2806, %vm2805
        %vm2810 = vmpackc.low %vm2808, %vm2807
        %v2811 = vsel %vm2809, 65537, 0
        %v2812 = vsel %vm2810, 65537, 0
        %v2813 = vlaneseq
        %v2814 = vshrl.u32 %v2813, 7
        %v2815 = vsub.s32 0, %v2814
        %v2816 = vrot.slane %v2811, %v2815
        %v2817 = vlaneseq
        %v2818 = vshrl.u32 %v2817, 7
        %v2819 = vsub.s32 4, %v2818
        %v2820 = vrot.slane %v2811, %v2819
        %v2821 = vlaneseq
        %v2822 = vshrl.u32 %v2821, 7
        %v2823 = vsub.s32 0, %v2822
        %v2824 = vrot.slane %v2812, %v2823
        %v2825 = vlaneseq
        %v2826 = vshrl.u32 %v2825, 7
        %v2827 = vsub.s32 4, %v2826
        %v2828 = vrot.slane %v2812, %v2827
        %2829 = vrot.lane.b32.xlu0 %v2816, 71
        %v2830 = vpop.permute.xlu0 %2829
        %2831 = vrot.lane.b32.xlu0 %v2820, 71
        %v2832 = vpop.permute.xlu0 %2831
        %2833 = vrot.lane.b32.xlu0 %v2824, 71
        %v2834 = vpop.permute.xlu0 %2833
        %2835 = vrot.lane.b32.xlu0 %v2828, 71
        %v2836 = vpop.permute.xlu0 %2835
        %v2837 = vsel %vm778, %v2830, %v2832
        %v2838 = vsel %vm778, %v2832, %v2834
        %v2839 = vsel %vm778, %v2834, %v2836
        %vm2840 = vcmp.ne.s16.totalorder %v2830, 0
        %vm2841 = vcmp.ne.s16.totalorder %v2837, 0
        %vm2842 = vcmp.ne.s16.totalorder %v2838, 0
        %vm2843 = vcmp.ne.s16.totalorder %v2839, 0
        %vm2844 = vcmp.ne.s16.totalorder %v2836, 0
        %v2845 = vsel %vm2840, %v2781, 0
        %v2846 = vsel %vm2841, %v2782, 0
        %v2847 = vsel %vm2842, %v2783, 0
        %v2848 = vsel %vm2843, %v2784, 0
        %v2849 = vsel %vm2844, %v2785, 0
        %2855 = vrot.lane.b32.xlu0 %v2845, 57
        %v2856 = vpop.permute.xlu0 %2855
        %2857 = vrot.lane.b32.xlu0 %v2846, 57
        %v2858 = vpop.permute.xlu0 %2857
        %2859 = vrot.lane.b32.xlu0 %v2847, 57
        %v2860 = vpop.permute.xlu0 %2859
        %2861 = vrot.lane.b32.xlu0 %v2848, 57
        %v2862 = vpop.permute.xlu0 %2861
        %2863 = vrot.lane.b32.xlu0 %v2849, 57
        %v2864 = vpop.permute.xlu0 %2863
        %v2865 = vsel %vm749, %v2856, %v2858
        %v2866 = vsel %vm749, %v2858, %v2860
        %v2867 = vsel %vm749, %v2860, %v2862
        %v2868 = vsel %vm749, %v2862, %v2864
        %2873 = vst [vmem:[#allocation3 + $0x300] sm:$0xff] %v2865
        %2874 = vst [vmem:[#allocation3 + $0x308] sm:$0xff] %v2866
        %2875 = vst [vmem:[#allocation3 + $0x310] sm:$0xff] %v2867
        %2876 = vst [vmem:[#allocation3 + $0x318] sm:$0xff] %v2868
        %v2877 = vld [vmem:[#allocation2 + $0x8] sm:$0xff]
        %v2878 = vld [vmem:[#allocation2 + $0x10] sm:$0xff]
        %v2879 = vld [vmem:[#allocation2 + $0x18] sm:$0xff]
        %v2880 = vld [vmem:[#allocation2 + $0x20] sm:$0xff]
        %v2881 = vld [vmem:[#allocation2 + $0x28] sm:$0xff]
        %v2882 = vand.u32 %v496, 33554432
        %vm2883 = vcmp.ne.s32.totalorder %v2882, 0
        %v2884 = vsel %vm2883, 1, 0
        %v2885 = vlaneseq
        %v2886 = vshrl.u32 %v2885, 7
        %v2887 = vsub.s32 0, %v2886
        %v2888 = vrot.slane %v2884, %v2887
        %v2889 = vlaneseq
        %v2890 = vshrl.u32 %v2889, 7
        %v2891 = vsub.s32 1, %v2890
        %v2892 = vrot.slane %v2884, %v2891
        %v2893 = vlaneseq
        %v2894 = vshrl.u32 %v2893, 7
        %v2895 = vsub.s32 2, %v2894
        %v2896 = vrot.slane %v2884, %v2895
        %v2897 = vlaneseq
        %v2898 = vshrl.u32 %v2897, 7
        %v2899 = vsub.s32 3, %v2898
        %v2900 = vrot.slane %v2884, %v2899
        %vm2901 = vcmp.eq.s32.totalorder %v2888, 1
        %vm2902 = vcmp.eq.s32.totalorder %v2892, 1
        %vm2903 = vcmp.eq.s32.totalorder %v2896, 1
        %vm2904 = vcmp.eq.s32.totalorder %v2900, 1
        %vm2905 = vmpackc.low %vm2902, %vm2901
        %vm2906 = vmpackc.low %vm2904, %vm2903
        %v2907 = vsel %vm2905, 65537, 0
        %v2908 = vsel %vm2906, 65537, 0
        %v2909 = vlaneseq
        %v2910 = vshrl.u32 %v2909, 7
        %v2911 = vsub.s32 0, %v2910
        %v2912 = vrot.slane %v2907, %v2911
        %v2913 = vlaneseq
        %v2914 = vshrl.u32 %v2913, 7
        %v2915 = vsub.s32 4, %v2914
        %v2916 = vrot.slane %v2907, %v2915
        %v2917 = vlaneseq
        %v2918 = vshrl.u32 %v2917, 7
        %v2919 = vsub.s32 0, %v2918
        %v2920 = vrot.slane %v2908, %v2919
        %v2921 = vlaneseq
        %v2922 = vshrl.u32 %v2921, 7
        %v2923 = vsub.s32 4, %v2922
        %v2924 = vrot.slane %v2908, %v2923
        %2925 = vrot.lane.b32.xlu0 %v2912, 72
        %v2926 = vpop.permute.xlu0 %2925
        %2927 = vrot.lane.b32.xlu0 %v2916, 72
        %v2928 = vpop.permute.xlu0 %2927
        %2929 = vrot.lane.b32.xlu0 %v2920, 72
        %v2930 = vpop.permute.xlu0 %2929
        %2931 = vrot.lane.b32.xlu0 %v2924, 72
        %v2932 = vpop.permute.xlu0 %2931
        %v2933 = vsel %vm680, %v2926, %v2928
        %v2934 = vsel %vm680, %v2928, %v2930
        %v2935 = vsel %vm680, %v2930, %v2932
        %vm2936 = vcmp.ne.s16.totalorder %v2926, 0
        %vm2937 = vcmp.ne.s16.totalorder %v2933, 0
        %vm2938 = vcmp.ne.s16.totalorder %v2934, 0
        %vm2939 = vcmp.ne.s16.totalorder %v2935, 0
        %vm2940 = vcmp.ne.s16.totalorder %v2932, 0
        %v2941 = vsel %vm2936, %v2877, 0
        %v2942 = vsel %vm2937, %v2878, 0
        %v2943 = vsel %vm2938, %v2879, 0
        %v2944 = vsel %vm2939, %v2880, 0
        %v2945 = vsel %vm2940, %v2881, 0
        %2951 = vrot.lane.b32.xlu0 %v2941, 56
        %v2952 = vpop.permute.xlu0 %2951
        %2953 = vrot.lane.b32.xlu0 %v2942, 56
        %v2954 = vpop.permute.xlu0 %2953
        %2955 = vrot.lane.b32.xlu0 %v2943, 56
        %v2956 = vpop.permute.xlu0 %2955
        %2957 = vrot.lane.b32.xlu0 %v2944, 56
        %v2958 = vpop.permute.xlu0 %2957
        %2959 = vrot.lane.b32.xlu0 %v2945, 56
        %v2960 = vpop.permute.xlu0 %2959
        %v2961 = vsel %vm651, %v2952, %v2954
        %v2962 = vsel %vm651, %v2954, %v2956
        %v2963 = vsel %vm651, %v2956, %v2958
        %v2964 = vsel %vm651, %v2958, %v2960
        %2969 = vst [vmem:[#allocation3 + $0x320] sm:$0xff] %v2961
        %2970 = vst [vmem:[#allocation3 + $0x328] sm:$0xff] %v2962
        %2971 = vst [vmem:[#allocation3 + $0x330] sm:$0xff] %v2963
        %2972 = vst [vmem:[#allocation3 + $0x338] sm:$0xff] %v2964
        %v2973 = vld [vmem:[#allocation2 + $0x8] sm:$0xff]
        %v2974 = vld [vmem:[#allocation2 + $0x10] sm:$0xff]
        %v2975 = vld [vmem:[#allocation2 + $0x18] sm:$0xff]
        %v2976 = vld [vmem:[#allocation2 + $0x20] sm:$0xff]
        %v2977 = vld [vmem:[#allocation2 + $0x28] sm:$0xff]
        %v2978 = vand.u32 %v496, 67108864
        %vm2979 = vcmp.ne.s32.totalorder %v2978, 0
        %v2980 = vsel %vm2979, 1, 0
        %v2981 = vlaneseq
        %v2982 = vshrl.u32 %v2981, 7
        %v2983 = vsub.s32 0, %v2982
        %v2984 = vrot.slane %v2980, %v2983
        %v2985 = vlaneseq
        %v2986 = vshrl.u32 %v2985, 7
        %v2987 = vsub.s32 1, %v2986
        %v2988 = vrot.slane %v2980, %v2987
        %v2989 = vlaneseq
        %v2990 = vshrl.u32 %v2989, 7
        %v2991 = vsub.s32 2, %v2990
        %v2992 = vrot.slane %v2980, %v2991
        %v2993 = vlaneseq
        %v2994 = vshrl.u32 %v2993, 7
        %v2995 = vsub.s32 3, %v2994
        %v2996 = vrot.slane %v2980, %v2995
        %vm2997 = vcmp.eq.s32.totalorder %v2984, 1
        %vm2998 = vcmp.eq.s32.totalorder %v2988, 1
        %vm2999 = vcmp.eq.s32.totalorder %v2992, 1
        %vm3000 = vcmp.eq.s32.totalorder %v2996, 1
        %vm3001 = vmpackc.low %vm2998, %vm2997
        %vm3002 = vmpackc.low %vm3000, %vm2999
        %v3003 = vsel %vm3001, 65537, 0
        %v3004 = vsel %vm3002, 65537, 0
        %v3005 = vlaneseq
        %v3006 = vshrl.u32 %v3005, 7
        %v3007 = vsub.s32 0, %v3006
        %v3008 = vrot.slane %v3003, %v3007
        %v3009 = vlaneseq
        %v3010 = vshrl.u32 %v3009, 7
        %v3011 = vsub.s32 4, %v3010
        %v3012 = vrot.slane %v3003, %v3011
        %v3013 = vlaneseq
        %v3014 = vshrl.u32 %v3013, 7
        %v3015 = vsub.s32 0, %v3014
        %v3016 = vrot.slane %v3004, %v3015
        %v3017 = vlaneseq
        %v3018 = vshrl.u32 %v3017, 7
        %v3019 = vsub.s32 4, %v3018
        %v3020 = vrot.slane %v3004, %v3019
        %3021 = vrot.lane.b32.xlu0 %v3008, 73
        %v3022 = vpop.permute.xlu0 %3021
        %3023 = vrot.lane.b32.xlu0 %v3012, 73
        %v3024 = vpop.permute.xlu0 %3023
        %3025 = vrot.lane.b32.xlu0 %v3016, 73
        %v3026 = vpop.permute.xlu0 %3025
        %3027 = vrot.lane.b32.xlu0 %v3020, 73
        %v3028 = vpop.permute.xlu0 %3027
        %v3029 = vsel %vm582, %v3022, %v3024
        %v3030 = vsel %vm582, %v3024, %v3026
        %v3031 = vsel %vm582, %v3026, %v3028
        %vm3032 = vcmp.ne.s16.totalorder %v3022, 0
        %vm3033 = vcmp.ne.s16.totalorder %v3029, 0
        %vm3034 = vcmp.ne.s16.totalorder %v3030, 0
        %vm3035 = vcmp.ne.s16.totalorder %v3031, 0
        %vm3036 = vcmp.ne.s16.totalorder %v3028, 0
        %v3037 = vsel %vm3032, %v2973, 0
        %v3038 = vsel %vm3033, %v2974, 0
        %v3039 = vsel %vm3034, %v2975, 0
        %v3040 = vsel %vm3035, %v2976, 0
        %v3041 = vsel %vm3036, %v2977, 0
        %3047 = vrot.lane.b32.xlu0 %v3037, 55
        %v3048 = vpop.permute.xlu0 %3047
        %3049 = vrot.lane.b32.xlu0 %v3038, 55
        %v3050 = vpop.permute.xlu0 %3049
        %3051 = vrot.lane.b32.xlu0 %v3039, 55
        %v3052 = vpop.permute.xlu0 %3051
        %3053 = vrot.lane.b32.xlu0 %v3040, 55
        %v3054 = vpop.permute.xlu0 %3053
        %3055 = vrot.lane.b32.xlu0 %v3041, 55
        %v3056 = vpop.permute.xlu0 %3055
        %v3057 = vsel %vm553, %v3048, %v3050
        %v3058 = vsel %vm553, %v3050, %v3052
        %v3059 = vsel %vm553, %v3052, %v3054
        %v3060 = vsel %vm553, %v3054, %v3056
        %3065 = vst [vmem:[#allocation3 + $0x340] sm:$0xff] %v3057
        %3066 = vst [vmem:[#allocation3 + $0x348] sm:$0xff] %v3058
        %3067 = vst [vmem:[#allocation3 + $0x350] sm:$0xff] %v3059
        %3068 = vst [vmem:[#allocation3 + $0x358] sm:$0xff] %v3060
        %v3069 = vld [vmem:[%s4] sm:$0xff]
        %v3070 = vld [vmem:[%s4 + $0x8] sm:$0xff]
        %v3071 = vld [vmem:[#allocation3] sm:$0xff]
        %v3072 = vld [vmem:[#allocation3 + $0x8] sm:$0xff]
        %v3073 = vld [vmem:[#allocation3 + $0x10] sm:$0xff]
        %v3074 = vld [vmem:[#allocation3 + $0x18] sm:$0xff]
        %v3075 = vld [vmem:[#allocation3 + $0x20] sm:$0xff]
        %v3076 = vld [vmem:[#allocation3 + $0x28] sm:$0xff]
        %v3077 = vld [vmem:[#allocation3 + $0x30] sm:$0xff]
        %v3078 = vld [vmem:[#allocation3 + $0x38] sm:$0xff]
        %v3079 = vld [vmem:[#allocation3 + $0x40] sm:$0xff]
        %v3080 = vld [vmem:[#allocation3 + $0x48] sm:$0xff]
        %v3081 = vld [vmem:[#allocation3 + $0x50] sm:$0xff]
        %v3082 = vld [vmem:[#allocation3 + $0x58] sm:$0xff]
        %v3083 = vld [vmem:[#allocation3 + $0x60] sm:$0xff]
        %v3084 = vld [vmem:[#allocation3 + $0x68] sm:$0xff]
        %v3085 = vld [vmem:[#allocation3 + $0x70] sm:$0xff]
        %v3086 = vld [vmem:[#allocation3 + $0x78] sm:$0xff]
        %v3087 = vld [vmem:[#allocation3 + $0x80] sm:$0xff]
        %v3088 = vld [vmem:[#allocation3 + $0x88] sm:$0xff]
        %v3089 = vld [vmem:[#allocation3 + $0x90] sm:$0xff]
        %v3090 = vld [vmem:[#allocation3 + $0x98] sm:$0xff]
        %v3091 = vld [vmem:[#allocation3 + $0xa0] sm:$0xff]
        %v3092 = vld [vmem:[#allocation3 + $0xa8] sm:$0xff]
        %v3093 = vld [vmem:[#allocation3 + $0xb0] sm:$0xff]
        %v3094 = vld [vmem:[#allocation3 + $0xb8] sm:$0xff]
        %v3095 = vld [vmem:[#allocation3 + $0xc0] sm:$0xff]
        %v3096 = vld [vmem:[#allocation3 + $0xc8] sm:$0xff]
        %v3097 = vld [vmem:[#allocation3 + $0xd0] sm:$0xff]
        %v3098 = vld [vmem:[#allocation3 + $0xd8] sm:$0xff]
        %v3099 = vld [vmem:[#allocation3 + $0xe0] sm:$0xff]
        %v3100 = vld [vmem:[#allocation3 + $0xe8] sm:$0xff]
        %v3101 = vld [vmem:[#allocation3 + $0xf0] sm:$0xff]
        %v3102 = vld [vmem:[#allocation3 + $0xf8] sm:$0xff]
        %v3103 = vld [vmem:[#allocation3 + $0x100] sm:$0xff]
        %v3104 = vld [vmem:[#allocation3 + $0x108] sm:$0xff]
        %v3105 = vld [vmem:[#allocation3 + $0x110] sm:$0xff]
        %v3106 = vld [vmem:[#allocation3 + $0x118] sm:$0xff]
        %v3107 = vld [vmem:[#allocation3 + $0x120] sm:$0xff]
        %v3108 = vld [vmem:[#allocation3 + $0x128] sm:$0xff]
        %v3109 = vld [vmem:[#allocation3 + $0x130] sm:$0xff]
        %v3110 = vld [vmem:[#allocation3 + $0x138] sm:$0xff]
        %v3111 = vld [vmem:[#allocation3 + $0x140] sm:$0xff]
        %v3112 = vld [vmem:[#allocation3 + $0x148] sm:$0xff]
        %v3113 = vld [vmem:[#allocation3 + $0x150] sm:$0xff]
        %v3114 = vld [vmem:[#allocation3 + $0x158] sm:$0xff]
        %v3115 = vld [vmem:[#allocation3 + $0x160] sm:$0xff]
        %v3116 = vld [vmem:[#allocation3 + $0x168] sm:$0xff]
        %v3117 = vld [vmem:[#allocation3 + $0x170] sm:$0xff]
        %v3118 = vld [vmem:[#allocation3 + $0x178] sm:$0xff]
        %v3119 = vld [vmem:[#allocation3 + $0x180] sm:$0xff]
        %v3120 = vld [vmem:[#allocation3 + $0x188] sm:$0xff]
        %v3121 = vld [vmem:[#allocation3 + $0x190] sm:$0xff]
        %v3122 = vld [vmem:[#allocation3 + $0x198] sm:$0xff]
        %v3123 = vld [vmem:[#allocation3 + $0x1a0] sm:$0xff]
        %v3124 = vld [vmem:[#allocation3 + $0x1a8] sm:$0xff]
        %v3125 = vld [vmem:[#allocation3 + $0x1b0] sm:$0xff]
        %v3126 = vld [vmem:[#allocation3 + $0x1b8] sm:$0xff]
        %v3127 = vld [vmem:[#allocation3 + $0x1c0] sm:$0xff]
        %v3128 = vld [vmem:[#allocation3 + $0x1c8] sm:$0xff]
        %v3129 = vld [vmem:[#allocation3 + $0x1d0] sm:$0xff]
        %v3130 = vld [vmem:[#allocation3 + $0x1d8] sm:$0xff]
        %v3131 = vld [vmem:[#allocation3 + $0x1e0] sm:$0xff]
        %v3132 = vld [vmem:[#allocation3 + $0x1e8] sm:$0xff]
        %v3133 = vld [vmem:[#allocation3 + $0x1f0] sm:$0xff]
        %v3134 = vld [vmem:[#allocation3 + $0x1f8] sm:$0xff]
        %v3135 = vld [vmem:[#allocation3 + $0x200] sm:$0xff]
        %v3136 = vld [vmem:[#allocation3 + $0x208] sm:$0xff]
        %v3137 = vld [vmem:[#allocation3 + $0x210] sm:$0xff]
        %v3138 = vld [vmem:[#allocation3 + $0x218] sm:$0xff]
        %v3139 = vld [vmem:[#allocation3 + $0x220] sm:$0xff]
        %v3140 = vld [vmem:[#allocation3 + $0x228] sm:$0xff]
        %v3141 = vld [vmem:[#allocation3 + $0x230] sm:$0xff]
        %v3142 = vld [vmem:[#allocation3 + $0x238] sm:$0xff]
        %v3143 = vld [vmem:[#allocation3 + $0x240] sm:$0xff]
        %v3144 = vld [vmem:[#allocation3 + $0x248] sm:$0xff]
        %v3145 = vld [vmem:[#allocation3 + $0x250] sm:$0xff]
        %v3146 = vld [vmem:[#allocation3 + $0x258] sm:$0xff]
        %v3147 = vld [vmem:[#allocation3 + $0x260] sm:$0xff]
        %v3148 = vld [vmem:[#allocation3 + $0x268] sm:$0xff]
        %v3149 = vld [vmem:[#allocation3 + $0x270] sm:$0xff]
        %v3150 = vld [vmem:[#allocation3 + $0x278] sm:$0xff]
        %v3151 = vld [vmem:[#allocation3 + $0x280] sm:$0xff]
        %v3152 = vld [vmem:[#allocation3 + $0x288] sm:$0xff]
        %v3153 = vld [vmem:[#allocation3 + $0x290] sm:$0xff]
        %v3154 = vld [vmem:[#allocation3 + $0x298] sm:$0xff]
        %v3155 = vld [vmem:[#allocation3 + $0x2a0] sm:$0xff]
        %v3156 = vld [vmem:[#allocation3 + $0x2a8] sm:$0xff]
        %v3157 = vld [vmem:[#allocation3 + $0x2b0] sm:$0xff]
        %v3158 = vld [vmem:[#allocation3 + $0x2b8] sm:$0xff]
        %v3159 = vld [vmem:[#allocation3 + $0x2c0] sm:$0xff]
        %v3160 = vld [vmem:[#allocation3 + $0x2c8] sm:$0xff]
        %v3161 = vld [vmem:[#allocation3 + $0x2d0] sm:$0xff]
        %v3162 = vld [vmem:[#allocation3 + $0x2d8] sm:$0xff]
        %v3163 = vld [vmem:[#allocation3 + $0x2e0] sm:$0xff]
        %v3164 = vld [vmem:[#allocation3 + $0x2e8] sm:$0xff]
        %v3165 = vld [vmem:[#allocation3 + $0x2f0] sm:$0xff]
        %v3166 = vld [vmem:[#allocation3 + $0x2f8] sm:$0xff]
        %v3167 = vld [vmem:[#allocation3 + $0x300] sm:$0xff]
        %v3168 = vld [vmem:[#allocation3 + $0x308] sm:$0xff]
        %v3169 = vld [vmem:[#allocation3 + $0x310] sm:$0xff]
        %v3170 = vld [vmem:[#allocation3 + $0x318] sm:$0xff]
        %v3171 = vld [vmem:[#allocation3 + $0x320] sm:$0xff]
        %v3172 = vld [vmem:[#allocation3 + $0x328] sm:$0xff]
        %v3173 = vld [vmem:[#allocation3 + $0x330] sm:$0xff]
        %v3174 = vld [vmem:[#allocation3 + $0x338] sm:$0xff]
        %v3175 = vld [vmem:[#allocation3 + $0x340] sm:$0xff]
        %v3176 = vld [vmem:[#allocation3 + $0x348] sm:$0xff]
        %v3177 = vld [vmem:[#allocation3 + $0x350] sm:$0xff]
        %v3178 = vld [vmem:[#allocation3 + $0x358] sm:$0xff]
        %v3179 = vld [vmem:[#allocation3 + $0x360] sm:$0xff]
        %v3180 = vld [vmem:[#allocation3 + $0x368] sm:$0xff]
        %v3181 = vld [vmem:[#allocation3 + $0x370] sm:$0xff]
        %v3182 = vld [vmem:[#allocation3 + $0x378] sm:$0xff]
        %v3183 = vld [vmem:[#allocation3 + $0x380] sm:$0xff]
        %v3184 = vld [vmem:[#allocation3 + $0x388] sm:$0xff]
        %v3185 = vld [vmem:[#allocation3 + $0x390] sm:$0xff]
        %v3186 = vld [vmem:[#allocation3 + $0x398] sm:$0xff]
        %v3187 = vld [vmem:[#allocation3 + $0x3a0] sm:$0xff]
        %v3188 = vld [vmem:[#allocation3 + $0x3a8] sm:$0xff]
        %v3189 = vld [vmem:[#allocation3 + $0x3b0] sm:$0xff]
        %v3190 = vld [vmem:[#allocation3 + $0x3b8] sm:$0xff]
        %v3191 = vld [vmem:[#allocation3 + $0x3c0] sm:$0xff]
        %v3192 = vld [vmem:[#allocation3 + $0x3c8] sm:$0xff]
        %v3193 = vld [vmem:[#allocation3 + $0x3d0] sm:$0xff]
        %v3194 = vld [vmem:[#allocation3 + $0x3d8] sm:$0xff]
        %v3195 = vld [vmem:[#allocation3 + $0x3e0] sm:$0xff]
        %v3196 = vld [vmem:[#allocation3 + $0x3e8] sm:$0xff]
        %v3197 = vld [vmem:[#allocation3 + $0x3f0] sm:$0xff]
        %v3198 = vld [vmem:[#allocation3 + $0x3f8] sm:$0xff]
        %v3199 = vld [vmem:[%s5] sm:$0xff]
        %3201 = vset.pattern.permute.xlu0 0
        %3202 = vperm.xlu0 %3201, %v3199
        %v3203 = vpop.permute.xlu0 %3202
        %v3207 = vunpack.c.l.b16 %v3069
        %v3208 = vunpack.c.h.b16 %v3069
        %v3209 = vunpack.c.l.b16 %v3070
        %v3210 = vunpack.c.h.b16 %v3070
        %v3211 = vpack.c.b16 %v3207, %v3207
        %v3212 = vpack.c.b16 %v3208, %v3208
        %v3213 = vpack.c.b16 %v3209, %v3209
        %v3214 = vpack.c.b16 %v3210, %v3210
        %3219 = vmatprep.subr.bf16.mxu0 %v3072
        %3220 = vmatpush1.bf16.msra.mxu0 %v3071
        %3221 = vmatprep.subr.bf16.mxu0 %v3076
        %3222 = vmatpush1.bf16.msra.mxu0 %v3075
        %3223 = vmatprep.subr.bf16.mxu0 %v3080
        %3224 = vmatpush1.bf16.msra.mxu0 %v3079
        %3225 = vmatprep.subr.bf16.mxu0 %v3084
        %3226 = vmatpush1.bf16.msra.mxu0 %v3083
        %3227 = vmatprep.subr.bf16.mxu0 %v3088
        %3228 = vmatpush1.bf16.msra.mxu0 %v3087
        %3229 = vmatprep.subr.bf16.mxu0 %v3092
        %3230 = vmatpush1.bf16.msra.mxu0 %v3091
        %3231 = vmatprep.subr.bf16.mxu0 %v3096
        %3232 = vmatpush1.bf16.msra.mxu0 %v3095
        %3233 = vmatprep.subr.bf16.mxu0 %v3100
        %3234 = vmatpush1.bf16.msra.mxu0 %v3099
        %3235 = vmatprep.subr.bf16.mxu0 %v3104
        %3236 = vmatpush1.bf16.msra.mxu0 %v3103
        %3237 = vmatprep.subr.bf16.mxu0 %v3108
        %3238 = vmatpush1.bf16.msra.mxu0 %v3107
        %3239 = vmatprep.subr.bf16.mxu0 %v3112
        %3240 = vmatpush1.bf16.msra.mxu0 %v3111
        %3241 = vmatprep.subr.bf16.mxu0 %v3116
        %3242 = vmatpush1.bf16.msra.mxu0 %v3115
        %3243 = vmatprep.subr.bf16.mxu0 %v3120
        %3244 = vmatpush1.bf16.msra.mxu0 %v3119
        %3245 = vmatprep.subr.bf16.mxu0 %v3124
        %3246 = vmatpush1.bf16.msra.mxu0 %v3123
        %3247 = vmatprep.subr.bf16.mxu0 %v3128
        %3248 = vmatpush1.bf16.msra.mxu0 %v3127
        %3249 = vmatprep.subr.bf16.mxu0 %v3132
        %3250 = vmatpush1.bf16.msra.mxu0 %v3131
        %3251 = vmatprep.mubr.bf16.mxu0 %v3212
        %3252 = vmatmul.mubr.bf16.gmra.mrb[0].mxu0 %v3211
        %v3253 = vpop.f32.mrb[0].mxu0
        %v3254 = vadd.f32 %v3203, %v3253
        %v3255 = vpop.f32.mrb[0].mxu0
        %v3256 = vadd.f32 %v3203, %v3255
        %v3257 = vpop.f32.mrb[0].mxu0
        %v3258 = vpop.f32.mrb[0].mxu0
        %3259 = vdwg.mxu0
        %3260 = vmatprep.subr.bf16.mxu0 %v3136
        %3261 = vmatpush1.bf16.msra.mxu0 %v3135
        %3262 = vmatprep.subr.bf16.mxu0 %v3140
        %3263 = vmatpush1.bf16.msra.mxu0 %v3139
        %3264 = vmatprep.subr.bf16.mxu0 %v3144
        %3265 = vmatpush1.bf16.msra.mxu0 %v3143
        %3266 = vmatprep.subr.bf16.mxu0 %v3148
        %3267 = vmatpush1.bf16.msra.mxu0 %v3147
        %3268 = vmatprep.subr.bf16.mxu0 %v3152
        %3269 = vmatpush1.bf16.msra.mxu0 %v3151
        %3270 = vmatprep.subr.bf16.mxu0 %v3156
        %3271 = vmatpush1.bf16.msra.mxu0 %v3155
        %3272 = vmatprep.subr.bf16.mxu0 %v3160
        %3273 = vmatpush1.bf16.msra.mxu0 %v3159
        %3274 = vmatprep.subr.bf16.mxu0 %v3164
        %3275 = vmatpush1.bf16.msra.mxu0 %v3163
        %3276 = vmatprep.subr.bf16.mxu0 %v3168
        %3277 = vmatpush1.bf16.msra.mxu0 %v3167
        %3278 = vmatprep.subr.bf16.mxu0 %v3172
        %3279 = vmatpush1.bf16.msra.mxu0 %v3171
        %3280 = vmatprep.subr.bf16.mxu0 %v3176
        %3281 = vmatpush1.bf16.msra.mxu0 %v3175
        %3282 = vmatprep.subr.bf16.mxu0 %v3180
        %3283 = vmatpush1.bf16.msra.mxu0 %v3179
        %3284 = vmatprep.subr.bf16.mxu0 %v3184
        %3285 = vmatpush1.bf16.msra.mxu0 %v3183
        %3286 = vmatprep.subr.bf16.mxu0 %v3188
        %3287 = vmatpush1.bf16.msra.mxu0 %v3187
        %3288 = vmatprep.subr.bf16.mxu0 %v3192
        %3289 = vmatpush1.bf16.msra.mxu0 %v3191
        %3290 = vmatprep.subr.bf16.mxu0 %v3196
        %3291 = vmatpush1.bf16.msra.mxu0 %v3195
        %3292 = vmatprep.mubr.bf16.mxu0 %v3214
        %3293 = vmatmul.mubr.bf16.gmra.mrb[0].mxu0 %v3213
        %v3294 = vpop.f32.mrb[0].mxu0
        %v3295 = vadd.f32 %v3254, %v3294
        %v3296 = vpop.f32.mrb[0].mxu0
        %v3297 = vadd.f32 %v3256, %v3296
        %v3298 = vpop.f32.mrb[0].mxu0
        %v3299 = vpop.f32.mrb[0].mxu0
        %3300 = vdwg.mxu0
        %3301 = vmatprep.subr.bf16.mxu0 %v3074
        %3302 = vmatpush1.bf16.msra.mxu0 %v3073
        %3303 = vmatprep.subr.bf16.mxu0 %v3078
        %3304 = vmatpush1.bf16.msra.mxu0 %v3077
        %3305 = vmatprep.subr.bf16.mxu0 %v3082
        %3306 = vmatpush1.bf16.msra.mxu0 %v3081
        %3307 = vmatprep.subr.bf16.mxu0 %v3086
        %3308 = vmatpush1.bf16.msra.mxu0 %v3085
        %3309 = vmatprep.subr.bf16.mxu0 %v3090
        %3310 = vmatpush1.bf16.msra.mxu0 %v3089
        %3311 = vmatprep.subr.bf16.mxu0 %v3094
        %3312 = vmatpush1.bf16.msra.mxu0 %v3093
        %3313 = vmatprep.subr.bf16.mxu0 %v3098
        %3314 = vmatpush1.bf16.msra.mxu0 %v3097
        %3315 = vmatprep.subr.bf16.mxu0 %v3102
        %3316 = vmatpush1.bf16.msra.mxu0 %v3101
        %3317 = vmatprep.subr.bf16.mxu0 %v3106
        %3318 = vmatpush1.bf16.msra.mxu0 %v3105
        %3319 = vmatprep.subr.bf16.mxu0 %v3110
        %3320 = vmatpush1.bf16.msra.mxu0 %v3109
        %3321 = vmatprep.subr.bf16.mxu0 %v3114
        %3322 = vmatpush1.bf16.msra.mxu0 %v3113
        %3323 = vmatprep.subr.bf16.mxu0 %v3118
        %3324 = vmatpush1.bf16.msra.mxu0 %v3117
        %3325 = vmatprep.subr.bf16.mxu0 %v3122
        %3326 = vmatpush1.bf16.msra.mxu0 %v3121
        %3327 = vmatprep.subr.bf16.mxu0 %v3126
        %3328 = vmatpush1.bf16.msra.mxu0 %v3125
        %3329 = vmatprep.subr.bf16.mxu0 %v3130
        %3330 = vmatpush1.bf16.msra.mxu0 %v3129
        %3331 = vmatprep.subr.bf16.mxu0 %v3134
        %3332 = vmatpush1.bf16.msra.mxu0 %v3133
        %3333 = vmatprep.mubr.bf16.mxu0 %v3212
        %3334 = vmatmul.mubr.bf16.gmra.mrb[0].mxu0 %v3211
        %v3335 = vpop.f32.mrb[0].mxu0
        %v3336 = vadd.f32 %v3203, %v3335
        %v3337 = vpop.f32.mrb[0].mxu0
        %v3338 = vadd.f32 %v3203, %v3337
        %v3339 = vpop.f32.mrb[0].mxu0
        %v3340 = vpop.f32.mrb[0].mxu0
        %3341 = vdwg.mxu0
        %3342 = vmatprep.subr.bf16.mxu0 %v3138
        %3343 = vmatpush1.bf16.msra.mxu0 %v3137
        %3344 = vmatprep.subr.bf16.mxu0 %v3142
        %3345 = vmatpush1.bf16.msra.mxu0 %v3141
        %3346 = vmatprep.subr.bf16.mxu0 %v3146
        %3347 = vmatpush1.bf16.msra.mxu0 %v3145
        %3348 = vmatprep.subr.bf16.mxu0 %v3150
        %3349 = vmatpush1.bf16.msra.mxu0 %v3149
        %3350 = vmatprep.subr.bf16.mxu0 %v3154
        %3351 = vmatpush1.bf16.msra.mxu0 %v3153
        %3352 = vmatprep.subr.bf16.mxu0 %v3158
        %3353 = vmatpush1.bf16.msra.mxu0 %v3157
        %3354 = vmatprep.subr.bf16.mxu0 %v3162
        %3355 = vmatpush1.bf16.msra.mxu0 %v3161
        %3356 = vmatprep.subr.bf16.mxu0 %v3166
        %3357 = vmatpush1.bf16.msra.mxu0 %v3165
        %3358 = vmatprep.subr.bf16.mxu0 %v3170
        %3359 = vmatpush1.bf16.msra.mxu0 %v3169
        %3360 = vmatprep.subr.bf16.mxu0 %v3174
        %3361 = vmatpush1.bf16.msra.mxu0 %v3173
        %3362 = vmatprep.subr.bf16.mxu0 %v3178
        %3363 = vmatpush1.bf16.msra.mxu0 %v3177
        %3364 = vmatprep.subr.bf16.mxu0 %v3182
        %3365 = vmatpush1.bf16.msra.mxu0 %v3181
        %3366 = vmatprep.subr.bf16.mxu0 %v3186
        %3367 = vmatpush1.bf16.msra.mxu0 %v3185
        %3368 = vmatprep.subr.bf16.mxu0 %v3190
        %3369 = vmatpush1.bf16.msra.mxu0 %v3189
        %3370 = vmatprep.subr.bf16.mxu0 %v3194
        %3371 = vmatpush1.bf16.msra.mxu0 %v3193
        %3372 = vmatprep.subr.bf16.mxu0 %v3198
        %3373 = vmatpush1.bf16.msra.mxu0 %v3197
        %3374 = vmatprep.mubr.bf16.mxu0 %v3214
        %3375 = vmatmul.mubr.bf16.gmra.mrb[0].mxu0 %v3213
        %v3376 = vpop.f32.mrb[0].mxu0
        %v3377 = vadd.f32 %v3336, %v3376
        %v3378 = vpop.f32.mrb[0].mxu0
        %v3379 = vadd.f32 %v3338, %v3378
        %v3380 = vpop.f32.mrb[0].mxu0
        %v3381 = vpop.f32.mrb[0].mxu0
        %3382 = vdwg.mxu0
        %v3383 = vmax.f32 %v3295, 0.0
        %v3384 = vmax.f32 %v3297, 0.0
        %v3385 = vmax.f32 %v3377, 0.0
        %v3386 = vmax.f32 %v3379, 0.0
        %v3387 = vand.u32 %v496, 134217728
        %vm3388 = vcmp.ne.s32.totalorder %v3387, 0
        %v3389 = vsel %vm3388, 1, 0
        %v3390 = vlaneseq
        %v3391 = vshrl.u32 %v3390, 7
        %v3392 = vsub.s32 0, %v3391
        %v3393 = vrot.slane %v3389, %v3392
        %v3394 = vlaneseq
        %v3395 = vshrl.u32 %v3394, 7
        %v3396 = vsub.s32 1, %v3395
        %v3397 = vrot.slane %v3389, %v3396
        %v3398 = vlaneseq
        %v3399 = vshrl.u32 %v3398, 7
        %v3400 = vsub.s32 2, %v3399
        %v3401 = vrot.slane %v3389, %v3400
        %v3402 = vlaneseq
        %v3403 = vshrl.u32 %v3402, 7
        %v3404 = vsub.s32 3, %v3403
        %v3405 = vrot.slane %v3389, %v3404
        %vm3406 = vcmp.eq.s32.totalorder %v3393, 1
        %vm3407 = vcmp.eq.s32.totalorder %v3397, 1
        %vm3408 = vcmp.eq.s32.totalorder %v3401, 1
        %vm3409 = vcmp.eq.s32.totalorder %v3405, 1
        %v3410 = vsel %vm3406, %v3383, 0.0
        %v3411 = vsel %vm3407, %v3384, 0.0
        %v3412 = vsel %vm3408, %v3385, 0.0
        %v3413 = vsel %vm3409, %v3386, 0.0
        %s3414 = smul.u32 %s31, 512
        %v3419 = vcombine.low %v3410, %v3411
        %v3420 = vcombine.low %v3412, %v3413
        %s3423 = sshra.s32 %s3414, 7
        %s3424 = sand.u32 %s3414, 127
        %s3425 = smul.addr %s3423, 4
        %s3426 = scalar_lea.vmem %s406, %s3425 [#allocation11]
        %3427 = vst [vmem:[%s3426] sm:$0xff] %v3419
        %3428 = vst [vmem:[%s3426 + $0x8] sm:$0xff] %v3420
        %v3429 = vld [vmem:[#allocation4] sm:$0xf]
        %vm3430 = vcmask 1043456
        %v3431 = vsel %vm3430, %v3410, -inf
        %v3432 = vsel %vm3430, %v3411, -inf
        %v3433 = vsel %vm3430, %v3412, -inf
        %v3434 = vsel %vm3430, %v3413, -inf
        %v3435 = vmax.f32 %v3431, %v3432
        %v3436 = vmax.f32 %v3433, %v3434
        %v3437 = vmax.f32 %v3435, %v3436
        %3438 = vmax.xlane.f32.xlu0 %v3437
        %v3439 = vpop.xlane.xlu0 %3438
        %v3440 = vmax.f32 %v3429, %v3439
        %vm3441 = vcmask 3072
        %3442 = vst.msk [vmem:[#allocation4] sm:$0xf] %vm3441, %v3440
        // Predicated region
        $region61: #{tpu_custom_call.1} parent=43 // pred_check
          %p3443 = pneg %p424
        $region62: #{tpu_custom_call.1} parent=43 // pred_check_branch
          %3445 = sbr.rel (%p3443) target = $region64
        $region63: #{tpu_custom_call.1} parent=43 // pred_region
          %v3446 = vld [vmem:[#allocation4] sm:$0xf]
          %v3447 = vadd.f32 %v3446, 1e-09
          %v3448 = vrcp.pop %v3447
          %v3449 = vld [vmem:[%s406] sm:$0xff]
          %v3450 = vld [vmem:[%s406 + $0x8] sm:$0xff]
          %3452 = vset.pattern.permute.xlu0 0
          %3453 = vperm.xlu0 %3452, %v3448
          %v3454 = vpop.permute.xlu0 %3453
          %v3456 = vunpack.c.l.s4 839922192
          %v3457 = vunpack.c.0.s8 %v3456
          %v3458 = vlaneseq
          %v3459 = vshrl.u32 %v3458, 7
          %v3460 = vsub.s32 %v3457, %v3459
          %v3461 = vrot.slane %v3454, %v3460
          %v3463 = vmul.f32 %v3449, %v3461
          %v3464 = vmul.f32 %v3450, %v3461
          %3465 = vst [vmem:[%s406] sm:$0xff] %v3463
          %3466 = vst [vmem:[%s406 + $0x8] sm:$0xff] %v3464
        $region64: #{tpu_custom_call.1} parent=43 // pred_fallthru
          _
        %s3467 = sand.u32 %s214, 1
        %s3468 = scalar_lea.sflag [#allocation7], %s3467
        %s3469 = sand.u32 %s214, 1
        %s3470 = smul.addr %s3469, 16
        %s3471 = scalar_lea.vmem [#allocation11], %s3470
        // Predicated region
        $region65: #{tpu_custom_call.1} parent=43 // pred_check
          %p3472 = pneg %p224
        $region66: #{tpu_custom_call.1} parent=43 // pred_check_branch
          %3474 = sbr.rel (%p3472) target = $region68
        $region67: #{tpu_custom_call.1} parent=43 // pred_region
          %s3476 = ssub.s32 256, 256
          %3477 = vsyncadd %s3468, %s3476
          %s3478 = smul.addr %s30, 4
          %s3479 = smul.addr %s3478, 64
          %s3480 = scalar_lea.hbm %s6, %s3479
          %s3482 = sshll.u32 %s3471, 4
          %s3483 = int_to_ptr.vmem [resolvable:$true] %s3482
          %3485 = dma.vmem_to_hbm [thread:$0]  %s3483, 256, %s3480, %s3468
        $region68: #{tpu_custom_call.1} parent=43 // pred_fallthru
          _
      $region44: #{tpu_custom_call.1} parent=5 // pred_fallthru
        _
      %p3486 = scmp.le.s32.totalorder 2, %s21
      // Predicated region
      $region69: #{tpu_custom_call.1} parent=5 // pred_check
        %p3487 = pneg %p3486
      $region70: #{tpu_custom_call.1} parent=5 // pred_check_branch
        %3489 = sbr.rel (%p3487) target = $region72
      $region71: #{tpu_custom_call.1} parent=5 // pred_region
        %s3490 = ssub.s32 %s21, 2
        // Predicated region
        $region73: #{tpu_custom_call.1} parent=71 // pred_check
          %p3491 = pneg %p230
        $region74: #{tpu_custom_call.1} parent=71 // pred_check_branch
          %3493 = sbr.rel (%p3491) target = $region76
        $region75: #{tpu_custom_call.1} parent=71 // pred_region
          %s3494 = sand.u32 %s215, 1
          %s3495 = scalar_lea.sflag [#allocation7], %s3494
          %s3496 = sand.u32 %s215, 1
          %s3497 = smul.addr %s3496, 16
          %s3498 = scalar_lea.vmem [#allocation11], %s3497
          %3499 = dma.done %s3495, 256
        $region76: #{tpu_custom_call.1} parent=71 // pred_fallthru
          _
      $region72: #{tpu_custom_call.1} parent=5 // pred_fallthru
        _
    $region6: #{tpu_custom_call.1} parent=1 // loop_footer
      %s25 = sadd.s32 1, %s21
    $region7: #{tpu_custom_call.1} parent=1 // loop_footer_branch
      %20 = sbr.rel target = $region3
    $region8: #{tpu_custom_call.1} parent=1 // loop_exit
      _
    %3500 = vsyncpa [#allocation6], 1
    %s3501 = scalar_lea.sflag [#allocation6], 1
    %3502 = vsyncpa %s3501, 1
    %3503 = vsyncpa [#allocation9], 1
    %s3504 = scalar_lea.sflag [#allocation9], 1
    %3505 = vsyncpa %s3504, 1
    %3506 = vsyncpa [#allocation7], 1
    %s3507 = scalar_lea.sflag [#allocation7], 1
    %3508 = vsyncpa %s3507, 1

</llo_original>
